<compile_context>
chip_gen: v7x
topology: tpu7x:2x2x1
jax: 0.10.0
libtpu: 0.0.40
codegen_flags: <defaults>
</compile_context>

<pallas_src>
import math

import jax
import jax.numpy as jnp
from jax import lax
from jax.experimental import pallas as pl
from jax.experimental.pallas import tpu as pltpu

# ---- sizes implied by Calibration.__init__ ----------------------------------
REF_SPACING = 5
NUM_ALT_CENTERS = 19                     # torch.arange(1, 20, 1)
NUM_REF_CENTERS = 4                      # torch.arange(1, 20, 5) -> [1, 6, 11, 16]
NUM_FEATURES = 1 + NUM_REF_CENTERS + NUM_ALT_CENTERS   # 24
MAX_ALT_FOR_ADJ = 20                     # final_adjustments has 21 entries
NUM_MONO_IN = 1                          # the logit feature is the single increasing input
_LANE_GRAN = 512                         # batch-tile granularity (multiple of 128)


def _round_up(x, m):
    return ((x + m - 1) // m) * m


def _mono_masks(h, tb):
    # Hidden-unit index on the sublane axis.  Masks are data independent, so they
    # are built once per kernel invocation and reused (JAX does not CSE them).
    j = lax.broadcasted_iota(jnp.int32, (h, tb), 0)
    return j < (h // 3), j < ((2 * h) // 3)


def _mono_activation(pre, lt1, lt2):
    # TODO(synk): MonoDense internals are not in the provided snippet; activation is
    # reconstructed from the "Constrained Monotonic Neural Networks" scheme used by
    # permutect's MonoDense: first third convex (ReLU), second third concave
    # (-ReLU(-x)), remainder saturated (clip to [-1, 1]).
    convex = jnp.maximum(pre, 0.0)
    concave = jnp.minimum(pre, 0.0)
    saturated = jnp.clip(pre, -1.0, 1.0)
    return jnp.where(lt1, convex, jnp.where(lt2, concave, saturated))


def _centers_softmax(counts_1b, first, spacing, n_centers, max_row):
    # Softmax over the center (sublane) axis.  max_row is the analytically computed
    # per-example max score (-(x - nearest_center)^2) so no cross-sublane max-reduce
    # is needed; exponents are <= 0 by construction (safe for padded lanes too).
    tb = counts_1b.shape[1]
    centers = first + spacing * lax.broadcasted_iota(
        jnp.int32, (n_centers, tb), 0).astype(jnp.float32)
    e = jnp.exp(-jnp.square(counts_1b - centers) - max_row)          # (C, TB)
    return e * pl.reciprocal(jnp.sum(e, axis=0, keepdims=True), approx=True)


def _calibration_kernel(x_ref,                      # (4, TB): logit/mil, ref, alt, adj(+b2)
                        w0_ref,                     # (h0, 25)   bf16, b0 folded in col 24
                        w1_ref,                     # (h1, h0+1) bf16, b1 folded in last col
                        w2_ref,                     # (h1, 1)    f32, |w2|
                        out_ref,                    # (1, TB)    f32
                        feat_ref,                   # VMEM scratch (25, TB)   f32
                        hid_ref):                   # VMEM scratch (h0+1, TB) f32
    tb = out_ref.shape[1]
    h0 = w0_ref.shape[0]
    h1 = w1_ref.shape[0]

    logits = x_ref[pl.ds(0, 1), :]        # already divided by max_input_logit in wrapper
    refc = x_ref[pl.ds(1, 1), :]
    altc = x_ref[pl.ds(2, 1), :]
    adj = x_ref[pl.ds(3, 1), :]           # final_adjustments[min(alt,20)] + b2 (precomputed)

    logit_feat = jnp.tanh(logits)                                     # (1, TB)

    # Analytic per-example max softmax score (nearest center) -> pure VPU on a 1-row tile.
    alt_near = jnp.clip(jnp.floor(altc + 0.5), 1.0, float(NUM_ALT_CENTERS))
    alt_max = -jnp.square(altc - alt_near)
    ref_near = 1.0 + float(REF_SPACING) * jnp.clip(
        jnp.floor((refc - 1.0) * (1.0 / REF_SPACING) + 0.5), 0.0, float(NUM_REF_CENTERS - 1))
    ref_max = -jnp.square(refc - ref_near)

    ref_comb = _centers_softmax(refc, 1.0, float(REF_SPACING), NUM_REF_CENTERS, ref_max)  # (4, TB)
    alt_comb = _centers_softmax(altc, 1.0, 1.0, NUM_ALT_CENTERS, alt_max)                 # (19, TB)

    # ---- layer 0: single bias-folded matmul on a features scratch -------------
    feat_ref[pl.ds(0, 1), :] = logit_feat
    feat_ref[pl.ds(1, NUM_REF_CENTERS), :] = ref_comb
    feat_ref[pl.ds(1 + NUM_REF_CENTERS, NUM_ALT_CENTERS), :] = alt_comb
    feat_ref[pl.ds(NUM_FEATURES, 1), :] = jnp.ones_like(logit_feat)   # bias row

    lt1_0, lt2_0 = _mono_masks(h0, tb)
    pre0 = jnp.dot(w0_ref[...], feat_ref[...].astype(jnp.bfloat16),
                   preferred_element_type=jnp.float32)                # (h0, TB)
    act0 = _mono_activation(pre0, lt1_0, lt2_0)

    # ---- layer 1: bias folded via a trailing ones row --------------------------
    hid_ref[pl.ds(0, h0), :] = act0
    hid_ref[pl.ds(h0, 1), :] = jnp.ones_like(logit_feat)
    if h1 == h0:
        lt1_1, lt2_1 = lt1_0, lt2_0
    else:
        lt1_1, lt2_1 = _mono_masks(h1, tb)
    pre1 = jnp.dot(w1_ref[...], hid_ref[...].astype(jnp.bfloat16),
                   preferred_element_type=jnp.float32)                # (h1, TB)
    act1 = _mono_activation(pre1, lt1_1, lt2_1)

    # ---- output layer: (1, h1) x (h1, TB) as an f32 sublane reduce -------------
    cal = jnp.sum(w2_ref[...] * act1, axis=0, keepdims=True)          # (1, TB)
    out_ref[...] = cal + adj


def calibration_forward(params, logits_b, ref_counts_b, alt_counts_b, block_b=None):
    b = logits_b.shape[0]

    if block_b is None:
        target = 4096
        if b <= 2 * target:
            # one or two balanced lane-dense tiles (two -> one per v7x TensorCore)
            block_b = max(_LANE_GRAN, _round_up(pl.cdiv(b, 2), _LANE_GRAN))
        else:
            n = pl.cdiv(b, target)
            n += n % 2                       # even step count for megacore balance
            block_b = _round_up(pl.cdiv(b, n), _LANE_GRAN)

    n_blocks = pl.cdiv(b, block_b)
    bp = n_blocks * block_b
    pad = bp - b

    mil = params["max_input_logit"].reshape(()).astype(jnp.float32)
    b2 = params["b2"].reshape(()).astype(jnp.float32)
    adj_tab = params["adj"].reshape(-1).astype(jnp.float32)

    logits_f = logits_b.astype(jnp.float32)
    ref_f = ref_counts_b.astype(jnp.float32)
    alt_f = alt_counts_b.astype(jnp.float32)

    # Per-alt-count adjustment gather done in the wrapper (fused by XLA into the pack);
    # b2 folded into the same row.
    idx = jnp.minimum(alt_f, float(MAX_ALT_FOR_ADJ)).astype(jnp.int32)
    adj_row = adj_tab[idx] + b2

    x = jnp.stack([logits_f / mil, ref_f, alt_f, adj_row], axis=0)    # (4, B)
    if pad:
        x = jnp.pad(x, ((0, 0), (0, pad)))                            # (4, Bp)

    h0 = params["w0"].shape[1]
    h1 = params["w1"].shape[1]

    # Grid-invariant weight preprocessing hoisted out of the kernel (done once by XLA):
    # |W| on the monotone row / inner layers, transpose, fold biases as an extra column,
    # cast MXU operands to bf16 at the boundary.
    w0 = params["w0"].astype(jnp.float32)                             # (24, h0)
    w0_eff = jnp.concatenate([jnp.abs(w0[:NUM_MONO_IN]), w0[NUM_MONO_IN:]], axis=0)
    w0aug = jnp.concatenate([w0_eff.T, params["b0"].reshape(h0, 1)],
                            axis=1).astype(jnp.bfloat16)              # (h0, 25)
    w1aug = jnp.concatenate([jnp.abs(params["w1"]).T, params["b1"].reshape(h1, 1)],
                            axis=1).astype(jnp.bfloat16)              # (h1, h0+1)
    w2_col = jnp.abs(params["w2"]).reshape(h1, 1).astype(jnp.float32)

    batch_in_spec = pl.BlockSpec((4, block_b), lambda i: (0, i))
    out_spec = pl.BlockSpec((1, block_b), lambda i: (0, i))

    def resident(shape):
        # constant block index -> stays resident across grid steps
        return pl.BlockSpec(shape, lambda i: (0, 0))

    out = pl.pallas_call(
        _calibration_kernel,
        out_shape=jax.ShapeDtypeStruct((1, bp), jnp.float32),
        grid=(n_blocks,),
        in_specs=[
            batch_in_spec,
            resident((h0, NUM_FEATURES + 1)),
            resident((h1, h0 + 1)),
            resident((h1, 1)),
        ],
        out_specs=out_spec,
        scratch_shapes=[
            pltpu.VMEM((NUM_FEATURES + 1, block_b), jnp.float32),     # features (25, TB)
            pltpu.VMEM((h0 + 1, block_b), jnp.float32),               # hidden + ones row
        ],
        compiler_params=pltpu.CompilerParams(dimension_semantics=("parallel",)),
    )(x, w0aug, w1aug, w2_col)

    return out[0, :b]


# ----------------------- deterministic parameter init ------------------------
def init_params(key, hidden_layer_sizes=(32, 32)):
    h0, h1 = hidden_layer_sizes
    k = jax.random.split(key, 6)
    bd0 = 1.0 / math.sqrt(NUM_FEATURES)
    bd1 = 1.0 / math.sqrt(h0)
    bd2 = 1.0 / math.sqrt(h1)
    u = lambda kk, shape, bd: jax.random.uniform(kk, shape, jnp.float32, -bd, bd)
    return {
        "max_input_logit": jnp.full((1, 1), 20.0, jnp.float32),
        "w0": u(k[0], (NUM_FEATURES, h0), bd0),   # row 0 = monotonic (logit) weights
        "b0": u(k[1], (1, h0), bd0),
        "w1": u(k[2], (h0, h1), bd1),
        "b1": u(k[3], (1, h1), bd1),
        "w2": u(k[4], (h1, 1), bd2),
        "b2": u(k[5], (1, 1), bd2),
        # Calibration.__init__ zero-inits these; small deterministic values so the
        # adjustment path is actually exercised.
        "adj": (jnp.arange(MAX_ALT_FOR_ADJ + 1, dtype=jnp.float32) * 0.01).reshape(1, -1),
    }


# ------------------------ pure-JAX reference (for check) ---------------------
def reference_forward(params, logits_b, ref_counts_b, alt_counts_b):
    mil = params["max_input_logit"][0, 0]
    logit_feat = jnp.tanh(logits_b / mil)[:, None]
    ref_centers = jnp.arange(1, 20, REF_SPACING, dtype=jnp.float32)
    alt_centers = jnp.arange(1, 20, 1, dtype=jnp.float32)
    ref_comb = jax.nn.softmax(-jnp.square(ref_counts_b[:, None] - ref_centers[None, :]), axis=1)
    alt_comb = jax.nn.softmax(-jnp.square(alt_counts_b[:, None] - alt_centers[None, :]), axis=1)
    x = jnp.concatenate([logit_feat, ref_comb, alt_comb], axis=1)

    w0 = params["w0"]
    w0 = jnp.concatenate([jnp.abs(w0[:NUM_MONO_IN]), w0[NUM_MONO_IN:]], axis=0)

    def act(pre):
        h = pre.shape[-1]
        t1, t2 = h // 3, (2 * h) // 3
        return jnp.concatenate([jnp.maximum(pre[:, :t1], 0.0),
                                jnp.minimum(pre[:, t1:t2], 0.0),
                                jnp.clip(pre[:, t2:], -1.0, 1.0)], axis=1)

    h = act(x @ w0 + params["b0"])
    h = act(h @ jnp.abs(params["w1"]) + params["b1"])
    cal = (h @ jnp.abs(params["w2"]) + params["b2"])[:, 0]
    idx = jnp.minimum(alt_counts_b, float(MAX_ALT_FOR_ADJ)).astype(jnp.int32)
    return cal + params["adj"][0, idx]


if __name__ == "__main__":
    key = jax.random.PRNGKey(0)
    kp, k1, k2, k3 = jax.random.split(key, 4)

    # Non-multiple-of-block batch exercises padding; auto tile picks 2 balanced
    # 1536-lane tiles (one per v7x TensorCore, 2 cheap sequential steps elsewhere).
    B = 2500
    params = init_params(kp, hidden_layer_sizes=(32, 32))

    logits = jax.random.normal(k1, (B,), dtype=jnp.float32) * 5.0
    ref_counts = jax.random.randint(k2, (B,), 1, 60).astype(jnp.float32)
    alt_counts = jax.random.randint(k3, (B,), 1, 40).astype(jnp.float32)   # exercises clamp at 20

    out = calibration_forward(params, logits, ref_counts, alt_counts)
    out = jax.block_until_ready(out)

    ref = reference_forward(params, logits, ref_counts, alt_counts)
    assert out.shape == (B,)
    # Tolerance accounts for bf16 MXU operands (weights + features cast at the dot
    # boundary) and the EUP approximate reciprocal in the softmax normalisation;
    # typical error is a few 1e-3 against the all-f32 reference.
    assert jnp.allclose(out, ref, atol=1e-2, rtol=1e-3), "Pallas kernel mismatch vs JAX reference"

    print("KERNEL_OK")
</pallas_src>

<mosaic_0001>
module attributes {stable_mosaic.version = 11 : i64} {
  func.func @_calibration_kernel(%arg0: i32, %arg1: memref<4x1536xf32, #tpu.memory_space<vmem>>, %arg2: memref<32x25xbf16, #tpu.memory_space<vmem>>, %arg3: memref<32x33xbf16, #tpu.memory_space<vmem>>, %arg4: memref<32x1xf32, #tpu.memory_space<vmem>>, %arg5: memref<1x1536xf32, #tpu.memory_space<vmem>>, %arg6: memref<25x1536xf32, #tpu.memory_space<vmem>>, %arg7: memref<33x1536xf32, #tpu.memory_space<vmem>>) attributes {dimension_semantics = [#tpu.dimension_semantics<parallel>], iteration_bounds = array<i64: 2>, scalar_prefetch = 0 : i64, scratch_operands = 2 : i64, tpu.core_type = #tpu.core_type<tc>, window_params = [{transform_indices = @transform_0, window_bounds = array<i64: 4, 1536>}, {pipeline_mode = #tpu.pipeline_mode<synchronous>, transform_indices = @transform_1, window_bounds = array<i64: 32, 25>}, {pipeline_mode = #tpu.pipeline_mode<synchronous>, transform_indices = @transform_2, window_bounds = array<i64: 32, 33>}, {pipeline_mode = #tpu.pipeline_mode<synchronous>, transform_indices = @transform_3, window_bounds = array<i64: 32, 1>}, {transform_indices = @transform_4, window_bounds = array<i64: 1, 1536>}]} {
    %c0 = arith.constant 0 : index
    %c0_0 = arith.constant 0 : index
    %0 = vector.load %arg1[%c0, %c0_0] : memref<4x1536xf32, #tpu.memory_space<vmem>>, vector<1x1536xf32>
    %c1 = arith.constant 1 : index
    %c0_1 = arith.constant 0 : index
    %1 = vector.load %arg1[%c1, %c0_1] : memref<4x1536xf32, #tpu.memory_space<vmem>>, vector<1x1536xf32>
    %c2 = arith.constant 2 : index
    %c0_2 = arith.constant 0 : index
    %2 = vector.load %arg1[%c2, %c0_2] : memref<4x1536xf32, #tpu.memory_space<vmem>>, vector<1x1536xf32>
    %c3 = arith.constant 3 : index
    %c0_3 = arith.constant 0 : index
    %3 = vector.load %arg1[%c3, %c0_3] : memref<4x1536xf32, #tpu.memory_space<vmem>>, vector<1x1536xf32>
    %4 = math.tanh %0 : vector<1x1536xf32>
    %cst = arith.constant 5.000000e-01 : f32
    %5 = vector.broadcast %cst : f32 to vector<1x1536xf32>
    %6 = arith.addf %2, %5 : vector<1x1536xf32>
    %7 = math.floor %6 : vector<1x1536xf32>
    %cst_4 = arith.constant 1.000000e+00 : f32
    %cst_5 = arith.constant 1.900000e+01 : f32
    %8 = vector.broadcast %cst_4 : f32 to vector<1x1536xf32>
    %9 = arith.maximumf %8, %7 : vector<1x1536xf32>
    %10 = vector.broadcast %cst_5 : f32 to vector<1x1536xf32>
    %11 = arith.minimumf %10, %9 : vector<1x1536xf32>
    %12 = arith.subf %2, %11 : vector<1x1536xf32>
    %13 = arith.mulf %12, %12 : vector<1x1536xf32>
    %cst_6 = arith.constant 0.000000e+00 : f32
    %14 = vector.broadcast %cst_6 : f32 to vector<1x1536xf32>
    %15 = arith.subf %14, %13 : vector<1x1536xf32>
    %cst_7 = arith.constant 1.000000e+00 : f32
    %16 = vector.broadcast %cst_7 : f32 to vector<1x1536xf32>
    %17 = arith.subf %1, %16 : vector<1x1536xf32>
    %cst_8 = arith.constant 2.000000e-01 : f32
    %18 = vector.broadcast %cst_8 : f32 to vector<1x1536xf32>
    %19 = arith.mulf %17, %18 : vector<1x1536xf32>
    %cst_9 = arith.constant 5.000000e-01 : f32
    %20 = vector.broadcast %cst_9 : f32 to vector<1x1536xf32>
    %21 = arith.addf %19, %20 : vector<1x1536xf32>
    %22 = math.floor %21 : vector<1x1536xf32>
    %cst_10 = arith.constant 0.000000e+00 : f32
    %cst_11 = arith.constant 3.000000e+00 : f32
    %23 = vector.broadcast %cst_10 : f32 to vector<1x1536xf32>
    %24 = arith.maximumf %23, %22 : vector<1x1536xf32>
    %25 = vector.broadcast %cst_11 : f32 to vector<1x1536xf32>
    %26 = arith.minimumf %25, %24 : vector<1x1536xf32>
    %cst_12 = arith.constant 5.000000e+00 : f32
    %27 = vector.broadcast %cst_12 : f32 to vector<1x1536xf32>
    %28 = arith.mulf %27, %26 : vector<1x1536xf32>
    %cst_13 = arith.constant 1.000000e+00 : f32
    %29 = vector.broadcast %cst_13 : f32 to vector<1x1536xf32>
    %30 = arith.addf %29, %28 : vector<1x1536xf32>
    %31 = arith.subf %1, %30 : vector<1x1536xf32>
    %32 = arith.mulf %31, %31 : vector<1x1536xf32>
    %cst_14 = arith.constant 0.000000e+00 : f32
    %33 = vector.broadcast %cst_14 : f32 to vector<1x1536xf32>
    %34 = arith.subf %33, %32 : vector<1x1536xf32>
    %35 = tpu.iota {dimensions = array<i32: 0>} : vector<4x1536xi32>
    %36 = arith.sitofp %35 : vector<4x1536xi32> to vector<4x1536xf32>
    %cst_15 = arith.constant 5.000000e+00 : f32
    %37 = vector.broadcast %cst_15 : f32 to vector<4x1536xf32>
    %38 = arith.mulf %37, %36 : vector<4x1536xf32>
    %cst_16 = arith.constant 1.000000e+00 : f32
    %39 = vector.broadcast %cst_16 : f32 to vector<4x1536xf32>
    %40 = arith.addf %39, %38 : vector<4x1536xf32>
    %41 = vector.broadcast %1 : vector<1x1536xf32> to vector<4x1536xf32>
    %42 = arith.subf %41, %40 : vector<4x1536xf32>
    %43 = arith.mulf %42, %42 : vector<4x1536xf32>
    %cst_17 = arith.constant 0.000000e+00 : f32
    %44 = vector.broadcast %cst_17 : f32 to vector<4x1536xf32>
    %45 = arith.subf %44, %43 : vector<4x1536xf32>
    %46 = vector.broadcast %34 : vector<1x1536xf32> to vector<4x1536xf32>
    %47 = arith.subf %45, %46 : vector<4x1536xf32>
    %48 = math.exp %47 : vector<4x1536xf32>
    %cst_18 = arith.constant dense<0.000000e+00> : vector<1536xf32>
    %49 = vector.multi_reduction <add>, %48, %cst_18 [0] : vector<4x1536xf32> to vector<1536xf32>
    %50 = vector.shape_cast %49 : vector<1536xf32> to vector<1x1536xf32>
    %51 = tpu.reciprocal %50 {approx = true} : vector<1x1536xf32> -> vector<1x1536xf32>
    %52 = vector.broadcast %51 : vector<1x1536xf32> to vector<4x1536xf32>
    %53 = arith.mulf %48, %52 : vector<4x1536xf32>
    %54 = tpu.iota {dimensions = array<i32: 0>} : vector<19x1536xi32>
    %55 = arith.sitofp %54 : vector<19x1536xi32> to vector<19x1536xf32>
    %cst_19 = arith.constant 1.000000e+00 : f32
    %56 = vector.broadcast %cst_19 : f32 to vector<19x1536xf32>
    %57 = arith.mulf %56, %55 : vector<19x1536xf32>
    %cst_20 = arith.constant 1.000000e+00 : f32
    %58 = vector.broadcast %cst_20 : f32 to vector<19x1536xf32>
    %59 = arith.addf %58, %57 : vector<19x1536xf32>
    %60 = vector.broadcast %2 : vector<1x1536xf32> to vector<19x1536xf32>
    %61 = arith.subf %60, %59 : vector<19x1536xf32>
    %62 = arith.mulf %61, %61 : vector<19x1536xf32>
    %cst_21 = arith.constant 0.000000e+00 : f32
    %63 = vector.broadcast %cst_21 : f32 to vector<19x1536xf32>
    %64 = arith.subf %63, %62 : vector<19x1536xf32>
    %65 = vector.broadcast %15 : vector<1x1536xf32> to vector<19x1536xf32>
    %66 = arith.subf %64, %65 : vector<19x1536xf32>
    %67 = math.exp %66 : vector<19x1536xf32>
    %cst_22 = arith.constant dense<0.000000e+00> : vector<1536xf32>
    %68 = vector.multi_reduction <add>, %67, %cst_22 [0] : vector<19x1536xf32> to vector<1536xf32>
    %69 = vector.shape_cast %68 : vector<1536xf32> to vector<1x1536xf32>
    %70 = tpu.reciprocal %69 {approx = true} : vector<1x1536xf32> -> vector<1x1536xf32>
    %71 = vector.broadcast %70 : vector<1x1536xf32> to vector<19x1536xf32>
    %72 = arith.mulf %67, %71 : vector<19x1536xf32>
    %c0_23 = arith.constant 0 : index
    %c0_24 = arith.constant 0 : index
    %73 = vector.load %arg6[%c0_23, %c0_24] : memref<25x1536xf32, #tpu.memory_space<vmem>>, vector<1x1536xf32>
    tpu.vector_store %arg6[%c0_23, %c0_24], %4 {strides = array<i32>} : memref<25x1536xf32, #tpu.memory_space<vmem>>, vector<1x1536xf32>,
    %c1_25 = arith.constant 1 : index
    %c0_26 = arith.constant 0 : index
    %74 = vector.load %arg6[%c1_25, %c0_26] : memref<25x1536xf32, #tpu.memory_space<vmem>>, vector<4x1536xf32>
    tpu.vector_store %arg6[%c1_25, %c0_26], %53 {strides = array<i32>} : memref<25x1536xf32, #tpu.memory_space<vmem>>, vector<4x1536xf32>,
    %c5 = arith.constant 5 : index
    %c0_27 = arith.constant 0 : index
    %75 = vector.load %arg6[%c5, %c0_27] : memref<25x1536xf32, #tpu.memory_space<vmem>>, vector<19x1536xf32>
    tpu.vector_store %arg6[%c5, %c0_27], %72 {strides = array<i32>} : memref<25x1536xf32, #tpu.memory_space<vmem>>, vector<19x1536xf32>,
    %cst_28 = arith.constant 1.000000e+00 : f32
    %76 = vector.broadcast %cst_28 : f32 to vector<1x1536xf32>
    %c24 = arith.constant 24 : index
    %c0_29 = arith.constant 0 : index
    %77 = vector.load %arg6[%c24, %c0_29] : memref<25x1536xf32, #tpu.memory_space<vmem>>, vector<1x1536xf32>
    tpu.vector_store %arg6[%c24, %c0_29], %76 {strides = array<i32>} : memref<25x1536xf32, #tpu.memory_space<vmem>>, vector<1x1536xf32>,
    %78 = tpu.iota {dimensions = array<i32: 0>} : vector<32x1536xi32>
    %c10_i32 = arith.constant 10 : i32
    %79 = vector.broadcast %c10_i32 : i32 to vector<32x1536xi32>
    %80 = arith.cmpi slt, %78, %79 : vector<32x1536xi32>
    %c21_i32 = arith.constant 21 : i32
    %81 = vector.broadcast %c21_i32 : i32 to vector<32x1536xi32>
    %82 = arith.cmpi slt, %78, %81 : vector<32x1536xi32>
    %c0_30 = arith.constant 0 : index
    %c0_31 = arith.constant 0 : index
    %83 = vector.load %arg2[%c0_30, %c0_31] : memref<32x25xbf16, #tpu.memory_space<vmem>>, vector<32x25xbf16>
    %c0_32 = arith.constant 0 : index
    %c0_33 = arith.constant 0 : index
    %84 = vector.load %arg6[%c0_32, %c0_33] : memref<25x1536xf32, #tpu.memory_space<vmem>>, vector<25x1536xf32>
    %85 = arith.truncf %84 : vector<25x1536xf32> to vector<25x1536xbf16>
    %cst_34 = arith.constant dense<0.000000e+00> : vector<32x1536xf32>
    %86 = tpu.matmul %83, %85, %cst_34 {dimension_numbers = #tpu.dot_dimension_numbers<[1], [0], [0], [1], [0, 0, 1, 1], [], []>} : vector<32x25xbf16>, vector<25x1536xbf16>, vector<32x1536xf32> -> vector<32x1536xf32>
    %cst_35 = arith.constant 0.000000e+00 : f32
    %87 = vector.broadcast %cst_35 : f32 to vector<32x1536xf32>
    %88 = arith.maximumf %86, %87 : vector<32x1536xf32>
    %cst_36 = arith.constant 0.000000e+00 : f32
    %89 = vector.broadcast %cst_36 : f32 to vector<32x1536xf32>
    %90 = arith.minimumf %86, %89 : vector<32x1536xf32>
    %cst_37 = arith.constant -1.000000e+00 : f32
    %cst_38 = arith.constant 1.000000e+00 : f32
    %91 = vector.broadcast %cst_37 : f32 to vector<32x1536xf32>
    %92 = arith.maximumf %91, %86 : vector<32x1536xf32>
    %93 = vector.broadcast %cst_38 : f32 to vector<32x1536xf32>
    %94 = arith.minimumf %93, %92 : vector<32x1536xf32>
    %95 = arith.select %82, %90, %94 : vector<32x1536xi1>, vector<32x1536xf32>
    %96 = arith.select %80, %88, %95 : vector<32x1536xi1>, vector<32x1536xf32>
    %c0_39 = arith.constant 0 : index
    %c0_40 = arith.constant 0 : index
    %97 = vector.load %arg7[%c0_39, %c0_40] : memref<33x1536xf32, #tpu.memory_space<vmem>>, vector<32x1536xf32>
    tpu.vector_store %arg7[%c0_39, %c0_40], %96 {strides = array<i32>} : memref<33x1536xf32, #tpu.memory_space<vmem>>, vector<32x1536xf32>,
    %cst_41 = arith.constant 1.000000e+00 : f32
    %98 = vector.broadcast %cst_41 : f32 to vector<1x1536xf32>
    %c32 = arith.constant 32 : index
    %c0_42 = arith.constant 0 : index
    %99 = vector.load %arg7[%c32, %c0_42] : memref<33x1536xf32, #tpu.memory_space<vmem>>, vector<1x1536xf32>
    tpu.vector_store %arg7[%c32, %c0_42], %98 {strides = array<i32>} : memref<33x1536xf32, #tpu.memory_space<vmem>>, vector<1x1536xf32>,
    %c0_43 = arith.constant 0 : index
    %c0_44 = arith.constant 0 : index
    %100 = vector.load %arg3[%c0_43, %c0_44] : memref<32x33xbf16, #tpu.memory_space<vmem>>, vector<32x33xbf16>
    %c0_45 = arith.constant 0 : index
    %c0_46 = arith.constant 0 : index
    %101 = vector.load %arg7[%c0_45, %c0_46] : memref<33x1536xf32, #tpu.memory_space<vmem>>, vector<33x1536xf32>
    %102 = arith.truncf %101 : vector<33x1536xf32> to vector<33x1536xbf16>
    %cst_47 = arith.constant dense<0.000000e+00> : vector<32x1536xf32>
    %103 = tpu.matmul %100, %102, %cst_47 {dimension_numbers = #tpu.dot_dimension_numbers<[1], [0], [0], [1], [0, 0, 1, 1], [], []>} : vector<32x33xbf16>, vector<33x1536xbf16>, vector<32x1536xf32> -> vector<32x1536xf32>
    %cst_48 = arith.constant 0.000000e+00 : f32
    %104 = vector.broadcast %cst_48 : f32 to vector<32x1536xf32>
    %105 = arith.maximumf %103, %104 : vector<32x1536xf32>
    %cst_49 = arith.constant 0.000000e+00 : f32
    %106 = vector.broadcast %cst_49 : f32 to vector<32x1536xf32>
    %107 = arith.minimumf %103, %106 : vector<32x1536xf32>
    %cst_50 = arith.constant -1.000000e+00 : f32
    %cst_51 = arith.constant 1.000000e+00 : f32
    %108 = vector.broadcast %cst_50 : f32 to vector<32x1536xf32>
    %109 = arith.maximumf %108, %103 : vector<32x1536xf32>
    %110 = vector.broadcast %cst_51 : f32 to vector<32x1536xf32>
    %111 = arith.minimumf %110, %109 : vector<32x1536xf32>
    %112 = arith.select %82, %107, %111 : vector<32x1536xi1>, vector<32x1536xf32>
    %113 = arith.select %80, %105, %112 : vector<32x1536xi1>, vector<32x1536xf32>
    %c0_52 = arith.constant 0 : index
    %c0_53 = arith.constant 0 : index
    %114 = vector.load %arg4[%c0_52, %c0_53] : memref<32x1xf32, #tpu.memory_space<vmem>>, vector<32x1xf32>
    %115 = vector.broadcast %114 : vector<32x1xf32> to vector<32x1536xf32>
    %116 = arith.mulf %115, %113 : vector<32x1536xf32>
    %cst_54 = arith.constant dense<0.000000e+00> : vector<1536xf32>
    %117 = vector.multi_reduction <add>, %116, %cst_54 [0] : vector<32x1536xf32> to vector<1536xf32>
    %118 = vector.shape_cast %117 : vector<1536xf32> to vector<1x1536xf32>
    %119 = arith.addf %118, %3 : vector<1x1536xf32>
    %c0_55 = arith.constant 0 : index
    %c0_56 = arith.constant 0 : index
    %120 = vector.load %arg5[%c0_55, %c0_56] : memref<1x1536xf32, #tpu.memory_space<vmem>>, vector<1x1536xf32>
    tpu.vector_store %arg5[%c0_55, %c0_56], %119 {strides = array<i32>} : memref<1x1536xf32, #tpu.memory_space<vmem>>, vector<1x1536xf32>,
    return
  }
  func.func @transform_0(%arg0: i32) -> (i32, i32) {
    %c0_i32 = arith.constant 0 : i32
    %c0_i32_0 = arith.constant 0 : i32
    return %c0_i32, %arg0 : i32, i32
  }
  func.func @transform_1(%arg0: i32) -> (i32, i32) {
    %c0_i32 = arith.constant 0 : i32
    %c0_i32_0 = arith.constant 0 : i32
    %c0_i32_1 = arith.constant 0 : i32
    return %c0_i32, %c0_i32_0 : i32, i32
  }
  func.func @transform_2(%arg0: i32) -> (i32, i32) {
    %c0_i32 = arith.constant 0 : i32
    %c0_i32_0 = arith.constant 0 : i32
    %c0_i32_1 = arith.constant 0 : i32
    return %c0_i32, %c0_i32_0 : i32, i32
  }
  func.func @transform_3(%arg0: i32) -> (i32, i32) {
    %c0_i32 = arith.constant 0 : i32
    %c0_i32_0 = arith.constant 0 : i32
    %c0_i32_1 = arith.constant 0 : i32
    return %c0_i32, %c0_i32_0 : i32, i32
  }
  func.func @transform_4(%arg0: i32) -> (i32, i32) {
    %c0_i32 = arith.constant 0 : i32
    %c0_i32_0 = arith.constant 0 : i32
    return %c0_i32, %arg0 : i32, i32
  }
}

</mosaic_0001>

<llo_original>
// kernel: tpu_custom_call.1
$region0: #{tpu_custom_call.1}
  #allocation0 [shape = 'u32[]', space=smem, size = 0x4, offset = 0x4, fixed_abs, tag = 'smem constant byte address 0x4 - core index']
  #allocation1 [shape = 'u32[144,128]{1,0:T(1,128)}', space=vmem, size = 0x12000, scoped, tag = 'internal scratch']
  #allocation2 [shape = 'f32[25,1536]{1,0:T(8,128)}', space=vmem, size = 0x30000, scoped, tag = 'scratch operand']
  #allocation3 [shape = 'f32[33,1536]{1,0:T(8,128)}', space=vmem, size = 0x3c000, scoped, tag = 'scratch operand']
  %s0 = inlined_call_operand.hbm [shape: f32[4,3072], index: 0, kind: input, shape index: {}]
  %s1 = inlined_call_operand.vmem [shape: bf16[32,25], index: 1, kind: input, shape index: {}]
  %s2 = inlined_call_operand.vmem [shape: bf16[32,33], index: 2, kind: input, shape index: {}]
  %s3 = inlined_call_operand.vmem [shape: f32[32,1], index: 3, kind: input, shape index: {}]
  %s4 = inlined_call_operand.hbm [shape: f32[1,3072], index: 4, kind: output, shape index: {}]
  %s5 = sld [smem:[#allocation0]]
  $region53: #{tpu_custom_call.1} parent=0
    _
  %s7 = ssub.s32 1, %s5
  %s8 = scalar_select 0, %s7, %s5
  $region1: #{tpu_custom_call.1} parent=0
    #allocation4 [shape = 'u8[49152]{0}', space=vmem, size = 0xc000, scoped, tag = 'input window, operand 0']
    #allocation5 [shape = 's32[2]{0}', space=sflag, size = 0x8, scoped, tag = 'scoped memory for tpu_custom_call.1']
    #allocation6 [shape = 's32[2]{0}', space=sflag, size = 0x8, scoped, tag = 'scoped memory for tpu_custom_call.1']
    #allocation7 [shape = 'u8[12288]{0}', space=vmem, size = 0x3000, scoped, tag = 'output window, operand 0']
    %9 = vsyncpa [#allocation5], 0
    %s10 = scalar_lea.sflag [#allocation5], 1
    %11 = vsyncpa %s10, 0
    %12 = vsyncpa [#allocation6], 0
    %s13 = scalar_lea.sflag [#allocation6], 1
    %14 = vsyncpa %s13, 0
    loop: start=0, step=1, limit=4
    $region2: #{tpu_custom_call.1} parent=1 // loop_pre_header
      _
    $region3: #{tpu_custom_call.1} parent=1 // loop_header
      %s16 = sphi 0, %s20
      %p17 = scmp.ge.s32.totalorder %s16, 4
      %s26 = sphi 0, %s28
      %s29 = sphi 0, %s26
      %s30 = sphi 0, %s29
      %s46 = sphi 0, %s30
      %s50 = sphi 0, %s50
      %s52 = sphi 0, %s50
      %s53 = sphi 0, %s52
      %s67 = sphi 0, %s53
      %s71 = sphi 0, %s71
      %s73 = sphi 0, %s71
      %s74 = sphi 0, %s73
      %s88 = sphi 0, %s74
      %s92 = sphi 0, %s92
      %s94 = sphi 0, %s92
      %s95 = sphi 0, %s94
      %s109 = sphi 0, %s95
      %s115 = sphi 0, %s117
      %s118 = sphi 0, %s115
      %s119 = sphi 0, %s118
      %s135 = sphi 0, %s119
    $region4: #{tpu_custom_call.1} parent=1 // loop_header_branch
      %19 = sbr.rel (%p17) target = $region8
    $region5: #{tpu_custom_call.1} parent=1 // loop_body
      %s21 = ssub.s32 %s16, 1
      %s22 = ssub.s32 %s16, 2
      %s23 = sadd.s32 %s16, 1
      %s24 = ssub.s32 %s16, %s23
      %p25 = scmp.eq.s32.totalorder %s24, 0
      %s27 = sadd.s32 %s26, 1
      %s28 = scalar_select %p25, %s26, %s27
      %p31 = pneg %p25
      %p32 = scmp.eq.s32.totalorder %s16, 1
      %p33 = por %p31, %p32
      %p34 = scmp.ne.s32.totalorder %s26, %s29
      %p35 = scmp.eq.s32.totalorder %s16, 0
      %p36 = por %p34, %p35
      %p37 = scmp.ne.s32.totalorder %s26, %s29
      %p38 = scmp.eq.s32.totalorder %s21, 1
      %p39 = por %p37, %p38
      %p40 = scmp.ne.s32.totalorder %s29, %s30
      %p41 = scmp.eq.s32.totalorder %s21, 0
      %p42 = por %p40, %p41
      %p43 = scmp.ne.s32.totalorder %s29, %s30
      %p44 = scmp.eq.s32.totalorder %s22, 1
      %p45 = por %p43, %p44
      %p47 = scmp.ne.s32.totalorder %s30, %s46
      %p48 = scmp.eq.s32.totalorder %s22, 0
      %p49 = por %p47, %p48
      %s51 = sadd.s32 %s50, 1
      %p54 = scmp.eq.s32.totalorder %s16, 1
      %p55 = scmp.ne.s32.totalorder %s50, %s52
      %p56 = scmp.eq.s32.totalorder %s16, 0
      %p57 = por %p55, %p56
      %p58 = scmp.ne.s32.totalorder %s50, %s52
      %p59 = scmp.eq.s32.totalorder %s21, 1
      %p60 = por %p58, %p59
      %p61 = scmp.ne.s32.totalorder %s52, %s53
      %p62 = scmp.eq.s32.totalorder %s21, 0
      %p63 = por %p61, %p62
      %p64 = scmp.ne.s32.totalorder %s52, %s53
      %p65 = scmp.eq.s32.totalorder %s22, 1
      %p66 = por %p64, %p65
      %p68 = scmp.ne.s32.totalorder %s53, %s67
      %p69 = scmp.eq.s32.totalorder %s22, 0
      %p70 = por %p68, %p69
      %s72 = sadd.s32 %s71, 1
      %p75 = scmp.eq.s32.totalorder %s16, 1
      %p76 = scmp.ne.s32.totalorder %s71, %s73
      %p77 = scmp.eq.s32.totalorder %s16, 0
      %p78 = por %p76, %p77
      %p79 = scmp.ne.s32.totalorder %s71, %s73
      %p80 = scmp.eq.s32.totalorder %s21, 1
      %p81 = por %p79, %p80
      %p82 = scmp.ne.s32.totalorder %s73, %s74
      %p83 = scmp.eq.s32.totalorder %s21, 0
      %p84 = por %p82, %p83
      %p85 = scmp.ne.s32.totalorder %s73, %s74
      %p86 = scmp.eq.s32.totalorder %s22, 1
      %p87 = por %p85, %p86
      %p89 = scmp.ne.s32.totalorder %s74, %s88
      %p90 = scmp.eq.s32.totalorder %s22, 0
      %p91 = por %p89, %p90
      %s93 = sadd.s32 %s92, 1
      %p96 = scmp.eq.s32.totalorder %s16, 1
      %p97 = scmp.ne.s32.totalorder %s92, %s94
      %p98 = scmp.eq.s32.totalorder %s16, 0
      %p99 = por %p97, %p98
      %p100 = scmp.ne.s32.totalorder %s92, %s94
      %p101 = scmp.eq.s32.totalorder %s21, 1
      %p102 = por %p100, %p101
      %p103 = scmp.ne.s32.totalorder %s94, %s95
      %p104 = scmp.eq.s32.totalorder %s21, 0
      %p105 = por %p103, %p104
      %p106 = scmp.ne.s32.totalorder %s94, %s95
      %p107 = scmp.eq.s32.totalorder %s22, 1
      %p108 = por %p106, %p107
      %p110 = scmp.ne.s32.totalorder %s95, %s109
      %p111 = scmp.eq.s32.totalorder %s22, 0
      %p112 = por %p110, %p111
      %s113 = ssub.s32 %s16, %s23
      %p114 = scmp.eq.s32.totalorder %s113, 0
      %s116 = sadd.s32 %s115, 1
      %s117 = scalar_select %p114, %s115, %s116
      %p120 = pneg %p114
      %p121 = scmp.eq.s32.totalorder %s16, 1
      %p122 = por %p120, %p121
      %p123 = scmp.ne.s32.totalorder %s115, %s118
      %p124 = scmp.eq.s32.totalorder %s16, 0
      %p125 = por %p123, %p124
      %p126 = scmp.ne.s32.totalorder %s115, %s118
      %p127 = scmp.eq.s32.totalorder %s21, 1
      %p128 = por %p126, %p127
      %p129 = scmp.ne.s32.totalorder %s118, %s119
      %p130 = scmp.eq.s32.totalorder %s21, 0
      %p131 = por %p129, %p130
      %p132 = scmp.ne.s32.totalorder %s118, %s119
      %p133 = scmp.eq.s32.totalorder %s22, 1
      %p134 = por %p132, %p133
      %p136 = scmp.ne.s32.totalorder %s119, %s135
      %p137 = scmp.eq.s32.totalorder %s22, 0
      %p138 = por %p136, %p137
      %p139 = scmp.le.s32.totalorder 1, %s16
      %p140 = scmp.lt.s32.totalorder %s16, 3
      %p141 = pnand %p139, %p140
      %p142 = pneg %p141
      // Predicated region
      $region9: #{tpu_custom_call.1} parent=5 // pred_check
        _
      $region10: #{tpu_custom_call.1} parent=5 // pred_check_branch
        %144 = sbr.rel (%p141) target = $region12
      $region11: #{tpu_custom_call.1} parent=5 // pred_region
        %s145 = ssub.s32 %s16, 1
        // Predicated region
        $region13: #{tpu_custom_call.1} parent=11 // pred_check
          %p146 = pneg %p63
        $region14: #{tpu_custom_call.1} parent=11 // pred_check_branch
          %148 = sbr.rel (%p146) target = $region16
        $region15: #{tpu_custom_call.1} parent=11 // pred_region
          _
        $region16: #{tpu_custom_call.1} parent=11 // pred_fallthru
          _
        // Predicated region
        $region17: #{tpu_custom_call.1} parent=11 // pred_check
          %p149 = pneg %p84
        $region18: #{tpu_custom_call.1} parent=11 // pred_check_branch
          %151 = sbr.rel (%p149) target = $region20
        $region19: #{tpu_custom_call.1} parent=11 // pred_region
          _
        $region20: #{tpu_custom_call.1} parent=11 // pred_fallthru
          _
        // Predicated region
        $region21: #{tpu_custom_call.1} parent=11 // pred_check
          %p152 = pneg %p105
        $region22: #{tpu_custom_call.1} parent=11 // pred_check_branch
          %154 = sbr.rel (%p152) target = $region24
        $region23: #{tpu_custom_call.1} parent=11 // pred_region
          _
        $region24: #{tpu_custom_call.1} parent=11 // pred_fallthru
          _
      $region12: #{tpu_custom_call.1} parent=5 // pred_fallthru
        _
      %p155 = scmp.lt.s32.totalorder %s16, 2
      // Predicated region
      $region25: #{tpu_custom_call.1} parent=5 // pred_check
        %p156 = pneg %p155
      $region26: #{tpu_custom_call.1} parent=5 // pred_check_branch
        %158 = sbr.rel (%p156) target = $region28
      $region27: #{tpu_custom_call.1} parent=5 // pred_region
        // Predicated region
        $region29: #{tpu_custom_call.1} parent=27 // pred_check
          %p159 = pneg %p36
        $region30: #{tpu_custom_call.1} parent=27 // pred_check_branch
          %161 = sbr.rel (%p159) target = $region32
        $region31: #{tpu_custom_call.1} parent=27 // pred_region
          %s162 = sand.u32 %s26, 1
          %s163 = scalar_lea.sflag [#allocation5], %s162
          %s164 = sand.u32 %s26, 1
          %s165 = smul.addr %s164, 48
          %s166 = scalar_lea.vmem [#allocation4], %s165
          %s167 = smul.u32 12, %s16
          %s169 = ssub.s32 768, 768
          %170 = vsyncadd %s163, %s169
          %s171 = smul.addr %s167, 64
          %s172 = scalar_lea.hbm %s0, %s171
          %s174 = sshll.u32 %s166, 4
          %s175 = int_to_ptr.vmem [resolvable:$true] %s174
          %177 = dma.hbm_to_vmem [thread:$0]  %s172, 768, %s175, %s163
        $region32: #{tpu_custom_call.1} parent=27 // pred_fallthru
          _
      $region28: #{tpu_custom_call.1} parent=5 // pred_fallthru
        _
      %p178 = scmp.le.s32.totalorder 1, %s16
      %p179 = scmp.lt.s32.totalorder %s16, 3
      %p180 = pnand %p178, %p179
      %p181 = pneg %p180
      // Predicated region
      $region33: #{tpu_custom_call.1} parent=5 // pred_check
        _
      $region34: #{tpu_custom_call.1} parent=5 // pred_check_branch
        %183 = sbr.rel (%p180) target = $region36
      $region35: #{tpu_custom_call.1} parent=5 // pred_region
        %s184 = ssub.s32 %s16, 1
        %s185 = sand.u32 %s29, 1
        %s186 = scalar_lea.sflag [#allocation5], %s185
        %s187 = sand.u32 %s29, 1
        %s188 = smul.addr %s187, 48
        %s189 = scalar_lea.vmem [#allocation4], %s188
        // Predicated region
        $region37: #{tpu_custom_call.1} parent=35 // pred_check
          %p190 = pneg %p42
        $region38: #{tpu_custom_call.1} parent=35 // pred_check_branch
          %192 = sbr.rel (%p190) target = $region40
        $region39: #{tpu_custom_call.1} parent=35 // pred_region
          %193 = dma.done %s186, 768
        $region40: #{tpu_custom_call.1} parent=35 // pred_fallthru
          _
        %s194 = sand.u32 %s29, 1
        %s195 = scalar_lea.sflag [#allocation5], %s194
        %s196 = sand.u32 %s29, 1
        %s197 = smul.addr %s196, 48
        %s198 = scalar_lea.vmem [#allocation4], %s197
        %p199 = pneg %p42
        %p200 = pneg %p39
        %p201 = pneg %p63
        %p202 = pneg %p60
        %p203 = pneg %p84
        %p204 = pneg %p81
        %p205 = pneg %p105
        %p206 = pneg %p102
        %p207 = pneg %p131
        %p208 = pneg %p128
        %s209 = sand.u32 %s118, 1
        %s210 = scalar_lea.sflag [#allocation6], %s209
        %s211 = sand.u32 %s118, 1
        %s212 = smul.addr %s211, 12
        %s213 = scalar_lea.vmem [#allocation7], %s212
        %s214 = smul.u32 12, %s21
        %s215 = smul.u32 12, %s21
        %v217 = vld [vmem:[%s189] ss:$4 sm:$0xff]
        %s218 = scalar_lea.vmem %s189, 32 [#allocation4]
        %v219 = vld [vmem:[%s218] ss:$4 sm:$0xf]
        %s220 = scalar_lea.vmem %s189, 1 [#allocation4]
        %v221 = vld [vmem:[%s220] ss:$4 sm:$0xff]
        %s222 = scalar_lea.vmem %s189, 33 [#allocation4]
        %v223 = vld [vmem:[%s222] ss:$4 sm:$0xf]
        %s224 = scalar_lea.vmem %s189, 2 [#allocation4]
        %v225 = vld [vmem:[%s224] ss:$4 sm:$0xff]
        %s226 = scalar_lea.vmem %s189, 34 [#allocation4]
        %v227 = vld [vmem:[%s226] ss:$4 sm:$0xf]
        %s228 = scalar_lea.vmem %s189, 3 [#allocation4]
        %v229 = vld [vmem:[%s228] ss:$4 sm:$0xff]
        %s230 = scalar_lea.vmem %s189, 35 [#allocation4]
        %v231 = vld [vmem:[%s230] ss:$4 sm:$0xf]
        %v232 = vtanh.pop %v217
        %v233 = vtanh.pop %v219
        %v234 = vadd.f32 %v225, 0.5
        %v235 = vadd.f32 %v227, 0.5
        %v236 = vfloor.f32 %v234
        %v237 = vfloor.f32 %v235
        %v238 = vmax.f32 %v236, 1.0
        %v239 = vmax.f32 %v237, 1.0
        %v240 = vmin.f32 %v238, 19.0
        %v241 = vmin.f32 %v239, 19.0
        %v242 = vsub.f32 %v225, %v240
        %v243 = vsub.f32 %v227, %v241
        %v244 = vmul.f32 %v242, %v242
        %v245 = vmul.f32 %v243, %v243
        %v246 = vsub.f32 0.0, %v244
        %v247 = vsub.f32 0.0, %v245
        %v248 = vsub.f32 %v221, 1.0
        %v249 = vsub.f32 %v223, 1.0
        %v250 = vmul.f32 %v248, 0.2
        %v251 = vmul.f32 %v249, 0.2
        %v252 = vadd.f32 %v250, 0.5
        %v253 = vadd.f32 %v251, 0.5
        %v254 = vfloor.f32 %v252
        %v255 = vfloor.f32 %v253
        %v256 = vmax.f32 %v254, 0.0
        %v257 = vmax.f32 %v255, 0.0
        %v258 = vmin.f32 %v256, 3.0
        %v259 = vmin.f32 %v257, 3.0
        %v260 = vmul.f32 %v258, 5.0
        %v261 = vmul.f32 %v259, 5.0
        %v262 = vadd.f32 %v260, 1.0
        %v263 = vadd.f32 %v261, 1.0
        %v264 = vsub.f32 %v221, %v262
        %v265 = vsub.f32 %v223, %v263
        %v266 = vmul.f32 %v264, %v264
        %v267 = vmul.f32 %v265, %v265
        %v268 = vsub.f32 0.0, %v266
        %v269 = vsub.f32 0.0, %v267
        %v270 = vlaneseq
        %v271 = vshrl.u32 %v270, 7
        %v272 = vcvt.s32.f32 %v271
        %v273 = vmul.f32 %v272, 5.0
        %v274 = vadd.f32 %v273, 1.0
        %v277 = vlaneseq
        %v278 = vshrl.u32 %v277, 7
        %v279 = vsub.s32 0, %v278
        %v280 = vrot.slane %v221, %v279
        %v281 = vlaneseq
        %v282 = vshrl.u32 %v281, 7
        %v283 = vsub.s32 1, %v282
        %v284 = vrot.slane %v221, %v283
        %v285 = vlaneseq
        %v286 = vshrl.u32 %v285, 7
        %v287 = vsub.s32 2, %v286
        %v288 = vrot.slane %v221, %v287
        %v289 = vlaneseq
        %v290 = vshrl.u32 %v289, 7
        %v291 = vsub.s32 3, %v290
        %v292 = vrot.slane %v221, %v291
        %v293 = vlaneseq
        %v294 = vshrl.u32 %v293, 7
        %v295 = vsub.s32 4, %v294
        %v296 = vrot.slane %v221, %v295
        %v297 = vlaneseq
        %v298 = vshrl.u32 %v297, 7
        %v299 = vsub.s32 5, %v298
        %v300 = vrot.slane %v221, %v299
        %v301 = vlaneseq
        %v302 = vshrl.u32 %v301, 7
        %v303 = vsub.s32 6, %v302
        %v304 = vrot.slane %v221, %v303
        %v305 = vlaneseq
        %v306 = vshrl.u32 %v305, 7
        %v307 = vsub.s32 7, %v306
        %v308 = vrot.slane %v221, %v307
        %v309 = vlaneseq
        %v310 = vshrl.u32 %v309, 7
        %v311 = vsub.s32 0, %v310
        %v312 = vrot.slane %v223, %v311
        %v313 = vlaneseq
        %v314 = vshrl.u32 %v313, 7
        %v315 = vsub.s32 1, %v314
        %v316 = vrot.slane %v223, %v315
        %v317 = vlaneseq
        %v318 = vshrl.u32 %v317, 7
        %v319 = vsub.s32 2, %v318
        %v320 = vrot.slane %v223, %v319
        %v321 = vlaneseq
        %v322 = vshrl.u32 %v321, 7
        %v323 = vsub.s32 3, %v322
        %v324 = vrot.slane %v223, %v323
        %v337 = vsub.f32 %v280, %v274
        %v338 = vsub.f32 %v284, %v274
        %v339 = vsub.f32 %v288, %v274
        %v340 = vsub.f32 %v292, %v274
        %v341 = vsub.f32 %v296, %v274
        %v342 = vsub.f32 %v300, %v274
        %v343 = vsub.f32 %v304, %v274
        %v344 = vsub.f32 %v308, %v274
        %v345 = vsub.f32 %v312, %v274
        %v346 = vsub.f32 %v316, %v274
        %v347 = vsub.f32 %v320, %v274
        %v348 = vsub.f32 %v324, %v274
        %v349 = vmul.f32 %v337, %v337
        %v350 = vmul.f32 %v338, %v338
        %v351 = vmul.f32 %v339, %v339
        %v352 = vmul.f32 %v340, %v340
        %v353 = vmul.f32 %v341, %v341
        %v354 = vmul.f32 %v342, %v342
        %v355 = vmul.f32 %v343, %v343
        %v356 = vmul.f32 %v344, %v344
        %v357 = vmul.f32 %v345, %v345
        %v358 = vmul.f32 %v346, %v346
        %v359 = vmul.f32 %v347, %v347
        %v360 = vmul.f32 %v348, %v348
        %v361 = vsub.f32 0.0, %v349
        %v362 = vsub.f32 0.0, %v350
        %v363 = vsub.f32 0.0, %v351
        %v364 = vsub.f32 0.0, %v352
        %v365 = vsub.f32 0.0, %v353
        %v366 = vsub.f32 0.0, %v354
        %v367 = vsub.f32 0.0, %v355
        %v368 = vsub.f32 0.0, %v356
        %v369 = vsub.f32 0.0, %v357
        %v370 = vsub.f32 0.0, %v358
        %v371 = vsub.f32 0.0, %v359
        %v372 = vsub.f32 0.0, %v360
        %v375 = vlaneseq
        %v376 = vshrl.u32 %v375, 7
        %v377 = vsub.s32 0, %v376
        %v378 = vrot.slane %v268, %v377
        %v379 = vlaneseq
        %v380 = vshrl.u32 %v379, 7
        %v381 = vsub.s32 1, %v380
        %v382 = vrot.slane %v268, %v381
        %v383 = vlaneseq
        %v384 = vshrl.u32 %v383, 7
        %v385 = vsub.s32 2, %v384
        %v386 = vrot.slane %v268, %v385
        %v387 = vlaneseq
        %v388 = vshrl.u32 %v387, 7
        %v389 = vsub.s32 3, %v388
        %v390 = vrot.slane %v268, %v389
        %v391 = vlaneseq
        %v392 = vshrl.u32 %v391, 7
        %v393 = vsub.s32 4, %v392
        %v394 = vrot.slane %v268, %v393
        %v395 = vlaneseq
        %v396 = vshrl.u32 %v395, 7
        %v397 = vsub.s32 5, %v396
        %v398 = vrot.slane %v268, %v397
        %v399 = vlaneseq
        %v400 = vshrl.u32 %v399, 7
        %v401 = vsub.s32 6, %v400
        %v402 = vrot.slane %v268, %v401
        %v403 = vlaneseq
        %v404 = vshrl.u32 %v403, 7
        %v405 = vsub.s32 7, %v404
        %v406 = vrot.slane %v268, %v405
        %v407 = vlaneseq
        %v408 = vshrl.u32 %v407, 7
        %v409 = vsub.s32 0, %v408
        %v410 = vrot.slane %v269, %v409
        %v411 = vlaneseq
        %v412 = vshrl.u32 %v411, 7
        %v413 = vsub.s32 1, %v412
        %v414 = vrot.slane %v269, %v413
        %v415 = vlaneseq
        %v416 = vshrl.u32 %v415, 7
        %v417 = vsub.s32 2, %v416
        %v418 = vrot.slane %v269, %v417
        %v419 = vlaneseq
        %v420 = vshrl.u32 %v419, 7
        %v421 = vsub.s32 3, %v420
        %v422 = vrot.slane %v269, %v421
        %v435 = vsub.f32 %v361, %v378
        %v436 = vsub.f32 %v362, %v382
        %v437 = vsub.f32 %v363, %v386
        %v438 = vsub.f32 %v364, %v390
        %v439 = vsub.f32 %v365, %v394
        %v440 = vsub.f32 %v366, %v398
        %v441 = vsub.f32 %v367, %v402
        %v442 = vsub.f32 %v368, %v406
        %v443 = vsub.f32 %v369, %v410
        %v444 = vsub.f32 %v370, %v414
        %v445 = vsub.f32 %v371, %v418
        %v446 = vsub.f32 %v372, %v422
        %v447 = vmul.f32 %v435, 1.442695
        %v448 = vpow.pop %v447
        %v449 = vmul.f32 %v436, 1.442695
        %v450 = vpow.pop %v449
        %v451 = vmul.f32 %v437, 1.442695
        %v452 = vpow.pop %v451
        %v453 = vmul.f32 %v438, 1.442695
        %v454 = vpow.pop %v453
        %v455 = vmul.f32 %v439, 1.442695
        %v456 = vpow.pop %v455
        %v457 = vmul.f32 %v440, 1.442695
        %v458 = vpow.pop %v457
        %v459 = vmul.f32 %v441, 1.442695
        %v460 = vpow.pop %v459
        %v461 = vmul.f32 %v442, 1.442695
        %v462 = vpow.pop %v461
        %v463 = vmul.f32 %v443, 1.442695
        %v464 = vpow.pop %v463
        %v465 = vmul.f32 %v444, 1.442695
        %v466 = vpow.pop %v465
        %v467 = vmul.f32 %v445, 1.442695
        %v468 = vpow.pop %v467
        %v469 = vmul.f32 %v446, 1.442695
        %v470 = vpow.pop %v469
        %vm471 = vcmask 1043456
        %v472 = vsel %vm471, %v448, 0.0
        %v473 = vrot.slane %v472, 4
        %v474 = vadd.f32 %v472, %v473
        %v475 = vrot.slane %v474, 2
        %v476 = vadd.f32 %v474, %v475
        %v477 = vrot.slane %v476, 1
        %v478 = vadd.f32 %v476, %v477
        %v479 = vsel %vm471, %v450, 0.0
        %v480 = vrot.slane %v479, 4
        %v481 = vadd.f32 %v479, %v480
        %v482 = vrot.slane %v481, 2
        %v483 = vadd.f32 %v481, %v482
        %v484 = vrot.slane %v483, 1
        %v485 = vadd.f32 %v483, %v484
        %v486 = vsel %vm471, %v452, 0.0
        %v487 = vrot.slane %v486, 4
        %v488 = vadd.f32 %v486, %v487
        %v489 = vrot.slane %v488, 2
        %v490 = vadd.f32 %v488, %v489
        %v491 = vrot.slane %v490, 1
        %v492 = vadd.f32 %v490, %v491
        %v493 = vsel %vm471, %v454, 0.0
        %v494 = vrot.slane %v493, 4
        %v495 = vadd.f32 %v493, %v494
        %v496 = vrot.slane %v495, 2
        %v497 = vadd.f32 %v495, %v496
        %v498 = vrot.slane %v497, 1
        %v499 = vadd.f32 %v497, %v498
        %v500 = vsel %vm471, %v456, 0.0
        %v501 = vrot.slane %v500, 4
        %v502 = vadd.f32 %v500, %v501
        %v503 = vrot.slane %v502, 2
        %v504 = vadd.f32 %v502, %v503
        %v505 = vrot.slane %v504, 1
        %v506 = vadd.f32 %v504, %v505
        %v507 = vsel %vm471, %v458, 0.0
        %v508 = vrot.slane %v507, 4
        %v509 = vadd.f32 %v507, %v508
        %v510 = vrot.slane %v509, 2
        %v511 = vadd.f32 %v509, %v510
        %v512 = vrot.slane %v511, 1
        %v513 = vadd.f32 %v511, %v512
        %v514 = vsel %vm471, %v460, 0.0
        %v515 = vrot.slane %v514, 4
        %v516 = vadd.f32 %v514, %v515
        %v517 = vrot.slane %v516, 2
        %v518 = vadd.f32 %v516, %v517
        %v519 = vrot.slane %v518, 1
        %v520 = vadd.f32 %v518, %v519
        %v521 = vsel %vm471, %v462, 0.0
        %v522 = vrot.slane %v521, 4
        %v523 = vadd.f32 %v521, %v522
        %v524 = vrot.slane %v523, 2
        %v525 = vadd.f32 %v523, %v524
        %v526 = vrot.slane %v525, 1
        %v527 = vadd.f32 %v525, %v526
        %v528 = vsel %vm471, %v464, 0.0
        %v529 = vrot.slane %v528, 4
        %v530 = vadd.f32 %v528, %v529
        %v531 = vrot.slane %v530, 2
        %v532 = vadd.f32 %v530, %v531
        %v533 = vrot.slane %v532, 1
        %v534 = vadd.f32 %v532, %v533
        %v535 = vsel %vm471, %v466, 0.0
        %v536 = vrot.slane %v535, 4
        %v537 = vadd.f32 %v535, %v536
        %v538 = vrot.slane %v537, 2
        %v539 = vadd.f32 %v537, %v538
        %v540 = vrot.slane %v539, 1
        %v541 = vadd.f32 %v539, %v540
        %v542 = vsel %vm471, %v468, 0.0
        %v543 = vrot.slane %v542, 4
        %v544 = vadd.f32 %v542, %v543
        %v545 = vrot.slane %v544, 2
        %v546 = vadd.f32 %v544, %v545
        %v547 = vrot.slane %v546, 1
        %v548 = vadd.f32 %v546, %v547
        %v549 = vsel %vm471, %v470, 0.0
        %v550 = vrot.slane %v549, 4
        %v551 = vadd.f32 %v549, %v550
        %v552 = vrot.slane %v551, 2
        %v553 = vadd.f32 %v551, %v552
        %v554 = vrot.slane %v553, 1
        %v555 = vadd.f32 %v553, %v554
        %v556 = vrcp.pop %v478
        %v557 = vrcp.pop %v485
        %v558 = vrcp.pop %v492
        %v559 = vrcp.pop %v499
        %v560 = vrcp.pop %v506
        %v561 = vrcp.pop %v513
        %v562 = vrcp.pop %v520
        %v563 = vrcp.pop %v527
        %v564 = vrcp.pop %v534
        %v565 = vrcp.pop %v541
        %v566 = vrcp.pop %v548
        %v567 = vrcp.pop %v555
        %v568 = vmul.f32 %v448, %v556
        %v569 = vmul.f32 %v450, %v557
        %v570 = vmul.f32 %v452, %v558
        %v571 = vmul.f32 %v454, %v559
        %v572 = vmul.f32 %v456, %v560
        %v573 = vmul.f32 %v458, %v561
        %v574 = vmul.f32 %v460, %v562
        %v575 = vmul.f32 %v462, %v563
        %v576 = vmul.f32 %v464, %v564
        %v577 = vmul.f32 %v466, %v565
        %v578 = vmul.f32 %v468, %v566
        %v579 = vmul.f32 %v470, %v567
        %v580 = vadd.s32 %v271, 8
        %v581 = vadd.s32 %v271, 16
        %v582 = vcvt.s32.f32 %v580
        %v583 = vcvt.s32.f32 %v581
        %v584 = vadd.f32 %v272, 1.0
        %v585 = vadd.f32 %v582, 1.0
        %v586 = vadd.f32 %v583, 1.0
        %v589 = vlaneseq
        %v590 = vshrl.u32 %v589, 7
        %v591 = vsub.s32 0, %v590
        %v592 = vrot.slane %v225, %v591
        %v593 = vlaneseq
        %v594 = vshrl.u32 %v593, 7
        %v595 = vsub.s32 1, %v594
        %v596 = vrot.slane %v225, %v595
        %v597 = vlaneseq
        %v598 = vshrl.u32 %v597, 7
        %v599 = vsub.s32 2, %v598
        %v600 = vrot.slane %v225, %v599
        %v601 = vlaneseq
        %v602 = vshrl.u32 %v601, 7
        %v603 = vsub.s32 3, %v602
        %v604 = vrot.slane %v225, %v603
        %v605 = vlaneseq
        %v606 = vshrl.u32 %v605, 7
        %v607 = vsub.s32 4, %v606
        %v608 = vrot.slane %v225, %v607
        %v609 = vlaneseq
        %v610 = vshrl.u32 %v609, 7
        %v611 = vsub.s32 5, %v610
        %v612 = vrot.slane %v225, %v611
        %v613 = vlaneseq
        %v614 = vshrl.u32 %v613, 7
        %v615 = vsub.s32 6, %v614
        %v616 = vrot.slane %v225, %v615
        %v617 = vlaneseq
        %v618 = vshrl.u32 %v617, 7
        %v619 = vsub.s32 7, %v618
        %v620 = vrot.slane %v225, %v619
        %v621 = vlaneseq
        %v622 = vshrl.u32 %v621, 7
        %v623 = vsub.s32 0, %v622
        %v624 = vrot.slane %v227, %v623
        %v625 = vlaneseq
        %v626 = vshrl.u32 %v625, 7
        %v627 = vsub.s32 1, %v626
        %v628 = vrot.slane %v227, %v627
        %v629 = vlaneseq
        %v630 = vshrl.u32 %v629, 7
        %v631 = vsub.s32 2, %v630
        %v632 = vrot.slane %v227, %v631
        %v633 = vlaneseq
        %v634 = vshrl.u32 %v633, 7
        %v635 = vsub.s32 3, %v634
        %v636 = vrot.slane %v227, %v635
        %v649 = vsub.f32 %v592, %v584
        %v650 = vsub.f32 %v596, %v584
        %v651 = vsub.f32 %v600, %v584
        %v652 = vsub.f32 %v604, %v584
        %v653 = vsub.f32 %v608, %v584
        %v654 = vsub.f32 %v612, %v584
        %v655 = vsub.f32 %v616, %v584
        %v656 = vsub.f32 %v620, %v584
        %v657 = vsub.f32 %v624, %v584
        %v658 = vsub.f32 %v628, %v584
        %v659 = vsub.f32 %v632, %v584
        %v660 = vsub.f32 %v636, %v584
        %v661 = vsub.f32 %v592, %v585
        %v662 = vsub.f32 %v596, %v585
        %v663 = vsub.f32 %v600, %v585
        %v664 = vsub.f32 %v604, %v585
        %v665 = vsub.f32 %v608, %v585
        %v666 = vsub.f32 %v612, %v585
        %v667 = vsub.f32 %v616, %v585
        %v668 = vsub.f32 %v620, %v585
        %v669 = vsub.f32 %v624, %v585
        %v670 = vsub.f32 %v628, %v585
        %v671 = vsub.f32 %v632, %v585
        %v672 = vsub.f32 %v636, %v585
        %v673 = vsub.f32 %v592, %v586
        %v674 = vsub.f32 %v596, %v586
        %v675 = vsub.f32 %v600, %v586
        %v676 = vsub.f32 %v604, %v586
        %v677 = vsub.f32 %v608, %v586
        %v678 = vsub.f32 %v612, %v586
        %v679 = vsub.f32 %v616, %v586
        %v680 = vsub.f32 %v620, %v586
        %v681 = vsub.f32 %v624, %v586
        %v682 = vsub.f32 %v628, %v586
        %v683 = vsub.f32 %v632, %v586
        %v684 = vsub.f32 %v636, %v586
        %v685 = vmul.f32 %v649, %v649
        %v686 = vmul.f32 %v650, %v650
        %v687 = vmul.f32 %v651, %v651
        %v688 = vmul.f32 %v652, %v652
        %v689 = vmul.f32 %v653, %v653
        %v690 = vmul.f32 %v654, %v654
        %v691 = vmul.f32 %v655, %v655
        %v692 = vmul.f32 %v656, %v656
        %v693 = vmul.f32 %v657, %v657
        %v694 = vmul.f32 %v658, %v658
        %v695 = vmul.f32 %v659, %v659
        %v696 = vmul.f32 %v660, %v660
        %v697 = vmul.f32 %v661, %v661
        %v698 = vmul.f32 %v662, %v662
        %v699 = vmul.f32 %v663, %v663
        %v700 = vmul.f32 %v664, %v664
        %v701 = vmul.f32 %v665, %v665
        %v702 = vmul.f32 %v666, %v666
        %v703 = vmul.f32 %v667, %v667
        %v704 = vmul.f32 %v668, %v668
        %v705 = vmul.f32 %v669, %v669
        %v706 = vmul.f32 %v670, %v670
        %v707 = vmul.f32 %v671, %v671
        %v708 = vmul.f32 %v672, %v672
        %v709 = vmul.f32 %v673, %v673
        %v710 = vmul.f32 %v674, %v674
        %v711 = vmul.f32 %v675, %v675
        %v712 = vmul.f32 %v676, %v676
        %v713 = vmul.f32 %v677, %v677
        %v714 = vmul.f32 %v678, %v678
        %v715 = vmul.f32 %v679, %v679
        %v716 = vmul.f32 %v680, %v680
        %v717 = vmul.f32 %v681, %v681
        %v718 = vmul.f32 %v682, %v682
        %v719 = vmul.f32 %v683, %v683
        %v720 = vmul.f32 %v684, %v684
        %v721 = vsub.f32 0.0, %v685
        %v722 = vsub.f32 0.0, %v686
        %v723 = vsub.f32 0.0, %v687
        %v724 = vsub.f32 0.0, %v688
        %v725 = vsub.f32 0.0, %v689
        %v726 = vsub.f32 0.0, %v690
        %v727 = vsub.f32 0.0, %v691
        %v728 = vsub.f32 0.0, %v692
        %v729 = vsub.f32 0.0, %v693
        %v730 = vsub.f32 0.0, %v694
        %v731 = vsub.f32 0.0, %v695
        %v732 = vsub.f32 0.0, %v696
        %v733 = vsub.f32 0.0, %v697
        %v734 = vsub.f32 0.0, %v698
        %v735 = vsub.f32 0.0, %v699
        %v736 = vsub.f32 0.0, %v700
        %v737 = vsub.f32 0.0, %v701
        %v738 = vsub.f32 0.0, %v702
        %v739 = vsub.f32 0.0, %v703
        %v740 = vsub.f32 0.0, %v704
        %v741 = vsub.f32 0.0, %v705
        %v742 = vsub.f32 0.0, %v706
        %v743 = vsub.f32 0.0, %v707
        %v744 = vsub.f32 0.0, %v708
        %v745 = vsub.f32 0.0, %v709
        %v746 = vsub.f32 0.0, %v710
        %v747 = vsub.f32 0.0, %v711
        %v748 = vsub.f32 0.0, %v712
        %v749 = vsub.f32 0.0, %v713
        %v750 = vsub.f32 0.0, %v714
        %v751 = vsub.f32 0.0, %v715
        %v752 = vsub.f32 0.0, %v716
        %v753 = vsub.f32 0.0, %v717
        %v754 = vsub.f32 0.0, %v718
        %v755 = vsub.f32 0.0, %v719
        %v756 = vsub.f32 0.0, %v720
        %v759 = vlaneseq
        %v760 = vshrl.u32 %v759, 7
        %v761 = vsub.s32 0, %v760
        %v762 = vrot.slane %v246, %v761
        %v763 = vlaneseq
        %v764 = vshrl.u32 %v763, 7
        %v765 = vsub.s32 1, %v764
        %v766 = vrot.slane %v246, %v765
        %v767 = vlaneseq
        %v768 = vshrl.u32 %v767, 7
        %v769 = vsub.s32 2, %v768
        %v770 = vrot.slane %v246, %v769
        %v771 = vlaneseq
        %v772 = vshrl.u32 %v771, 7
        %v773 = vsub.s32 3, %v772
        %v774 = vrot.slane %v246, %v773
        %v775 = vlaneseq
        %v776 = vshrl.u32 %v775, 7
        %v777 = vsub.s32 4, %v776
        %v778 = vrot.slane %v246, %v777
        %v779 = vlaneseq
        %v780 = vshrl.u32 %v779, 7
        %v781 = vsub.s32 5, %v780
        %v782 = vrot.slane %v246, %v781
        %v783 = vlaneseq
        %v784 = vshrl.u32 %v783, 7
        %v785 = vsub.s32 6, %v784
        %v786 = vrot.slane %v246, %v785
        %v787 = vlaneseq
        %v788 = vshrl.u32 %v787, 7
        %v789 = vsub.s32 7, %v788
        %v790 = vrot.slane %v246, %v789
        %v791 = vlaneseq
        %v792 = vshrl.u32 %v791, 7
        %v793 = vsub.s32 0, %v792
        %v794 = vrot.slane %v247, %v793
        %v795 = vlaneseq
        %v796 = vshrl.u32 %v795, 7
        %v797 = vsub.s32 1, %v796
        %v798 = vrot.slane %v247, %v797
        %v799 = vlaneseq
        %v800 = vshrl.u32 %v799, 7
        %v801 = vsub.s32 2, %v800
        %v802 = vrot.slane %v247, %v801
        %v803 = vlaneseq
        %v804 = vshrl.u32 %v803, 7
        %v805 = vsub.s32 3, %v804
        %v806 = vrot.slane %v247, %v805
        %v819 = vsub.f32 %v721, %v762
        %v820 = vsub.f32 %v722, %v766
        %v821 = vsub.f32 %v723, %v770
        %v822 = vsub.f32 %v724, %v774
        %v823 = vsub.f32 %v725, %v778
        %v824 = vsub.f32 %v726, %v782
        %v825 = vsub.f32 %v727, %v786
        %v826 = vsub.f32 %v728, %v790
        %v827 = vsub.f32 %v729, %v794
        %v828 = vsub.f32 %v730, %v798
        %v829 = vsub.f32 %v731, %v802
        %v830 = vsub.f32 %v732, %v806
        %v831 = vsub.f32 %v733, %v762
        %v832 = vsub.f32 %v734, %v766
        %v833 = vsub.f32 %v735, %v770
        %v834 = vsub.f32 %v736, %v774
        %v835 = vsub.f32 %v737, %v778
        %v836 = vsub.f32 %v738, %v782
        %v837 = vsub.f32 %v739, %v786
        %v838 = vsub.f32 %v740, %v790
        %v839 = vsub.f32 %v741, %v794
        %v840 = vsub.f32 %v742, %v798
        %v841 = vsub.f32 %v743, %v802
        %v842 = vsub.f32 %v744, %v806
        %v843 = vsub.f32 %v745, %v762
        %v844 = vsub.f32 %v746, %v766
        %v845 = vsub.f32 %v747, %v770
        %v846 = vsub.f32 %v748, %v774
        %v847 = vsub.f32 %v749, %v778
        %v848 = vsub.f32 %v750, %v782
        %v849 = vsub.f32 %v751, %v786
        %v850 = vsub.f32 %v752, %v790
        %v851 = vsub.f32 %v753, %v794
        %v852 = vsub.f32 %v754, %v798
        %v853 = vsub.f32 %v755, %v802
        %v854 = vsub.f32 %v756, %v806
        %v855 = vmul.f32 %v819, 1.442695
        %v856 = vpow.pop %v855
        %v857 = vmul.f32 %v820, 1.442695
        %v858 = vpow.pop %v857
        %v859 = vmul.f32 %v821, 1.442695
        %v860 = vpow.pop %v859
        %v861 = vmul.f32 %v822, 1.442695
        %v862 = vpow.pop %v861
        %v863 = vmul.f32 %v823, 1.442695
        %v864 = vpow.pop %v863
        %v865 = vmul.f32 %v824, 1.442695
        %v866 = vpow.pop %v865
        %v867 = vmul.f32 %v825, 1.442695
        %v868 = vpow.pop %v867
        %v869 = vmul.f32 %v826, 1.442695
        %v870 = vpow.pop %v869
        %v871 = vmul.f32 %v827, 1.442695
        %v872 = vpow.pop %v871
        %v873 = vmul.f32 %v828, 1.442695
        %v874 = vpow.pop %v873
        %v875 = vmul.f32 %v829, 1.442695
        %v876 = vpow.pop %v875
        %v877 = vmul.f32 %v830, 1.442695
        %v878 = vpow.pop %v877
        %v879 = vmul.f32 %v831, 1.442695
        %v880 = vpow.pop %v879
        %v881 = vmul.f32 %v832, 1.442695
        %v882 = vpow.pop %v881
        %v883 = vmul.f32 %v833, 1.442695
        %v884 = vpow.pop %v883
        %v885 = vmul.f32 %v834, 1.442695
        %v886 = vpow.pop %v885
        %v887 = vmul.f32 %v835, 1.442695
        %v888 = vpow.pop %v887
        %v889 = vmul.f32 %v836, 1.442695
        %v890 = vpow.pop %v889
        %v891 = vmul.f32 %v837, 1.442695
        %v892 = vpow.pop %v891
        %v893 = vmul.f32 %v838, 1.442695
        %v894 = vpow.pop %v893
        %v895 = vmul.f32 %v839, 1.442695
        %v896 = vpow.pop %v895
        %v897 = vmul.f32 %v840, 1.442695
        %v898 = vpow.pop %v897
        %v899 = vmul.f32 %v841, 1.442695
        %v900 = vpow.pop %v899
        %v901 = vmul.f32 %v842, 1.442695
        %v902 = vpow.pop %v901
        %v903 = vmul.f32 %v843, 1.442695
        %v904 = vpow.pop %v903
        %v905 = vmul.f32 %v844, 1.442695
        %v906 = vpow.pop %v905
        %v907 = vmul.f32 %v845, 1.442695
        %v908 = vpow.pop %v907
        %v909 = vmul.f32 %v846, 1.442695
        %v910 = vpow.pop %v909
        %v911 = vmul.f32 %v847, 1.442695
        %v912 = vpow.pop %v911
        %v913 = vmul.f32 %v848, 1.442695
        %v914 = vpow.pop %v913
        %v915 = vmul.f32 %v849, 1.442695
        %v916 = vpow.pop %v915
        %v917 = vmul.f32 %v850, 1.442695
        %v918 = vpow.pop %v917
        %v919 = vmul.f32 %v851, 1.442695
        %v920 = vpow.pop %v919
        %v921 = vmul.f32 %v852, 1.442695
        %v922 = vpow.pop %v921
        %v923 = vmul.f32 %v853, 1.442695
        %v924 = vpow.pop %v923
        %v925 = vmul.f32 %v854, 1.442695
        %v926 = vpow.pop %v925
        %v927 = vadd.f32 %v856, %v880
        %vm928 = vcmask 1042432
        %v929 = vsel %vm928, %v904, 0.0
        %v930 = vadd.f32 %v927, %v929
        %v931 = vrot.slane %v930, 4
        %v932 = vadd.f32 %v930, %v931
        %v933 = vrot.slane %v932, 2
        %v934 = vadd.f32 %v932, %v933
        %v935 = vrot.slane %v934, 1
        %v936 = vadd.f32 %v934, %v935
        %v937 = vadd.f32 %v858, %v882
        %v938 = vsel %vm928, %v906, 0.0
        %v939 = vadd.f32 %v937, %v938
        %v940 = vrot.slane %v939, 4
        %v941 = vadd.f32 %v939, %v940
        %v942 = vrot.slane %v941, 2
        %v943 = vadd.f32 %v941, %v942
        %v944 = vrot.slane %v943, 1
        %v945 = vadd.f32 %v943, %v944
        %v946 = vadd.f32 %v860, %v884
        %v947 = vsel %vm928, %v908, 0.0
        %v948 = vadd.f32 %v946, %v947
        %v949 = vrot.slane %v948, 4
        %v950 = vadd.f32 %v948, %v949
        %v951 = vrot.slane %v950, 2
        %v952 = vadd.f32 %v950, %v951
        %v953 = vrot.slane %v952, 1
        %v954 = vadd.f32 %v952, %v953
        %v955 = vadd.f32 %v862, %v886
        %v956 = vsel %vm928, %v910, 0.0
        %v957 = vadd.f32 %v955, %v956
        %v958 = vrot.slane %v957, 4
        %v959 = vadd.f32 %v957, %v958
        %v960 = vrot.slane %v959, 2
        %v961 = vadd.f32 %v959, %v960
        %v962 = vrot.slane %v961, 1
        %v963 = vadd.f32 %v961, %v962
        %v964 = vadd.f32 %v864, %v888
        %v965 = vsel %vm928, %v912, 0.0
        %v966 = vadd.f32 %v964, %v965
        %v967 = vrot.slane %v966, 4
        %v968 = vadd.f32 %v966, %v967
        %v969 = vrot.slane %v968, 2
        %v970 = vadd.f32 %v968, %v969
        %v971 = vrot.slane %v970, 1
        %v972 = vadd.f32 %v970, %v971
        %v973 = vadd.f32 %v866, %v890
        %v974 = vsel %vm928, %v914, 0.0
        %v975 = vadd.f32 %v973, %v974
        %v976 = vrot.slane %v975, 4
        %v977 = vadd.f32 %v975, %v976
        %v978 = vrot.slane %v977, 2
        %v979 = vadd.f32 %v977, %v978
        %v980 = vrot.slane %v979, 1
        %v981 = vadd.f32 %v979, %v980
        %v982 = vadd.f32 %v868, %v892
        %v983 = vsel %vm928, %v916, 0.0
        %v984 = vadd.f32 %v982, %v983
        %v985 = vrot.slane %v984, 4
        %v986 = vadd.f32 %v984, %v985
        %v987 = vrot.slane %v986, 2
        %v988 = vadd.f32 %v986, %v987
        %v989 = vrot.slane %v988, 1
        %v990 = vadd.f32 %v988, %v989
        %v991 = vadd.f32 %v870, %v894
        %v992 = vsel %vm928, %v918, 0.0
        %v993 = vadd.f32 %v991, %v992
        %v994 = vrot.slane %v993, 4
        %v995 = vadd.f32 %v993, %v994
        %v996 = vrot.slane %v995, 2
        %v997 = vadd.f32 %v995, %v996
        %v998 = vrot.slane %v997, 1
        %v999 = vadd.f32 %v997, %v998
        %v1000 = vadd.f32 %v872, %v896
        %v1001 = vsel %vm928, %v920, 0.0
        %v1002 = vadd.f32 %v1000, %v1001
        %v1003 = vrot.slane %v1002, 4
        %v1004 = vadd.f32 %v1002, %v1003
        %v1005 = vrot.slane %v1004, 2
        %v1006 = vadd.f32 %v1004, %v1005
        %v1007 = vrot.slane %v1006, 1
        %v1008 = vadd.f32 %v1006, %v1007
        %v1009 = vadd.f32 %v874, %v898
        %v1010 = vsel %vm928, %v922, 0.0
        %v1011 = vadd.f32 %v1009, %v1010
        %v1012 = vrot.slane %v1011, 4
        %v1013 = vadd.f32 %v1011, %v1012
        %v1014 = vrot.slane %v1013, 2
        %v1015 = vadd.f32 %v1013, %v1014
        %v1016 = vrot.slane %v1015, 1
        %v1017 = vadd.f32 %v1015, %v1016
        %v1018 = vadd.f32 %v876, %v900
        %v1019 = vsel %vm928, %v924, 0.0
        %v1020 = vadd.f32 %v1018, %v1019
        %v1021 = vrot.slane %v1020, 4
        %v1022 = vadd.f32 %v1020, %v1021
        %v1023 = vrot.slane %v1022, 2
        %v1024 = vadd.f32 %v1022, %v1023
        %v1025 = vrot.slane %v1024, 1
        %v1026 = vadd.f32 %v1024, %v1025
        %v1027 = vadd.f32 %v878, %v902
        %v1028 = vsel %vm928, %v926, 0.0
        %v1029 = vadd.f32 %v1027, %v1028
        %v1030 = vrot.slane %v1029, 4
        %v1031 = vadd.f32 %v1029, %v1030
        %v1032 = vrot.slane %v1031, 2
        %v1033 = vadd.f32 %v1031, %v1032
        %v1034 = vrot.slane %v1033, 1
        %v1035 = vadd.f32 %v1033, %v1034
        %v1036 = vrcp.pop %v936
        %v1037 = vrcp.pop %v945
        %v1038 = vrcp.pop %v954
        %v1039 = vrcp.pop %v963
        %v1040 = vrcp.pop %v972
        %v1041 = vrcp.pop %v981
        %v1042 = vrcp.pop %v990
        %v1043 = vrcp.pop %v999
        %v1044 = vrcp.pop %v1008
        %v1045 = vrcp.pop %v1017
        %v1046 = vrcp.pop %v1026
        %v1047 = vrcp.pop %v1035
        %v1048 = vmul.f32 %v856, %v1036
        %v1049 = vmul.f32 %v858, %v1037
        %v1050 = vmul.f32 %v860, %v1038
        %v1051 = vmul.f32 %v862, %v1039
        %v1052 = vmul.f32 %v864, %v1040
        %v1053 = vmul.f32 %v866, %v1041
        %v1054 = vmul.f32 %v868, %v1042
        %v1055 = vmul.f32 %v870, %v1043
        %v1056 = vmul.f32 %v872, %v1044
        %v1057 = vmul.f32 %v874, %v1045
        %v1058 = vmul.f32 %v876, %v1046
        %v1059 = vmul.f32 %v878, %v1047
        %v1060 = vmul.f32 %v880, %v1036
        %v1061 = vmul.f32 %v882, %v1037
        %v1062 = vmul.f32 %v884, %v1038
        %v1063 = vmul.f32 %v886, %v1039
        %v1064 = vmul.f32 %v888, %v1040
        %v1065 = vmul.f32 %v890, %v1041
        %v1066 = vmul.f32 %v892, %v1042
        %v1067 = vmul.f32 %v894, %v1043
        %v1068 = vmul.f32 %v896, %v1044
        %v1069 = vmul.f32 %v898, %v1045
        %v1070 = vmul.f32 %v900, %v1046
        %v1071 = vmul.f32 %v902, %v1047
        %v1072 = vmul.f32 %v904, %v1036
        %v1073 = vmul.f32 %v906, %v1037
        %v1074 = vmul.f32 %v908, %v1038
        %v1075 = vmul.f32 %v910, %v1039
        %v1076 = vmul.f32 %v912, %v1040
        %v1077 = vmul.f32 %v914, %v1041
        %v1078 = vmul.f32 %v916, %v1042
        %v1079 = vmul.f32 %v918, %v1043
        %v1080 = vmul.f32 %v920, %v1044
        %v1081 = vmul.f32 %v922, %v1045
        %v1082 = vmul.f32 %v924, %v1046
        %v1083 = vmul.f32 %v926, %v1047
        %1084 = vst [vmem:[#allocation2] ss:$8 sm:$0xf] %v232
        %1085 = vst [vmem:[#allocation2] ss:$8 sm:$0xf0] %v232
        %v1086 = vlaneseq
        %vm1087 = vcmp.ge.s32.totalorder %v1086, 0
        %vm1088 = vcmp.lt.s32.totalorder %v1086, 512
        %vm1089 = vmand %vm1087, %vm1088
        %s1090 = scalar_lea.vmem [#allocation2], 64
        %1091 = vst.msk [vmem:[%s1090] ss:$8 sm:$0xf] %vm1089, %v233
        %1092 = vst.msk [vmem:[%s1090] ss:$8 sm:$0x0] %vm1089, %v233
        %v1105 = vrot.slane %v568, 7
        %v1106 = vrot.slane %v569, 7
        %v1107 = vrot.slane %v570, 7
        %v1108 = vrot.slane %v571, 7
        %v1109 = vrot.slane %v572, 7
        %v1110 = vrot.slane %v573, 7
        %v1111 = vrot.slane %v574, 7
        %v1112 = vrot.slane %v575, 7
        %v1113 = vrot.slane %v576, 7
        %v1114 = vrot.slane %v577, 7
        %v1115 = vrot.slane %v578, 7
        %v1116 = vrot.slane %v579, 7
        %1129 = vst [vmem:[#allocation2] sm:$0x1e] %v1105
        %1130 = vst [vmem:[#allocation2 + $0x8] sm:$0x1e] %v1106
        %1131 = vst [vmem:[#allocation2 + $0x10] sm:$0x1e] %v1107
        %1132 = vst [vmem:[#allocation2 + $0x18] sm:$0x1e] %v1108
        %1133 = vst [vmem:[#allocation2 + $0x20] sm:$0x1e] %v1109
        %1134 = vst [vmem:[#allocation2 + $0x28] sm:$0x1e] %v1110
        %1135 = vst [vmem:[#allocation2 + $0x30] sm:$0x1e] %v1111
        %1136 = vst [vmem:[#allocation2 + $0x38] sm:$0x1e] %v1112
        %1137 = vst [vmem:[#allocation2 + $0x40] sm:$0x1e] %v1113
        %1138 = vst [vmem:[#allocation2 + $0x48] sm:$0x1e] %v1114
        %1139 = vst [vmem:[#allocation2 + $0x50] sm:$0x1e] %v1115
        %1140 = vst [vmem:[#allocation2 + $0x58] sm:$0x1e] %v1116
        %vm1177 = vcmask 1044480
        %v1178 = vrot.slane %v1048, 3
        %v1179 = vrot.slane %v1049, 3
        %v1180 = vrot.slane %v1050, 3
        %v1181 = vrot.slane %v1051, 3
        %v1182 = vrot.slane %v1052, 3
        %v1183 = vrot.slane %v1053, 3
        %v1184 = vrot.slane %v1054, 3
        %v1185 = vrot.slane %v1055, 3
        %v1186 = vrot.slane %v1056, 3
        %v1187 = vrot.slane %v1057, 3
        %v1188 = vrot.slane %v1058, 3
        %v1189 = vrot.slane %v1059, 3
        %v1190 = vrot.slane %v1060, 3
        %v1191 = vsel %vm1177, %v1178, %v1190
        %v1192 = vrot.slane %v1061, 3
        %v1193 = vsel %vm1177, %v1179, %v1192
        %v1194 = vrot.slane %v1062, 3
        %v1195 = vsel %vm1177, %v1180, %v1194
        %v1196 = vrot.slane %v1063, 3
        %v1197 = vsel %vm1177, %v1181, %v1196
        %v1198 = vrot.slane %v1064, 3
        %v1199 = vsel %vm1177, %v1182, %v1198
        %v1200 = vrot.slane %v1065, 3
        %v1201 = vsel %vm1177, %v1183, %v1200
        %v1202 = vrot.slane %v1066, 3
        %v1203 = vsel %vm1177, %v1184, %v1202
        %v1204 = vrot.slane %v1067, 3
        %v1205 = vsel %vm1177, %v1185, %v1204
        %v1206 = vrot.slane %v1068, 3
        %v1207 = vsel %vm1177, %v1186, %v1206
        %v1208 = vrot.slane %v1069, 3
        %v1209 = vsel %vm1177, %v1187, %v1208
        %v1210 = vrot.slane %v1070, 3
        %v1211 = vsel %vm1177, %v1188, %v1210
        %v1212 = vrot.slane %v1071, 3
        %v1213 = vsel %vm1177, %v1189, %v1212
        %v1214 = vrot.slane %v1072, 3
        %v1215 = vsel %vm1177, %v1190, %v1214
        %v1216 = vrot.slane %v1073, 3
        %v1217 = vsel %vm1177, %v1192, %v1216
        %v1218 = vrot.slane %v1074, 3
        %v1219 = vsel %vm1177, %v1194, %v1218
        %v1220 = vrot.slane %v1075, 3
        %v1221 = vsel %vm1177, %v1196, %v1220
        %v1222 = vrot.slane %v1076, 3
        %v1223 = vsel %vm1177, %v1198, %v1222
        %v1224 = vrot.slane %v1077, 3
        %v1225 = vsel %vm1177, %v1200, %v1224
        %v1226 = vrot.slane %v1078, 3
        %v1227 = vsel %vm1177, %v1202, %v1226
        %v1228 = vrot.slane %v1079, 3
        %v1229 = vsel %vm1177, %v1204, %v1228
        %v1230 = vrot.slane %v1080, 3
        %v1231 = vsel %vm1177, %v1206, %v1230
        %v1232 = vrot.slane %v1081, 3
        %v1233 = vsel %vm1177, %v1208, %v1232
        %v1234 = vrot.slane %v1082, 3
        %v1235 = vsel %vm1177, %v1210, %v1234
        %v1236 = vrot.slane %v1083, 3
        %v1237 = vsel %vm1177, %v1212, %v1236
        %1274 = vst [vmem:[#allocation2] sm:$0xe0] %v1178
        %1275 = vst [vmem:[#allocation2 + $0x8] sm:$0xe0] %v1179
        %1276 = vst [vmem:[#allocation2 + $0x10] sm:$0xe0] %v1180
        %1277 = vst [vmem:[#allocation2 + $0x18] sm:$0xe0] %v1181
        %1278 = vst [vmem:[#allocation2 + $0x20] sm:$0xe0] %v1182
        %1279 = vst [vmem:[#allocation2 + $0x28] sm:$0xe0] %v1183
        %1280 = vst [vmem:[#allocation2 + $0x30] sm:$0xe0] %v1184
        %1281 = vst [vmem:[#allocation2 + $0x38] sm:$0xe0] %v1185
        %1282 = vst [vmem:[#allocation2 + $0x40] sm:$0xe0] %v1186
        %1283 = vst [vmem:[#allocation2 + $0x48] sm:$0xe0] %v1187
        %1284 = vst [vmem:[#allocation2 + $0x50] sm:$0xe0] %v1188
        %1285 = vst [vmem:[#allocation2 + $0x58] sm:$0xe0] %v1189
        %1286 = vst [vmem:[#allocation2 + $0x60] sm:$0xff] %v1191
        %1287 = vst [vmem:[#allocation2 + $0x68] sm:$0xff] %v1193
        %1288 = vst [vmem:[#allocation2 + $0x70] sm:$0xff] %v1195
        %1289 = vst [vmem:[#allocation2 + $0x78] sm:$0xff] %v1197
        %1290 = vst [vmem:[#allocation2 + $0x80] sm:$0xff] %v1199
        %1291 = vst [vmem:[#allocation2 + $0x88] sm:$0xff] %v1201
        %1292 = vst [vmem:[#allocation2 + $0x90] sm:$0xff] %v1203
        %1293 = vst [vmem:[#allocation2 + $0x98] sm:$0xff] %v1205
        %1294 = vst [vmem:[#allocation2 + $0xa0] sm:$0xff] %v1207
        %1295 = vst [vmem:[#allocation2 + $0xa8] sm:$0xff] %v1209
        %1296 = vst [vmem:[#allocation2 + $0xb0] sm:$0xff] %v1211
        %1297 = vst [vmem:[#allocation2 + $0xb8] sm:$0xff] %v1213
        %1298 = vst [vmem:[#allocation2 + $0xc0] sm:$0xff] %v1215
        %1299 = vst [vmem:[#allocation2 + $0xc8] sm:$0xff] %v1217
        %1300 = vst [vmem:[#allocation2 + $0xd0] sm:$0xff] %v1219
        %1301 = vst [vmem:[#allocation2 + $0xd8] sm:$0xff] %v1221
        %1302 = vst [vmem:[#allocation2 + $0xe0] sm:$0xff] %v1223
        %1303 = vst [vmem:[#allocation2 + $0xe8] sm:$0xff] %v1225
        %1304 = vst [vmem:[#allocation2 + $0xf0] sm:$0xff] %v1227
        %1305 = vst [vmem:[#allocation2 + $0xf8] sm:$0xff] %v1229
        %1306 = vst [vmem:[#allocation2 + $0x100] sm:$0xff] %v1231
        %1307 = vst [vmem:[#allocation2 + $0x108] sm:$0xff] %v1233
        %1308 = vst [vmem:[#allocation2 + $0x110] sm:$0xff] %v1235
        %1309 = vst [vmem:[#allocation2 + $0x118] sm:$0xff] %v1237
        %s1310 = scalar_lea.vmem [#allocation2], 288
        %1311 = vst [vmem:[%s1310] ss:$8 sm:$0xf] 1.0
        %1312 = vst [vmem:[%s1310] ss:$8 sm:$0xf0] 1.0
        %s1313 = scalar_lea.vmem [#allocation2], 352
        %1314 = vst.msk [vmem:[%s1313] ss:$8 sm:$0xf] %vm1089, 1.0
        %1315 = vst.msk [vmem:[%s1313] ss:$8 sm:$0x0] %vm1089, 1.0
        %v1316 = vadd.s32 %v271, 24
        %vm1317 = vcmp.lt.s32.totalorder %v271, 10
        %vm1318 = vcmp.lt.s32.totalorder %v580, 10
        %vm1319 = vcmp.lt.s32.totalorder %v581, 10
        %vm1320 = vcmp.lt.s32.totalorder %v1316, 10
        %vm1321 = vcmp.lt.s32.totalorder %v271, 21
        %vm1322 = vcmp.lt.s32.totalorder %v580, 21
        %vm1323 = vcmp.lt.s32.totalorder %v581, 21
        %vm1324 = vcmp.lt.s32.totalorder %v1316, 21
        %v1325 = vld [vmem:[%s1] sm:$0xf]
        %v1326 = vld [vmem:[%s1 + $0x4] sm:$0xf]
        %v1327 = vld [vmem:[%s1 + $0x8] sm:$0xf]
        %v1328 = vld [vmem:[%s1 + $0xc] sm:$0xf]
        %v1329 = vld [vmem:[#allocation2] sm:$0xff]
        %v1330 = vld [vmem:[#allocation2 + $0x8] sm:$0xff]
        %v1331 = vld [vmem:[#allocation2 + $0x10] sm:$0xff]
        %v1332 = vld [vmem:[#allocation2 + $0x18] sm:$0xff]
        %v1333 = vld [vmem:[#allocation2 + $0x20] sm:$0xff]
        %v1334 = vld [vmem:[#allocation2 + $0x28] sm:$0xff]
        %v1335 = vld [vmem:[#allocation2 + $0x30] sm:$0xff]
        %v1336 = vld [vmem:[#allocation2 + $0x38] sm:$0xff]
        %v1337 = vld [vmem:[#allocation2 + $0x40] sm:$0xff]
        %v1338 = vld [vmem:[#allocation2 + $0x48] sm:$0xff]
        %v1339 = vld [vmem:[#allocation2 + $0x50] sm:$0xff]
        %v1340 = vld [vmem:[#allocation2 + $0x58] sm:$0xff]
        %v1341 = vld [vmem:[#allocation2 + $0x60] sm:$0xff]
        %v1342 = vld [vmem:[#allocation2 + $0x68] sm:$0xff]
        %v1343 = vld [vmem:[#allocation2 + $0x70] sm:$0xff]
        %v1344 = vld [vmem:[#allocation2 + $0x78] sm:$0xff]
        %v1345 = vld [vmem:[#allocation2 + $0x80] sm:$0xff]
        %v1346 = vld [vmem:[#allocation2 + $0x88] sm:$0xff]
        %v1347 = vld [vmem:[#allocation2 + $0x90] sm:$0xff]
        %v1348 = vld [vmem:[#allocation2 + $0x98] sm:$0xff]
        %v1349 = vld [vmem:[#allocation2 + $0xa0] sm:$0xff]
        %v1350 = vld [vmem:[#allocation2 + $0xa8] sm:$0xff]
        %v1351 = vld [vmem:[#allocation2 + $0xb0] sm:$0xff]
        %v1352 = vld [vmem:[#allocation2 + $0xb8] sm:$0xff]
        %v1353 = vld [vmem:[#allocation2 + $0xc0] sm:$0xff]
        %v1354 = vld [vmem:[#allocation2 + $0xc8] sm:$0xff]
        %v1355 = vld [vmem:[#allocation2 + $0xd0] sm:$0xff]
        %v1356 = vld [vmem:[#allocation2 + $0xd8] sm:$0xff]
        %v1357 = vld [vmem:[#allocation2 + $0xe0] sm:$0xff]
        %v1358 = vld [vmem:[#allocation2 + $0xe8] sm:$0xff]
        %v1359 = vld [vmem:[#allocation2 + $0xf0] sm:$0xff]
        %v1360 = vld [vmem:[#allocation2 + $0xf8] sm:$0xff]
        %v1361 = vld [vmem:[#allocation2 + $0x100] sm:$0xff]
        %v1362 = vld [vmem:[#allocation2 + $0x108] sm:$0xff]
        %v1363 = vld [vmem:[#allocation2 + $0x110] sm:$0xff]
        %v1364 = vld [vmem:[#allocation2 + $0x118] sm:$0xff]
        %v1365 = vld [vmem:[#allocation2 + $0x120] sm:$0x1]
        %v1366 = vld [vmem:[#allocation2 + $0x128] sm:$0x1]
        %v1367 = vld [vmem:[#allocation2 + $0x130] sm:$0x1]
        %v1368 = vld [vmem:[#allocation2 + $0x138] sm:$0x1]
        %v1369 = vld [vmem:[#allocation2 + $0x140] sm:$0x1]
        %v1370 = vld [vmem:[#allocation2 + $0x148] sm:$0x1]
        %v1371 = vld [vmem:[#allocation2 + $0x150] sm:$0x1]
        %v1372 = vld [vmem:[#allocation2 + $0x158] sm:$0x1]
        %v1373 = vld [vmem:[#allocation2 + $0x160] sm:$0x1]
        %v1374 = vld [vmem:[#allocation2 + $0x168] sm:$0x1]
        %v1375 = vld [vmem:[#allocation2 + $0x170] sm:$0x1]
        %v1376 = vld [vmem:[#allocation2 + $0x178] sm:$0x1]
        %v1377 = vpack.c.bf16 %v1341, %v1329
        %v1378 = vpack.c.bf16 %v1342, %v1330
        %v1379 = vpack.c.bf16 %v1343, %v1331
        %v1380 = vpack.c.bf16 %v1344, %v1332
        %v1381 = vpack.c.bf16 %v1345, %v1333
        %v1382 = vpack.c.bf16 %v1346, %v1334
        %v1383 = vpack.c.bf16 %v1347, %v1335
        %v1384 = vpack.c.bf16 %v1348, %v1336
        %v1385 = vpack.c.bf16 %v1349, %v1337
        %v1386 = vpack.c.bf16 %v1350, %v1338
        %v1387 = vpack.c.bf16 %v1351, %v1339
        %v1388 = vpack.c.bf16 %v1352, %v1340
        %v1389 = vpack.c.bf16 %v1365, %v1353
        %v1390 = vpack.c.bf16 %v1366, %v1354
        %v1391 = vpack.c.bf16 %v1367, %v1355
        %v1392 = vpack.c.bf16 %v1368, %v1356
        %v1393 = vpack.c.bf16 %v1369, %v1357
        %v1394 = vpack.c.bf16 %v1370, %v1358
        %v1395 = vpack.c.bf16 %v1371, %v1359
        %v1396 = vpack.c.bf16 %v1372, %v1360
        %v1397 = vpack.c.bf16 %v1373, %v1361
        %v1398 = vpack.c.bf16 %v1374, %v1362
        %v1399 = vpack.c.bf16 %v1375, %v1363
        %v1400 = vpack.c.bf16 %v1376, %v1364
        %v1405 = vunpack.c.l.b16 %v1325
        %v1406 = vunpack.c.l.b16 %v1326
        %v1407 = vunpack.c.l.b16 %v1327
        %v1408 = vunpack.c.l.b16 %v1328
        %v1409 = vpack.c.b16 %v1406, %v1405
        %v1410 = vpack.c.b16 %v1408, %v1407
        %vm1411 = vcmask 203776
        %v1413 = vsel %vm1411, %v1409, 0
        %v1416 = vsel %vm1411, %v1410, 0
        %v1418 = vsel %vm471, 4294967295, 65535
        %v1419 = vsel %vm1177, %v1418, 0
        %v1421 = vand.u32 %v1389, %v1419
        %v1424 = vand.u32 %v1390, %v1419
        %v1427 = vand.u32 %v1391, %v1419
        %v1430 = vand.u32 %v1392, %v1419
        %v1433 = vand.u32 %v1393, %v1419
        %v1436 = vand.u32 %v1394, %v1419
        %v1439 = vand.u32 %v1395, %v1419
        %v1442 = vand.u32 %v1396, %v1419
        %v1445 = vand.u32 %v1397, %v1419
        %v1448 = vand.u32 %v1398, %v1419
        %v1451 = vand.u32 %v1399, %v1419
        %v1454 = vand.u32 %v1400, %v1419
        %1456 = vmatprep.subr.bf16.mxu0 %v1378
        %1457 = vmatpush1.bf16.msra.mxu0 %v1377
        %1458 = vmatprep.subr.bf16.mxu0 %v1424
        %1459 = vmatpush1.bf16.msra.mxu0 %v1421
        %1460 = vmatprep.subr.bf16.mxu0 0
        %1461 = vmatpush1.bf16.msra.mxu0 0
        %1462 = vmatprep.subr.bf16.mxu0 0
        %1463 = vmatpush1.bf16.msra.mxu0 0
        %1464 = vmatprep.subr.bf16.mxu0 0
        %1465 = vmatpush1.bf16.msra.mxu0 0
        %1466 = vmatprep.subr.bf16.mxu0 0
        %1467 = vmatpush1.bf16.msra.mxu0 0
        %1468 = vmatprep.subr.bf16.mxu0 0
        %1469 = vmatpush1.bf16.msra.mxu0 0
        %1470 = vmatprep.subr.bf16.mxu0 0
        %1471 = vmatpush1.bf16.msra.mxu0 0
        %1472 = vmatprep.subr.bf16.mxu0 0
        %1473 = vmatpush1.bf16.msra.mxu0 0
        %1474 = vmatprep.subr.bf16.mxu0 0
        %1475 = vmatpush1.bf16.msra.mxu0 0
        %1476 = vmatprep.subr.bf16.mxu0 0
        %1477 = vmatpush1.bf16.msra.mxu0 0
        %1478 = vmatprep.subr.bf16.mxu0 0
        %1479 = vmatpush1.bf16.msra.mxu0 0
        %1480 = vmatprep.subr.bf16.mxu0 0
        %1481 = vmatpush1.bf16.msra.mxu0 0
        %1482 = vmatprep.subr.bf16.mxu0 0
        %1483 = vmatpush1.bf16.msra.mxu0 0
        %1484 = vmatprep.subr.bf16.mxu0 0
        %1485 = vmatpush1.bf16.msra.mxu0 0
        %1486 = vmatprep.subr.bf16.mxu0 0
        %1487 = vmatpush1.bf16.msra.mxu0 0
        %1488 = vmatprep.mubr.bf16.mxu0 0
        %1489 = vmatmul.mubr.bf16.gmra.mrb[0].mxu0 %v1413
        %v1490 = vpop.f32.mrb[0].mxu0
        %v1491 = vadd.f32 0.0, %v1490
        %v1492 = vpop.f32.mrb[0].mxu0
        %v1493 = vadd.f32 0.0, %v1492
        %v1494 = vpop.f32.mrb[0].mxu0
        %v1495 = vadd.f32 0.0, %v1494
        %v1496 = vpop.f32.mrb[0].mxu0
        %v1497 = vadd.f32 0.0, %v1496
        %1498 = vmatprep.mubr.bf16.mxu0 0
        %1499 = vmatmul.mubr.bf16.gmra.mrb[0].mxu0 %v1416
        %v1500 = vpop.f32.mrb[0].mxu0
        %v1501 = vadd.f32 0.0, %v1500
        %v1502 = vpop.f32.mrb[0].mxu0
        %v1503 = vadd.f32 0.0, %v1502
        %v1504 = vpop.f32.mrb[0].mxu0
        %v1505 = vadd.f32 0.0, %v1504
        %v1506 = vpop.f32.mrb[0].mxu0
        %v1507 = vadd.f32 0.0, %v1506
        %1508 = vdwg.mxu0
        %1509 = vmatprep.subr.bf16.mxu0 %v1380
        %1510 = vmatpush1.bf16.msra.mxu0 %v1379
        %1511 = vmatprep.subr.bf16.mxu0 %v1430
        %1512 = vmatpush1.bf16.msra.mxu0 %v1427
        %1513 = vmatprep.subr.bf16.mxu0 0
        %1514 = vmatpush1.bf16.msra.mxu0 0
        %1515 = vmatprep.subr.bf16.mxu0 0
        %1516 = vmatpush1.bf16.msra.mxu0 0
        %1517 = vmatprep.subr.bf16.mxu0 0
        %1518 = vmatpush1.bf16.msra.mxu0 0
        %1519 = vmatprep.subr.bf16.mxu0 0
        %1520 = vmatpush1.bf16.msra.mxu0 0
        %1521 = vmatprep.subr.bf16.mxu0 0
        %1522 = vmatpush1.bf16.msra.mxu0 0
        %1523 = vmatprep.subr.bf16.mxu0 0
        %1524 = vmatpush1.bf16.msra.mxu0 0
        %1525 = vmatprep.subr.bf16.mxu0 0
        %1526 = vmatpush1.bf16.msra.mxu0 0
        %1527 = vmatprep.subr.bf16.mxu0 0
        %1528 = vmatpush1.bf16.msra.mxu0 0
        %1529 = vmatprep.subr.bf16.mxu0 0
        %1530 = vmatpush1.bf16.msra.mxu0 0
        %1531 = vmatprep.subr.bf16.mxu0 0
        %1532 = vmatpush1.bf16.msra.mxu0 0
        %1533 = vmatprep.subr.bf16.mxu0 0
        %1534 = vmatpush1.bf16.msra.mxu0 0
        %1535 = vmatprep.subr.bf16.mxu0 0
        %1536 = vmatpush1.bf16.msra.mxu0 0
        %1537 = vmatprep.subr.bf16.mxu0 0
        %1538 = vmatpush1.bf16.msra.mxu0 0
        %1539 = vmatprep.subr.bf16.mxu0 0
        %1540 = vmatpush1.bf16.msra.mxu0 0
        %1541 = vmatprep.mubr.bf16.mxu0 0
        %1542 = vmatmul.mubr.bf16.gmra.mrb[0].mxu0 %v1413
        %v1543 = vpop.f32.mrb[0].mxu0
        %v1544 = vadd.f32 0.0, %v1543
        %v1545 = vpop.f32.mrb[0].mxu0
        %v1546 = vadd.f32 0.0, %v1545
        %v1547 = vpop.f32.mrb[0].mxu0
        %v1548 = vadd.f32 0.0, %v1547
        %v1549 = vpop.f32.mrb[0].mxu0
        %v1550 = vadd.f32 0.0, %v1549
        %1551 = vmatprep.mubr.bf16.mxu0 0
        %1552 = vmatmul.mubr.bf16.gmra.mrb[0].mxu0 %v1416
        %v1553 = vpop.f32.mrb[0].mxu0
        %v1554 = vadd.f32 0.0, %v1553
        %v1555 = vpop.f32.mrb[0].mxu0
        %v1556 = vadd.f32 0.0, %v1555
        %v1557 = vpop.f32.mrb[0].mxu0
        %v1558 = vadd.f32 0.0, %v1557
        %v1559 = vpop.f32.mrb[0].mxu0
        %v1560 = vadd.f32 0.0, %v1559
        %1561 = vdwg.mxu0
        %1562 = vmatprep.subr.bf16.mxu0 %v1382
        %1563 = vmatpush1.bf16.msra.mxu0 %v1381
        %1564 = vmatprep.subr.bf16.mxu0 %v1436
        %1565 = vmatpush1.bf16.msra.mxu0 %v1433
        %1566 = vmatprep.subr.bf16.mxu0 0
        %1567 = vmatpush1.bf16.msra.mxu0 0
        %1568 = vmatprep.subr.bf16.mxu0 0
        %1569 = vmatpush1.bf16.msra.mxu0 0
        %1570 = vmatprep.subr.bf16.mxu0 0
        %1571 = vmatpush1.bf16.msra.mxu0 0
        %1572 = vmatprep.subr.bf16.mxu0 0
        %1573 = vmatpush1.bf16.msra.mxu0 0
        %1574 = vmatprep.subr.bf16.mxu0 0
        %1575 = vmatpush1.bf16.msra.mxu0 0
        %1576 = vmatprep.subr.bf16.mxu0 0
        %1577 = vmatpush1.bf16.msra.mxu0 0
        %1578 = vmatprep.subr.bf16.mxu0 0
        %1579 = vmatpush1.bf16.msra.mxu0 0
        %1580 = vmatprep.subr.bf16.mxu0 0
        %1581 = vmatpush1.bf16.msra.mxu0 0
        %1582 = vmatprep.subr.bf16.mxu0 0
        %1583 = vmatpush1.bf16.msra.mxu0 0
        %1584 = vmatprep.subr.bf16.mxu0 0
        %1585 = vmatpush1.bf16.msra.mxu0 0
        %1586 = vmatprep.subr.bf16.mxu0 0
        %1587 = vmatpush1.bf16.msra.mxu0 0
        %1588 = vmatprep.subr.bf16.mxu0 0
        %1589 = vmatpush1.bf16.msra.mxu0 0
        %1590 = vmatprep.subr.bf16.mxu0 0
        %1591 = vmatpush1.bf16.msra.mxu0 0
        %1592 = vmatprep.subr.bf16.mxu0 0
        %1593 = vmatpush1.bf16.msra.mxu0 0
        %1594 = vmatprep.mubr.bf16.mxu0 0
        %1595 = vmatmul.mubr.bf16.gmra.mrb[0].mxu0 %v1413
        %v1596 = vpop.f32.mrb[0].mxu0
        %v1597 = vadd.f32 0.0, %v1596
        %v1598 = vpop.f32.mrb[0].mxu0
        %v1599 = vadd.f32 0.0, %v1598
        %v1600 = vpop.f32.mrb[0].mxu0
        %v1601 = vadd.f32 0.0, %v1600
        %v1602 = vpop.f32.mrb[0].mxu0
        %v1603 = vadd.f32 0.0, %v1602
        %1604 = vmatprep.mubr.bf16.mxu0 0
        %1605 = vmatmul.mubr.bf16.gmra.mrb[0].mxu0 %v1416
        %v1606 = vpop.f32.mrb[0].mxu0
        %v1607 = vadd.f32 0.0, %v1606
        %v1608 = vpop.f32.mrb[0].mxu0
        %v1609 = vadd.f32 0.0, %v1608
        %v1610 = vpop.f32.mrb[0].mxu0
        %v1611 = vadd.f32 0.0, %v1610
        %v1612 = vpop.f32.mrb[0].mxu0
        %v1613 = vadd.f32 0.0, %v1612
        %1614 = vdwg.mxu0
        %1615 = vmatprep.subr.bf16.mxu0 %v1384
        %1616 = vmatpush1.bf16.msra.mxu0 %v1383
        %1617 = vmatprep.subr.bf16.mxu0 %v1442
        %1618 = vmatpush1.bf16.msra.mxu0 %v1439
        %1619 = vmatprep.subr.bf16.mxu0 0
        %1620 = vmatpush1.bf16.msra.mxu0 0
        %1621 = vmatprep.subr.bf16.mxu0 0
        %1622 = vmatpush1.bf16.msra.mxu0 0
        %1623 = vmatprep.subr.bf16.mxu0 0
        %1624 = vmatpush1.bf16.msra.mxu0 0
        %1625 = vmatprep.subr.bf16.mxu0 0
        %1626 = vmatpush1.bf16.msra.mxu0 0
        %1627 = vmatprep.subr.bf16.mxu0 0
        %1628 = vmatpush1.bf16.msra.mxu0 0
        %1629 = vmatprep.subr.bf16.mxu0 0
        %1630 = vmatpush1.bf16.msra.mxu0 0
        %1631 = vmatprep.subr.bf16.mxu0 0
        %1632 = vmatpush1.bf16.msra.mxu0 0
        %1633 = vmatprep.subr.bf16.mxu0 0
        %1634 = vmatpush1.bf16.msra.mxu0 0
        %1635 = vmatprep.subr.bf16.mxu0 0
        %1636 = vmatpush1.bf16.msra.mxu0 0
        %1637 = vmatprep.subr.bf16.mxu0 0
        %1638 = vmatpush1.bf16.msra.mxu0 0
        %1639 = vmatprep.subr.bf16.mxu0 0
        %1640 = vmatpush1.bf16.msra.mxu0 0
        %1641 = vmatprep.subr.bf16.mxu0 0
        %1642 = vmatpush1.bf16.msra.mxu0 0
        %1643 = vmatprep.subr.bf16.mxu0 0
        %1644 = vmatpush1.bf16.msra.mxu0 0
        %1645 = vmatprep.subr.bf16.mxu0 0
        %1646 = vmatpush1.bf16.msra.mxu0 0
        %1647 = vmatprep.mubr.bf16.mxu0 0
        %1648 = vmatmul.mubr.bf16.gmra.mrb[0].mxu0 %v1413
        %v1649 = vpop.f32.mrb[0].mxu0
        %v1650 = vadd.f32 0.0, %v1649
        %v1651 = vpop.f32.mrb[0].mxu0
        %v1652 = vadd.f32 0.0, %v1651
        %v1653 = vpop.f32.mrb[0].mxu0
        %v1654 = vadd.f32 0.0, %v1653
        %v1655 = vpop.f32.mrb[0].mxu0
        %v1656 = vadd.f32 0.0, %v1655
        %1657 = vmatprep.mubr.bf16.mxu0 0
        %1658 = vmatmul.mubr.bf16.gmra.mrb[0].mxu0 %v1416
        %v1659 = vpop.f32.mrb[0].mxu0
        %v1660 = vadd.f32 0.0, %v1659
        %v1661 = vpop.f32.mrb[0].mxu0
        %v1662 = vadd.f32 0.0, %v1661
        %v1663 = vpop.f32.mrb[0].mxu0
        %v1664 = vadd.f32 0.0, %v1663
        %v1665 = vpop.f32.mrb[0].mxu0
        %v1666 = vadd.f32 0.0, %v1665
        %1667 = vdwg.mxu0
        %1668 = vmatprep.subr.bf16.mxu0 %v1386
        %1669 = vmatpush1.bf16.msra.mxu0 %v1385
        %1670 = vmatprep.subr.bf16.mxu0 %v1448
        %1671 = vmatpush1.bf16.msra.mxu0 %v1445
        %1672 = vmatprep.subr.bf16.mxu0 0
        %1673 = vmatpush1.bf16.msra.mxu0 0
        %1674 = vmatprep.subr.bf16.mxu0 0
        %1675 = vmatpush1.bf16.msra.mxu0 0
        %1676 = vmatprep.subr.bf16.mxu0 0
        %1677 = vmatpush1.bf16.msra.mxu0 0
        %1678 = vmatprep.subr.bf16.mxu0 0
        %1679 = vmatpush1.bf16.msra.mxu0 0
        %1680 = vmatprep.subr.bf16.mxu0 0
        %1681 = vmatpush1.bf16.msra.mxu0 0
        %1682 = vmatprep.subr.bf16.mxu0 0
        %1683 = vmatpush1.bf16.msra.mxu0 0
        %1684 = vmatprep.subr.bf16.mxu0 0
        %1685 = vmatpush1.bf16.msra.mxu0 0
        %1686 = vmatprep.subr.bf16.mxu0 0
        %1687 = vmatpush1.bf16.msra.mxu0 0
        %1688 = vmatprep.subr.bf16.mxu0 0
        %1689 = vmatpush1.bf16.msra.mxu0 0
        %1690 = vmatprep.subr.bf16.mxu0 0
        %1691 = vmatpush1.bf16.msra.mxu0 0
        %1692 = vmatprep.subr.bf16.mxu0 0
        %1693 = vmatpush1.bf16.msra.mxu0 0
        %1694 = vmatprep.subr.bf16.mxu0 0
        %1695 = vmatpush1.bf16.msra.mxu0 0
        %1696 = vmatprep.subr.bf16.mxu0 0
        %1697 = vmatpush1.bf16.msra.mxu0 0
        %1698 = vmatprep.subr.bf16.mxu0 0
        %1699 = vmatpush1.bf16.msra.mxu0 0
        %1700 = vmatprep.mubr.bf16.mxu0 0
        %1701 = vmatmul.mubr.bf16.gmra.mrb[0].mxu0 %v1413
        %v1702 = vpop.f32.mrb[0].mxu0
        %v1703 = vadd.f32 0.0, %v1702
        %v1704 = vpop.f32.mrb[0].mxu0
        %v1705 = vadd.f32 0.0, %v1704
        %v1706 = vpop.f32.mrb[0].mxu0
        %v1707 = vadd.f32 0.0, %v1706
        %v1708 = vpop.f32.mrb[0].mxu0
        %v1709 = vadd.f32 0.0, %v1708
        %1710 = vmatprep.mubr.bf16.mxu0 0
        %1711 = vmatmul.mubr.bf16.gmra.mrb[0].mxu0 %v1416
        %v1712 = vpop.f32.mrb[0].mxu0
        %v1713 = vadd.f32 0.0, %v1712
        %v1714 = vpop.f32.mrb[0].mxu0
        %v1715 = vadd.f32 0.0, %v1714
        %v1716 = vpop.f32.mrb[0].mxu0
        %v1717 = vadd.f32 0.0, %v1716
        %v1718 = vpop.f32.mrb[0].mxu0
        %v1719 = vadd.f32 0.0, %v1718
        %1720 = vdwg.mxu0
        %1721 = vmatprep.subr.bf16.mxu0 %v1388
        %1722 = vmatpush1.bf16.msra.mxu0 %v1387
        %1723 = vmatprep.subr.bf16.mxu0 %v1454
        %1724 = vmatpush1.bf16.msra.mxu0 %v1451
        %1725 = vmatprep.subr.bf16.mxu0 0
        %1726 = vmatpush1.bf16.msra.mxu0 0
        %1727 = vmatprep.subr.bf16.mxu0 0
        %1728 = vmatpush1.bf16.msra.mxu0 0
        %1729 = vmatprep.subr.bf16.mxu0 0
        %1730 = vmatpush1.bf16.msra.mxu0 0
        %1731 = vmatprep.subr.bf16.mxu0 0
        %1732 = vmatpush1.bf16.msra.mxu0 0
        %1733 = vmatprep.subr.bf16.mxu0 0
        %1734 = vmatpush1.bf16.msra.mxu0 0
        %1735 = vmatprep.subr.bf16.mxu0 0
        %1736 = vmatpush1.bf16.msra.mxu0 0
        %1737 = vmatprep.subr.bf16.mxu0 0
        %1738 = vmatpush1.bf16.msra.mxu0 0
        %1739 = vmatprep.subr.bf16.mxu0 0
        %1740 = vmatpush1.bf16.msra.mxu0 0
        %1741 = vmatprep.subr.bf16.mxu0 0
        %1742 = vmatpush1.bf16.msra.mxu0 0
        %1743 = vmatprep.subr.bf16.mxu0 0
        %1744 = vmatpush1.bf16.msra.mxu0 0
        %1745 = vmatprep.subr.bf16.mxu0 0
        %1746 = vmatpush1.bf16.msra.mxu0 0
        %1747 = vmatprep.subr.bf16.mxu0 0
        %1748 = vmatpush1.bf16.msra.mxu0 0
        %1749 = vmatprep.subr.bf16.mxu0 0
        %1750 = vmatpush1.bf16.msra.mxu0 0
        %1751 = vmatprep.subr.bf16.mxu0 0
        %1752 = vmatpush1.bf16.msra.mxu0 0
        %1753 = vmatprep.mubr.bf16.mxu0 0
        %1754 = vmatmul.mubr.bf16.gmra.mrb[0].mxu0 %v1413
        %v1755 = vpop.f32.mrb[0].mxu0
        %v1756 = vadd.f32 0.0, %v1755
        %v1757 = vpop.f32.mrb[0].mxu0
        %v1758 = vadd.f32 0.0, %v1757
        %v1759 = vpop.f32.mrb[0].mxu0
        %v1760 = vadd.f32 0.0, %v1759
        %v1761 = vpop.f32.mrb[0].mxu0
        %v1762 = vadd.f32 0.0, %v1761
        %1763 = vmatprep.mubr.bf16.mxu0 0
        %1764 = vmatmul.mubr.bf16.gmra.mrb[0].mxu0 %v1416
        %v1765 = vpop.f32.mrb[0].mxu0
        %v1766 = vadd.f32 0.0, %v1765
        %v1767 = vpop.f32.mrb[0].mxu0
        %v1768 = vadd.f32 0.0, %v1767
        %v1769 = vpop.f32.mrb[0].mxu0
        %v1770 = vadd.f32 0.0, %v1769
        %v1771 = vpop.f32.mrb[0].mxu0
        %v1772 = vadd.f32 0.0, %v1771
        %1773 = vdwg.mxu0
        %v1774 = vmax.f32 %v1491, 0.0
        %v1775 = vmax.f32 %v1493, 0.0
        %v1776 = vmax.f32 %v1544, 0.0
        %v1777 = vmax.f32 %v1546, 0.0
        %v1778 = vmax.f32 %v1597, 0.0
        %v1779 = vmax.f32 %v1599, 0.0
        %v1780 = vmax.f32 %v1650, 0.0
        %v1781 = vmax.f32 %v1652, 0.0
        %v1782 = vmax.f32 %v1703, 0.0
        %v1783 = vmax.f32 %v1705, 0.0
        %v1784 = vmax.f32 %v1756, 0.0
        %v1785 = vmax.f32 %v1758, 0.0
        %v1786 = vmax.f32 %v1495, 0.0
        %v1787 = vmax.f32 %v1497, 0.0
        %v1788 = vmax.f32 %v1548, 0.0
        %v1789 = vmax.f32 %v1550, 0.0
        %v1790 = vmax.f32 %v1601, 0.0
        %v1791 = vmax.f32 %v1603, 0.0
        %v1792 = vmax.f32 %v1654, 0.0
        %v1793 = vmax.f32 %v1656, 0.0
        %v1794 = vmax.f32 %v1707, 0.0
        %v1795 = vmax.f32 %v1709, 0.0
        %v1796 = vmax.f32 %v1760, 0.0
        %v1797 = vmax.f32 %v1762, 0.0
        %v1798 = vmax.f32 %v1501, 0.0
        %v1799 = vmax.f32 %v1503, 0.0
        %v1800 = vmax.f32 %v1554, 0.0
        %v1801 = vmax.f32 %v1556, 0.0
        %v1802 = vmax.f32 %v1607, 0.0
        %v1803 = vmax.f32 %v1609, 0.0
        %v1804 = vmax.f32 %v1660, 0.0
        %v1805 = vmax.f32 %v1662, 0.0
        %v1806 = vmax.f32 %v1713, 0.0
        %v1807 = vmax.f32 %v1715, 0.0
        %v1808 = vmax.f32 %v1766, 0.0
        %v1809 = vmax.f32 %v1768, 0.0
        %v1810 = vmax.f32 %v1505, 0.0
        %v1811 = vmax.f32 %v1507, 0.0
        %v1812 = vmax.f32 %v1558, 0.0
        %v1813 = vmax.f32 %v1560, 0.0
        %v1814 = vmax.f32 %v1611, 0.0
        %v1815 = vmax.f32 %v1613, 0.0
        %v1816 = vmax.f32 %v1664, 0.0
        %v1817 = vmax.f32 %v1666, 0.0
        %v1818 = vmax.f32 %v1717, 0.0
        %v1819 = vmax.f32 %v1719, 0.0
        %v1820 = vmax.f32 %v1770, 0.0
        %v1821 = vmax.f32 %v1772, 0.0
        %v1822 = vmin.f32 %v1491, 0.0
        %v1823 = vmin.f32 %v1493, 0.0
        %v1824 = vmin.f32 %v1544, 0.0
        %v1825 = vmin.f32 %v1546, 0.0
        %v1826 = vmin.f32 %v1597, 0.0
        %v1827 = vmin.f32 %v1599, 0.0
        %v1828 = vmin.f32 %v1650, 0.0
        %v1829 = vmin.f32 %v1652, 0.0
        %v1830 = vmin.f32 %v1703, 0.0
        %v1831 = vmin.f32 %v1705, 0.0
        %v1832 = vmin.f32 %v1756, 0.0
        %v1833 = vmin.f32 %v1758, 0.0
        %v1834 = vmin.f32 %v1495, 0.0
        %v1835 = vmin.f32 %v1497, 0.0
        %v1836 = vmin.f32 %v1548, 0.0
        %v1837 = vmin.f32 %v1550, 0.0
        %v1838 = vmin.f32 %v1601, 0.0
        %v1839 = vmin.f32 %v1603, 0.0
        %v1840 = vmin.f32 %v1654, 0.0
        %v1841 = vmin.f32 %v1656, 0.0
        %v1842 = vmin.f32 %v1707, 0.0
        %v1843 = vmin.f32 %v1709, 0.0
        %v1844 = vmin.f32 %v1760, 0.0
        %v1845 = vmin.f32 %v1762, 0.0
        %v1846 = vmin.f32 %v1501, 0.0
        %v1847 = vmin.f32 %v1503, 0.0
        %v1848 = vmin.f32 %v1554, 0.0
        %v1849 = vmin.f32 %v1556, 0.0
        %v1850 = vmin.f32 %v1607, 0.0
        %v1851 = vmin.f32 %v1609, 0.0
        %v1852 = vmin.f32 %v1660, 0.0
        %v1853 = vmin.f32 %v1662, 0.0
        %v1854 = vmin.f32 %v1713, 0.0
        %v1855 = vmin.f32 %v1715, 0.0
        %v1856 = vmin.f32 %v1766, 0.0
        %v1857 = vmin.f32 %v1768, 0.0
        %v1858 = vmin.f32 %v1505, 0.0
        %v1859 = vmin.f32 %v1507, 0.0
        %v1860 = vmin.f32 %v1558, 0.0
        %v1861 = vmin.f32 %v1560, 0.0
        %v1862 = vmin.f32 %v1611, 0.0
        %v1863 = vmin.f32 %v1613, 0.0
        %v1864 = vmin.f32 %v1664, 0.0
        %v1865 = vmin.f32 %v1666, 0.0
        %v1866 = vmin.f32 %v1717, 0.0
        %v1867 = vmin.f32 %v1719, 0.0
        %v1868 = vmin.f32 %v1770, 0.0
        %v1869 = vmin.f32 %v1772, 0.0
        %v1870 = vmax.f32 %v1491, -1.0
        %v1871 = vmax.f32 %v1493, -1.0
        %v1872 = vmax.f32 %v1544, -1.0
        %v1873 = vmax.f32 %v1546, -1.0
        %v1874 = vmax.f32 %v1597, -1.0
        %v1875 = vmax.f32 %v1599, -1.0
        %v1876 = vmax.f32 %v1650, -1.0
        %v1877 = vmax.f32 %v1652, -1.0
        %v1878 = vmax.f32 %v1703, -1.0
        %v1879 = vmax.f32 %v1705, -1.0
        %v1880 = vmax.f32 %v1756, -1.0
        %v1881 = vmax.f32 %v1758, -1.0
        %v1882 = vmax.f32 %v1495, -1.0
        %v1883 = vmax.f32 %v1497, -1.0
        %v1884 = vmax.f32 %v1548, -1.0
        %v1885 = vmax.f32 %v1550, -1.0
        %v1886 = vmax.f32 %v1601, -1.0
        %v1887 = vmax.f32 %v1603, -1.0
        %v1888 = vmax.f32 %v1654, -1.0
        %v1889 = vmax.f32 %v1656, -1.0
        %v1890 = vmax.f32 %v1707, -1.0
        %v1891 = vmax.f32 %v1709, -1.0
        %v1892 = vmax.f32 %v1760, -1.0
        %v1893 = vmax.f32 %v1762, -1.0
        %v1894 = vmax.f32 %v1501, -1.0
        %v1895 = vmax.f32 %v1503, -1.0
        %v1896 = vmax.f32 %v1554, -1.0
        %v1897 = vmax.f32 %v1556, -1.0
        %v1898 = vmax.f32 %v1607, -1.0
        %v1899 = vmax.f32 %v1609, -1.0
        %v1900 = vmax.f32 %v1660, -1.0
        %v1901 = vmax.f32 %v1662, -1.0
        %v1902 = vmax.f32 %v1713, -1.0
        %v1903 = vmax.f32 %v1715, -1.0
        %v1904 = vmax.f32 %v1766, -1.0
        %v1905 = vmax.f32 %v1768, -1.0
        %v1906 = vmax.f32 %v1505, -1.0
        %v1907 = vmax.f32 %v1507, -1.0
        %v1908 = vmax.f32 %v1558, -1.0
        %v1909 = vmax.f32 %v1560, -1.0
        %v1910 = vmax.f32 %v1611, -1.0
        %v1911 = vmax.f32 %v1613, -1.0
        %v1912 = vmax.f32 %v1664, -1.0
        %v1913 = vmax.f32 %v1666, -1.0
        %v1914 = vmax.f32 %v1717, -1.0
        %v1915 = vmax.f32 %v1719, -1.0
        %v1916 = vmax.f32 %v1770, -1.0
        %v1917 = vmax.f32 %v1772, -1.0
        %v1918 = vmin.f32 %v1870, 1.0
        %v1919 = vmin.f32 %v1871, 1.0
        %v1920 = vmin.f32 %v1872, 1.0
        %v1921 = vmin.f32 %v1873, 1.0
        %v1922 = vmin.f32 %v1874, 1.0
        %v1923 = vmin.f32 %v1875, 1.0
        %v1924 = vmin.f32 %v1876, 1.0
        %v1925 = vmin.f32 %v1877, 1.0
        %v1926 = vmin.f32 %v1878, 1.0
        %v1927 = vmin.f32 %v1879, 1.0
        %v1928 = vmin.f32 %v1880, 1.0
        %v1929 = vmin.f32 %v1881, 1.0
        %v1930 = vmin.f32 %v1882, 1.0
        %v1931 = vmin.f32 %v1883, 1.0
        %v1932 = vmin.f32 %v1884, 1.0
        %v1933 = vmin.f32 %v1885, 1.0
        %v1934 = vmin.f32 %v1886, 1.0
        %v1935 = vmin.f32 %v1887, 1.0
        %v1936 = vmin.f32 %v1888, 1.0
        %v1937 = vmin.f32 %v1889, 1.0
        %v1938 = vmin.f32 %v1890, 1.0
        %v1939 = vmin.f32 %v1891, 1.0
        %v1940 = vmin.f32 %v1892, 1.0
        %v1941 = vmin.f32 %v1893, 1.0
        %v1942 = vmin.f32 %v1894, 1.0
        %v1943 = vmin.f32 %v1895, 1.0
        %v1944 = vmin.f32 %v1896, 1.0
        %v1945 = vmin.f32 %v1897, 1.0
        %v1946 = vmin.f32 %v1898, 1.0
        %v1947 = vmin.f32 %v1899, 1.0
        %v1948 = vmin.f32 %v1900, 1.0
        %v1949 = vmin.f32 %v1901, 1.0
        %v1950 = vmin.f32 %v1902, 1.0
        %v1951 = vmin.f32 %v1903, 1.0
        %v1952 = vmin.f32 %v1904, 1.0
        %v1953 = vmin.f32 %v1905, 1.0
        %v1954 = vmin.f32 %v1906, 1.0
        %v1955 = vmin.f32 %v1907, 1.0
        %v1956 = vmin.f32 %v1908, 1.0
        %v1957 = vmin.f32 %v1909, 1.0
        %v1958 = vmin.f32 %v1910, 1.0
        %v1959 = vmin.f32 %v1911, 1.0
        %v1960 = vmin.f32 %v1912, 1.0
        %v1961 = vmin.f32 %v1913, 1.0
        %v1962 = vmin.f32 %v1914, 1.0
        %v1963 = vmin.f32 %v1915, 1.0
        %v1964 = vmin.f32 %v1916, 1.0
        %v1965 = vmin.f32 %v1917, 1.0
        %v1966 = vsel %vm1321, %v1822, %v1918
        %v1967 = vsel %vm1321, %v1823, %v1919
        %v1968 = vsel %vm1321, %v1824, %v1920
        %v1969 = vsel %vm1321, %v1825, %v1921
        %v1970 = vsel %vm1321, %v1826, %v1922
        %v1971 = vsel %vm1321, %v1827, %v1923
        %v1972 = vsel %vm1321, %v1828, %v1924
        %v1973 = vsel %vm1321, %v1829, %v1925
        %v1974 = vsel %vm1321, %v1830, %v1926
        %v1975 = vsel %vm1321, %v1831, %v1927
        %v1976 = vsel %vm1321, %v1832, %v1928
        %v1977 = vsel %vm1321, %v1833, %v1929
        %v1978 = vsel %vm1322, %v1834, %v1930
        %v1979 = vsel %vm1322, %v1835, %v1931
        %v1980 = vsel %vm1322, %v1836, %v1932
        %v1981 = vsel %vm1322, %v1837, %v1933
        %v1982 = vsel %vm1322, %v1838, %v1934
        %v1983 = vsel %vm1322, %v1839, %v1935
        %v1984 = vsel %vm1322, %v1840, %v1936
        %v1985 = vsel %vm1322, %v1841, %v1937
        %v1986 = vsel %vm1322, %v1842, %v1938
        %v1987 = vsel %vm1322, %v1843, %v1939
        %v1988 = vsel %vm1322, %v1844, %v1940
        %v1989 = vsel %vm1322, %v1845, %v1941
        %v1990 = vsel %vm1323, %v1846, %v1942
        %v1991 = vsel %vm1323, %v1847, %v1943
        %v1992 = vsel %vm1323, %v1848, %v1944
        %v1993 = vsel %vm1323, %v1849, %v1945
        %v1994 = vsel %vm1323, %v1850, %v1946
        %v1995 = vsel %vm1323, %v1851, %v1947
        %v1996 = vsel %vm1323, %v1852, %v1948
        %v1997 = vsel %vm1323, %v1853, %v1949
        %v1998 = vsel %vm1323, %v1854, %v1950
        %v1999 = vsel %vm1323, %v1855, %v1951
        %v2000 = vsel %vm1323, %v1856, %v1952
        %v2001 = vsel %vm1323, %v1857, %v1953
        %v2002 = vsel %vm1324, %v1858, %v1954
        %v2003 = vsel %vm1324, %v1859, %v1955
        %v2004 = vsel %vm1324, %v1860, %v1956
        %v2005 = vsel %vm1324, %v1861, %v1957
        %v2006 = vsel %vm1324, %v1862, %v1958
        %v2007 = vsel %vm1324, %v1863, %v1959
        %v2008 = vsel %vm1324, %v1864, %v1960
        %v2009 = vsel %vm1324, %v1865, %v1961
        %v2010 = vsel %vm1324, %v1866, %v1962
        %v2011 = vsel %vm1324, %v1867, %v1963
        %v2012 = vsel %vm1324, %v1868, %v1964
        %v2013 = vsel %vm1324, %v1869, %v1965
        %v2014 = vsel %vm1317, %v1774, %v1966
        %v2015 = vsel %vm1317, %v1775, %v1967
        %v2016 = vsel %vm1317, %v1776, %v1968
        %v2017 = vsel %vm1317, %v1777, %v1969
        %v2018 = vsel %vm1317, %v1778, %v1970
        %v2019 = vsel %vm1317, %v1779, %v1971
        %v2020 = vsel %vm1317, %v1780, %v1972
        %v2021 = vsel %vm1317, %v1781, %v1973
        %v2022 = vsel %vm1317, %v1782, %v1974
        %v2023 = vsel %vm1317, %v1783, %v1975
        %v2024 = vsel %vm1317, %v1784, %v1976
        %v2025 = vsel %vm1317, %v1785, %v1977
        %v2026 = vsel %vm1318, %v1786, %v1978
        %v2027 = vsel %vm1318, %v1787, %v1979
        %v2028 = vsel %vm1318, %v1788, %v1980
        %v2029 = vsel %vm1318, %v1789, %v1981
        %v2030 = vsel %vm1318, %v1790, %v1982
        %v2031 = vsel %vm1318, %v1791, %v1983
        %v2032 = vsel %vm1318, %v1792, %v1984
        %v2033 = vsel %vm1318, %v1793, %v1985
        %v2034 = vsel %vm1318, %v1794, %v1986
        %v2035 = vsel %vm1318, %v1795, %v1987
        %v2036 = vsel %vm1318, %v1796, %v1988
        %v2037 = vsel %vm1318, %v1797, %v1989
        %v2038 = vsel %vm1319, %v1798, %v1990
        %v2039 = vsel %vm1319, %v1799, %v1991
        %v2040 = vsel %vm1319, %v1800, %v1992
        %v2041 = vsel %vm1319, %v1801, %v1993
        %v2042 = vsel %vm1319, %v1802, %v1994
        %v2043 = vsel %vm1319, %v1803, %v1995
        %v2044 = vsel %vm1319, %v1804, %v1996
        %v2045 = vsel %vm1319, %v1805, %v1997
        %v2046 = vsel %vm1319, %v1806, %v1998
        %v2047 = vsel %vm1319, %v1807, %v1999
        %v2048 = vsel %vm1319, %v1808, %v2000
        %v2049 = vsel %vm1319, %v1809, %v2001
        %v2050 = vsel %vm1320, %v1810, %v2002
        %v2051 = vsel %vm1320, %v1811, %v2003
        %v2052 = vsel %vm1320, %v1812, %v2004
        %v2053 = vsel %vm1320, %v1813, %v2005
        %v2054 = vsel %vm1320, %v1814, %v2006
        %v2055 = vsel %vm1320, %v1815, %v2007
        %v2056 = vsel %vm1320, %v1816, %v2008
        %v2057 = vsel %vm1320, %v1817, %v2009
        %v2058 = vsel %vm1320, %v1818, %v2010
        %v2059 = vsel %vm1320, %v1819, %v2011
        %v2060 = vsel %vm1320, %v1820, %v2012
        %v2061 = vsel %vm1320, %v1821, %v2013
        %2062 = vst [vmem:[#allocation3] sm:$0xff] %v2014
        %2063 = vst [vmem:[#allocation3 + $0x8] sm:$0xff] %v2015
        %2064 = vst [vmem:[#allocation3 + $0x10] sm:$0xff] %v2016
        %2065 = vst [vmem:[#allocation3 + $0x18] sm:$0xff] %v2017
        %2066 = vst [vmem:[#allocation3 + $0x20] sm:$0xff] %v2018
        %2067 = vst [vmem:[#allocation3 + $0x28] sm:$0xff] %v2019
        %2068 = vst [vmem:[#allocation3 + $0x30] sm:$0xff] %v2020
        %2069 = vst [vmem:[#allocation3 + $0x38] sm:$0xff] %v2021
        %2070 = vst [vmem:[#allocation3 + $0x40] sm:$0xff] %v2022
        %2071 = vst [vmem:[#allocation3 + $0x48] sm:$0xff] %v2023
        %2072 = vst [vmem:[#allocation3 + $0x50] sm:$0xff] %v2024
        %2073 = vst [vmem:[#allocation3 + $0x58] sm:$0xff] %v2025
        %2074 = vst [vmem:[#allocation3 + $0x60] sm:$0xff] %v2026
        %2075 = vst [vmem:[#allocation3 + $0x68] sm:$0xff] %v2027
        %2076 = vst [vmem:[#allocation3 + $0x70] sm:$0xff] %v2028
        %2077 = vst [vmem:[#allocation3 + $0x78] sm:$0xff] %v2029
        %2078 = vst [vmem:[#allocation3 + $0x80] sm:$0xff] %v2030
        %2079 = vst [vmem:[#allocation3 + $0x88] sm:$0xff] %v2031
        %2080 = vst [vmem:[#allocation3 + $0x90] sm:$0xff] %v2032
        %2081 = vst [vmem:[#allocation3 + $0x98] sm:$0xff] %v2033
        %2082 = vst [vmem:[#allocation3 + $0xa0] sm:$0xff] %v2034
        %2083 = vst [vmem:[#allocation3 + $0xa8] sm:$0xff] %v2035
        %2084 = vst [vmem:[#allocation3 + $0xb0] sm:$0xff] %v2036
        %2085 = vst [vmem:[#allocation3 + $0xb8] sm:$0xff] %v2037
        %2086 = vst [vmem:[#allocation3 + $0xc0] sm:$0xff] %v2038
        %2087 = vst [vmem:[#allocation3 + $0xc8] sm:$0xff] %v2039
        %2088 = vst [vmem:[#allocation3 + $0xd0] sm:$0xff] %v2040
        %2089 = vst [vmem:[#allocation3 + $0xd8] sm:$0xff] %v2041
        %2090 = vst [vmem:[#allocation3 + $0xe0] sm:$0xff] %v2042
        %2091 = vst [vmem:[#allocation3 + $0xe8] sm:$0xff] %v2043
        %2092 = vst [vmem:[#allocation3 + $0xf0] sm:$0xff] %v2044
        %2093 = vst [vmem:[#allocation3 + $0xf8] sm:$0xff] %v2045
        %2094 = vst [vmem:[#allocation3 + $0x100] sm:$0xff] %v2046
        %2095 = vst [vmem:[#allocation3 + $0x108] sm:$0xff] %v2047
        %2096 = vst [vmem:[#allocation3 + $0x110] sm:$0xff] %v2048
        %2097 = vst [vmem:[#allocation3 + $0x118] sm:$0xff] %v2049
        %2098 = vst [vmem:[#allocation3 + $0x120] sm:$0xff] %v2050
        %2099 = vst [vmem:[#allocation3 + $0x128] sm:$0xff] %v2051
        %2100 = vst [vmem:[#allocation3 + $0x130] sm:$0xff] %v2052
        %2101 = vst [vmem:[#allocation3 + $0x138] sm:$0xff] %v2053
        %2102 = vst [vmem:[#allocation3 + $0x140] sm:$0xff] %v2054
        %2103 = vst [vmem:[#allocation3 + $0x148] sm:$0xff] %v2055
        %2104 = vst [vmem:[#allocation3 + $0x150] sm:$0xff] %v2056
        %2105 = vst [vmem:[#allocation3 + $0x158] sm:$0xff] %v2057
        %2106 = vst [vmem:[#allocation3 + $0x160] sm:$0xff] %v2058
        %2107 = vst [vmem:[#allocation3 + $0x168] sm:$0xff] %v2059
        %2108 = vst [vmem:[#allocation3 + $0x170] sm:$0xff] %v2060
        %2109 = vst [vmem:[#allocation3 + $0x178] sm:$0xff] %v2061
        %s2110 = scalar_lea.vmem [#allocation3], 384
        %2111 = vst [vmem:[%s2110] ss:$8 sm:$0xf] 1.0
        %2112 = vst [vmem:[%s2110] ss:$8 sm:$0xf0] 1.0
        %s2113 = scalar_lea.vmem [#allocation3], 448
        %2114 = vst.msk [vmem:[%s2113] ss:$8 sm:$0xf] %vm1089, 1.0
        %2115 = vst.msk [vmem:[%s2113] ss:$8 sm:$0x0] %vm1089, 1.0
        %v2116 = vld [vmem:[%s2] sm:$0xf]
        %v2117 = vld [vmem:[%s2 + $0x4] sm:$0xf]
        %v2118 = vld [vmem:[%s2 + $0x8] sm:$0xf]
        %v2119 = vld [vmem:[%s2 + $0xc] sm:$0xf]
        %v2120 = vld [vmem:[#allocation3] sm:$0xff]
        %v2121 = vld [vmem:[#allocation3 + $0x8] sm:$0xff]
        %v2122 = vld [vmem:[#allocation3 + $0x10] sm:$0xff]
        %v2123 = vld [vmem:[#allocation3 + $0x18] sm:$0xff]
        %v2124 = vld [vmem:[#allocation3 + $0x20] sm:$0xff]
        %v2125 = vld [vmem:[#allocation3 + $0x28] sm:$0xff]
        %v2126 = vld [vmem:[#allocation3 + $0x30] sm:$0xff]
        %v2127 = vld [vmem:[#allocation3 + $0x38] sm:$0xff]
        %v2128 = vld [vmem:[#allocation3 + $0x40] sm:$0xff]
        %v2129 = vld [vmem:[#allocation3 + $0x48] sm:$0xff]
        %v2130 = vld [vmem:[#allocation3 + $0x50] sm:$0xff]
        %v2131 = vld [vmem:[#allocation3 + $0x58] sm:$0xff]
        %v2132 = vld [vmem:[#allocation3 + $0x60] sm:$0xff]
        %v2133 = vld [vmem:[#allocation3 + $0x68] sm:$0xff]
        %v2134 = vld [vmem:[#allocation3 + $0x70] sm:$0xff]
        %v2135 = vld [vmem:[#allocation3 + $0x78] sm:$0xff]
        %v2136 = vld [vmem:[#allocation3 + $0x80] sm:$0xff]
        %v2137 = vld [vmem:[#allocation3 + $0x88] sm:$0xff]
        %v2138 = vld [vmem:[#allocation3 + $0x90] sm:$0xff]
        %v2139 = vld [vmem:[#allocation3 + $0x98] sm:$0xff]
        %v2140 = vld [vmem:[#allocation3 + $0xa0] sm:$0xff]
        %v2141 = vld [vmem:[#allocation3 + $0xa8] sm:$0xff]
        %v2142 = vld [vmem:[#allocation3 + $0xb0] sm:$0xff]
        %v2143 = vld [vmem:[#allocation3 + $0xb8] sm:$0xff]
        %v2144 = vld [vmem:[#allocation3 + $0xc0] sm:$0xff]
        %v2145 = vld [vmem:[#allocation3 + $0xc8] sm:$0xff]
        %v2146 = vld [vmem:[#allocation3 + $0xd0] sm:$0xff]
        %v2147 = vld [vmem:[#allocation3 + $0xd8] sm:$0xff]
        %v2148 = vld [vmem:[#allocation3 + $0xe0] sm:$0xff]
        %v2149 = vld [vmem:[#allocation3 + $0xe8] sm:$0xff]
        %v2150 = vld [vmem:[#allocation3 + $0xf0] sm:$0xff]
        %v2151 = vld [vmem:[#allocation3 + $0xf8] sm:$0xff]
        %v2152 = vld [vmem:[#allocation3 + $0x100] sm:$0xff]
        %v2153 = vld [vmem:[#allocation3 + $0x108] sm:$0xff]
        %v2154 = vld [vmem:[#allocation3 + $0x110] sm:$0xff]
        %v2155 = vld [vmem:[#allocation3 + $0x118] sm:$0xff]
        %v2156 = vld [vmem:[#allocation3 + $0x120] sm:$0xff]
        %v2157 = vld [vmem:[#allocation3 + $0x128] sm:$0xff]
        %v2158 = vld [vmem:[#allocation3 + $0x130] sm:$0xff]
        %v2159 = vld [vmem:[#allocation3 + $0x138] sm:$0xff]
        %v2160 = vld [vmem:[#allocation3 + $0x140] sm:$0xff]
        %v2161 = vld [vmem:[#allocation3 + $0x148] sm:$0xff]
        %v2162 = vld [vmem:[#allocation3 + $0x150] sm:$0xff]
        %v2163 = vld [vmem:[#allocation3 + $0x158] sm:$0xff]
        %v2164 = vld [vmem:[#allocation3 + $0x160] sm:$0xff]
        %v2165 = vld [vmem:[#allocation3 + $0x168] sm:$0xff]
        %v2166 = vld [vmem:[#allocation3 + $0x170] sm:$0xff]
        %v2167 = vld [vmem:[#allocation3 + $0x178] sm:$0xff]
        %v2168 = vld [vmem:[#allocation3 + $0x180] sm:$0x1]
        %v2169 = vld [vmem:[#allocation3 + $0x188] sm:$0x1]
        %v2170 = vld [vmem:[#allocation3 + $0x190] sm:$0x1]
        %v2171 = vld [vmem:[#allocation3 + $0x198] sm:$0x1]
        %v2172 = vld [vmem:[#allocation3 + $0x1a0] sm:$0x1]
        %v2173 = vld [vmem:[#allocation3 + $0x1a8] sm:$0x1]
        %v2174 = vld [vmem:[#allocation3 + $0x1b0] sm:$0x1]
        %v2175 = vld [vmem:[#allocation3 + $0x1b8] sm:$0x1]
        %v2176 = vld [vmem:[#allocation3 + $0x1c0] sm:$0x1]
        %v2177 = vld [vmem:[#allocation3 + $0x1c8] sm:$0x1]
        %v2178 = vld [vmem:[#allocation3 + $0x1d0] sm:$0x1]
        %v2179 = vld [vmem:[#allocation3 + $0x1d8] sm:$0x1]
        %v2180 = vpack.c.bf16 %v2132, %v2120
        %v2181 = vpack.c.bf16 %v2133, %v2121
        %v2182 = vpack.c.bf16 %v2134, %v2122
        %v2183 = vpack.c.bf16 %v2135, %v2123
        %v2184 = vpack.c.bf16 %v2136, %v2124
        %v2185 = vpack.c.bf16 %v2137, %v2125
        %v2186 = vpack.c.bf16 %v2138, %v2126
        %v2187 = vpack.c.bf16 %v2139, %v2127
        %v2188 = vpack.c.bf16 %v2140, %v2128
        %v2189 = vpack.c.bf16 %v2141, %v2129
        %v2190 = vpack.c.bf16 %v2142, %v2130
        %v2191 = vpack.c.bf16 %v2143, %v2131
        %v2192 = vpack.c.bf16 %v2156, %v2144
        %v2193 = vpack.c.bf16 %v2157, %v2145
        %v2194 = vpack.c.bf16 %v2158, %v2146
        %v2195 = vpack.c.bf16 %v2159, %v2147
        %v2196 = vpack.c.bf16 %v2160, %v2148
        %v2197 = vpack.c.bf16 %v2161, %v2149
        %v2198 = vpack.c.bf16 %v2162, %v2150
        %v2199 = vpack.c.bf16 %v2163, %v2151
        %v2200 = vpack.c.bf16 %v2164, %v2152
        %v2201 = vpack.c.bf16 %v2165, %v2153
        %v2202 = vpack.c.bf16 %v2166, %v2154
        %v2203 = vpack.c.bf16 %v2167, %v2155
        %v2204 = vpack.c.bf16 %v2168, %v2168
        %v2205 = vpack.c.bf16 %v2169, %v2169
        %v2206 = vpack.c.bf16 %v2170, %v2170
        %v2207 = vpack.c.bf16 %v2171, %v2171
        %v2208 = vpack.c.bf16 %v2172, %v2172
        %v2209 = vpack.c.bf16 %v2173, %v2173
        %v2210 = vpack.c.bf16 %v2174, %v2174
        %v2211 = vpack.c.bf16 %v2175, %v2175
        %v2212 = vpack.c.bf16 %v2176, %v2176
        %v2213 = vpack.c.bf16 %v2177, %v2177
        %v2214 = vpack.c.bf16 %v2178, %v2178
        %v2215 = vpack.c.bf16 %v2179, %v2179
        %v2220 = vunpack.c.l.b16 %v2116
        %v2221 = vunpack.c.l.b16 %v2117
        %v2222 = vunpack.c.l.b16 %v2118
        %v2223 = vunpack.c.l.b16 %v2119
        %v2224 = vpack.c.b16 %v2221, %v2220
        %v2225 = vpack.c.b16 %v2223, %v2222
        %vm2226 = vcmask 269312
        %v2228 = vsel %vm2226, %v2224, 0
        %v2231 = vsel %vm2226, %v2225, 0
        %vm2233 = vcmask 1040384
        %v2234 = vsel 0, 4294967295, 65535
        %v2235 = vsel %vm2233, %v2234, 0
        %v2237 = vand.u32 %v2204, %v2235
        %v2240 = vand.u32 %v2205, %v2235
        %v2243 = vand.u32 %v2206, %v2235
        %v2246 = vand.u32 %v2207, %v2235
        %v2249 = vand.u32 %v2208, %v2235
        %v2252 = vand.u32 %v2209, %v2235
        %v2255 = vand.u32 %v2210, %v2235
        %v2258 = vand.u32 %v2211, %v2235
        %v2261 = vand.u32 %v2212, %v2235
        %v2264 = vand.u32 %v2213, %v2235
        %v2267 = vand.u32 %v2214, %v2235
        %v2270 = vand.u32 %v2215, %v2235
        %2272 = vmatprep.subr.bf16.mxu0 %v2181
        %2273 = vmatpush1.bf16.msra.mxu0 %v2180
        %2274 = vmatprep.subr.bf16.mxu0 %v2193
        %2275 = vmatpush1.bf16.msra.mxu0 %v2192
        %2276 = vmatprep.subr.bf16.mxu0 %v2240
        %2277 = vmatpush1.bf16.msra.mxu0 %v2237
        %2278 = vmatprep.subr.bf16.mxu0 0
        %2279 = vmatpush1.bf16.msra.mxu0 0
        %2280 = vmatprep.subr.bf16.mxu0 0
        %2281 = vmatpush1.bf16.msra.mxu0 0
        %2282 = vmatprep.subr.bf16.mxu0 0
        %2283 = vmatpush1.bf16.msra.mxu0 0
        %2284 = vmatprep.subr.bf16.mxu0 0
        %2285 = vmatpush1.bf16.msra.mxu0 0
        %2286 = vmatprep.subr.bf16.mxu0 0
        %2287 = vmatpush1.bf16.msra.mxu0 0
        %2288 = vmatprep.subr.bf16.mxu0 0
        %2289 = vmatpush1.bf16.msra.mxu0 0
        %2290 = vmatprep.subr.bf16.mxu0 0
        %2291 = vmatpush1.bf16.msra.mxu0 0
        %2292 = vmatprep.subr.bf16.mxu0 0
        %2293 = vmatpush1.bf16.msra.mxu0 0
        %2294 = vmatprep.subr.bf16.mxu0 0
        %2295 = vmatpush1.bf16.msra.mxu0 0
        %2296 = vmatprep.subr.bf16.mxu0 0
        %2297 = vmatpush1.bf16.msra.mxu0 0
        %2298 = vmatprep.subr.bf16.mxu0 0
        %2299 = vmatpush1.bf16.msra.mxu0 0
        %2300 = vmatprep.subr.bf16.mxu0 0
        %2301 = vmatpush1.bf16.msra.mxu0 0
        %2302 = vmatprep.subr.bf16.mxu0 0
        %2303 = vmatpush1.bf16.msra.mxu0 0
        %2304 = vmatprep.mubr.bf16.mxu0 0
        %2305 = vmatmul.mubr.bf16.gmra.mrb[0].mxu0 %v2228
        %v2306 = vpop.f32.mrb[0].mxu0
        %v2307 = vadd.f32 0.0, %v2306
        %v2308 = vpop.f32.mrb[0].mxu0
        %v2309 = vadd.f32 0.0, %v2308
        %v2310 = vpop.f32.mrb[0].mxu0
        %v2311 = vadd.f32 0.0, %v2310
        %v2312 = vpop.f32.mrb[0].mxu0
        %v2313 = vadd.f32 0.0, %v2312
        %2314 = vmatprep.mubr.bf16.mxu0 0
        %2315 = vmatmul.mubr.bf16.gmra.mrb[0].mxu0 %v2231
        %v2316 = vpop.f32.mrb[0].mxu0
        %v2317 = vadd.f32 0.0, %v2316
        %v2318 = vpop.f32.mrb[0].mxu0
        %v2319 = vadd.f32 0.0, %v2318
        %v2320 = vpop.f32.mrb[0].mxu0
        %v2321 = vadd.f32 0.0, %v2320
        %v2322 = vpop.f32.mrb[0].mxu0
        %v2323 = vadd.f32 0.0, %v2322
        %2324 = vdwg.mxu0
        %2325 = vmatprep.subr.bf16.mxu0 %v2183
        %2326 = vmatpush1.bf16.msra.mxu0 %v2182
        %2327 = vmatprep.subr.bf16.mxu0 %v2195
        %2328 = vmatpush1.bf16.msra.mxu0 %v2194
        %2329 = vmatprep.subr.bf16.mxu0 %v2246
        %2330 = vmatpush1.bf16.msra.mxu0 %v2243
        %2331 = vmatprep.subr.bf16.mxu0 0
        %2332 = vmatpush1.bf16.msra.mxu0 0
        %2333 = vmatprep.subr.bf16.mxu0 0
        %2334 = vmatpush1.bf16.msra.mxu0 0
        %2335 = vmatprep.subr.bf16.mxu0 0
        %2336 = vmatpush1.bf16.msra.mxu0 0
        %2337 = vmatprep.subr.bf16.mxu0 0
        %2338 = vmatpush1.bf16.msra.mxu0 0
        %2339 = vmatprep.subr.bf16.mxu0 0
        %2340 = vmatpush1.bf16.msra.mxu0 0
        %2341 = vmatprep.subr.bf16.mxu0 0
        %2342 = vmatpush1.bf16.msra.mxu0 0
        %2343 = vmatprep.subr.bf16.mxu0 0
        %2344 = vmatpush1.bf16.msra.mxu0 0
        %2345 = vmatprep.subr.bf16.mxu0 0
        %2346 = vmatpush1.bf16.msra.mxu0 0
        %2347 = vmatprep.subr.bf16.mxu0 0
        %2348 = vmatpush1.bf16.msra.mxu0 0
        %2349 = vmatprep.subr.bf16.mxu0 0
        %2350 = vmatpush1.bf16.msra.mxu0 0
        %2351 = vmatprep.subr.bf16.mxu0 0
        %2352 = vmatpush1.bf16.msra.mxu0 0
        %2353 = vmatprep.subr.bf16.mxu0 0
        %2354 = vmatpush1.bf16.msra.mxu0 0
        %2355 = vmatprep.subr.bf16.mxu0 0
        %2356 = vmatpush1.bf16.msra.mxu0 0
        %2357 = vmatprep.mubr.bf16.mxu0 0
        %2358 = vmatmul.mubr.bf16.gmra.mrb[0].mxu0 %v2228
        %v2359 = vpop.f32.mrb[0].mxu0
        %v2360 = vadd.f32 0.0, %v2359
        %v2361 = vpop.f32.mrb[0].mxu0
        %v2362 = vadd.f32 0.0, %v2361
        %v2363 = vpop.f32.mrb[0].mxu0
        %v2364 = vadd.f32 0.0, %v2363
        %v2365 = vpop.f32.mrb[0].mxu0
        %v2366 = vadd.f32 0.0, %v2365
        %2367 = vmatprep.mubr.bf16.mxu0 0
        %2368 = vmatmul.mubr.bf16.gmra.mrb[0].mxu0 %v2231
        %v2369 = vpop.f32.mrb[0].mxu0
        %v2370 = vadd.f32 0.0, %v2369
        %v2371 = vpop.f32.mrb[0].mxu0
        %v2372 = vadd.f32 0.0, %v2371
        %v2373 = vpop.f32.mrb[0].mxu0
        %v2374 = vadd.f32 0.0, %v2373
        %v2375 = vpop.f32.mrb[0].mxu0
        %v2376 = vadd.f32 0.0, %v2375
        %2377 = vdwg.mxu0
        %2378 = vmatprep.subr.bf16.mxu0 %v2185
        %2379 = vmatpush1.bf16.msra.mxu0 %v2184
        %2380 = vmatprep.subr.bf16.mxu0 %v2197
        %2381 = vmatpush1.bf16.msra.mxu0 %v2196
        %2382 = vmatprep.subr.bf16.mxu0 %v2252
        %2383 = vmatpush1.bf16.msra.mxu0 %v2249
        %2384 = vmatprep.subr.bf16.mxu0 0
        %2385 = vmatpush1.bf16.msra.mxu0 0
        %2386 = vmatprep.subr.bf16.mxu0 0
        %2387 = vmatpush1.bf16.msra.mxu0 0
        %2388 = vmatprep.subr.bf16.mxu0 0
        %2389 = vmatpush1.bf16.msra.mxu0 0
        %2390 = vmatprep.subr.bf16.mxu0 0
        %2391 = vmatpush1.bf16.msra.mxu0 0
        %2392 = vmatprep.subr.bf16.mxu0 0
        %2393 = vmatpush1.bf16.msra.mxu0 0
        %2394 = vmatprep.subr.bf16.mxu0 0
        %2395 = vmatpush1.bf16.msra.mxu0 0
        %2396 = vmatprep.subr.bf16.mxu0 0
        %2397 = vmatpush1.bf16.msra.mxu0 0
        %2398 = vmatprep.subr.bf16.mxu0 0
        %2399 = vmatpush1.bf16.msra.mxu0 0
        %2400 = vmatprep.subr.bf16.mxu0 0
        %2401 = vmatpush1.bf16.msra.mxu0 0
        %2402 = vmatprep.subr.bf16.mxu0 0
        %2403 = vmatpush1.bf16.msra.mxu0 0
        %2404 = vmatprep.subr.bf16.mxu0 0
        %2405 = vmatpush1.bf16.msra.mxu0 0
        %2406 = vmatprep.subr.bf16.mxu0 0
        %2407 = vmatpush1.bf16.msra.mxu0 0
        %2408 = vmatprep.subr.bf16.mxu0 0
        %2409 = vmatpush1.bf16.msra.mxu0 0
        %2410 = vmatprep.mubr.bf16.mxu0 0
        %2411 = vmatmul.mubr.bf16.gmra.mrb[0].mxu0 %v2228
        %v2412 = vpop.f32.mrb[0].mxu0
        %v2413 = vadd.f32 0.0, %v2412
        %v2414 = vpop.f32.mrb[0].mxu0
        %v2415 = vadd.f32 0.0, %v2414
        %v2416 = vpop.f32.mrb[0].mxu0
        %v2417 = vadd.f32 0.0, %v2416
        %v2418 = vpop.f32.mrb[0].mxu0
        %v2419 = vadd.f32 0.0, %v2418
        %2420 = vmatprep.mubr.bf16.mxu0 0
        %2421 = vmatmul.mubr.bf16.gmra.mrb[0].mxu0 %v2231
        %v2422 = vpop.f32.mrb[0].mxu0
        %v2423 = vadd.f32 0.0, %v2422
        %v2424 = vpop.f32.mrb[0].mxu0
        %v2425 = vadd.f32 0.0, %v2424
        %v2426 = vpop.f32.mrb[0].mxu0
        %v2427 = vadd.f32 0.0, %v2426
        %v2428 = vpop.f32.mrb[0].mxu0
        %v2429 = vadd.f32 0.0, %v2428
        %2430 = vdwg.mxu0
        %2431 = vmatprep.subr.bf16.mxu0 %v2187
        %2432 = vmatpush1.bf16.msra.mxu0 %v2186
        %2433 = vmatprep.subr.bf16.mxu0 %v2199
        %2434 = vmatpush1.bf16.msra.mxu0 %v2198
        %2435 = vmatprep.subr.bf16.mxu0 %v2258
        %2436 = vmatpush1.bf16.msra.mxu0 %v2255
        %2437 = vmatprep.subr.bf16.mxu0 0
        %2438 = vmatpush1.bf16.msra.mxu0 0
        %2439 = vmatprep.subr.bf16.mxu0 0
        %2440 = vmatpush1.bf16.msra.mxu0 0
        %2441 = vmatprep.subr.bf16.mxu0 0
        %2442 = vmatpush1.bf16.msra.mxu0 0
        %2443 = vmatprep.subr.bf16.mxu0 0
        %2444 = vmatpush1.bf16.msra.mxu0 0
        %2445 = vmatprep.subr.bf16.mxu0 0
        %2446 = vmatpush1.bf16.msra.mxu0 0
        %2447 = vmatprep.subr.bf16.mxu0 0
        %2448 = vmatpush1.bf16.msra.mxu0 0
        %2449 = vmatprep.subr.bf16.mxu0 0
        %2450 = vmatpush1.bf16.msra.mxu0 0
        %2451 = vmatprep.subr.bf16.mxu0 0
        %2452 = vmatpush1.bf16.msra.mxu0 0
        %2453 = vmatprep.subr.bf16.mxu0 0
        %2454 = vmatpush1.bf16.msra.mxu0 0
        %2455 = vmatprep.subr.bf16.mxu0 0
        %2456 = vmatpush1.bf16.msra.mxu0 0
        %2457 = vmatprep.subr.bf16.mxu0 0
        %2458 = vmatpush1.bf16.msra.mxu0 0
        %2459 = vmatprep.subr.bf16.mxu0 0
        %2460 = vmatpush1.bf16.msra.mxu0 0
        %2461 = vmatprep.subr.bf16.mxu0 0
        %2462 = vmatpush1.bf16.msra.mxu0 0
        %2463 = vmatprep.mubr.bf16.mxu0 0
        %2464 = vmatmul.mubr.bf16.gmra.mrb[0].mxu0 %v2228
        %v2465 = vpop.f32.mrb[0].mxu0
        %v2466 = vadd.f32 0.0, %v2465
        %v2467 = vpop.f32.mrb[0].mxu0
        %v2468 = vadd.f32 0.0, %v2467
        %v2469 = vpop.f32.mrb[0].mxu0
        %v2470 = vadd.f32 0.0, %v2469
        %v2471 = vpop.f32.mrb[0].mxu0
        %v2472 = vadd.f32 0.0, %v2471
        %2473 = vmatprep.mubr.bf16.mxu0 0
        %2474 = vmatmul.mubr.bf16.gmra.mrb[0].mxu0 %v2231
        %v2475 = vpop.f32.mrb[0].mxu0
        %v2476 = vadd.f32 0.0, %v2475
        %v2477 = vpop.f32.mrb[0].mxu0
        %v2478 = vadd.f32 0.0, %v2477
        %v2479 = vpop.f32.mrb[0].mxu0
        %v2480 = vadd.f32 0.0, %v2479
        %v2481 = vpop.f32.mrb[0].mxu0
        %v2482 = vadd.f32 0.0, %v2481
        %2483 = vdwg.mxu0
        %2484 = vmatprep.subr.bf16.mxu0 %v2189
        %2485 = vmatpush1.bf16.msra.mxu0 %v2188
        %2486 = vmatprep.subr.bf16.mxu0 %v2201
        %2487 = vmatpush1.bf16.msra.mxu0 %v2200
        %2488 = vmatprep.subr.bf16.mxu0 %v2264
        %2489 = vmatpush1.bf16.msra.mxu0 %v2261
        %2490 = vmatprep.subr.bf16.mxu0 0
        %2491 = vmatpush1.bf16.msra.mxu0 0
        %2492 = vmatprep.subr.bf16.mxu0 0
        %2493 = vmatpush1.bf16.msra.mxu0 0
        %2494 = vmatprep.subr.bf16.mxu0 0
        %2495 = vmatpush1.bf16.msra.mxu0 0
        %2496 = vmatprep.subr.bf16.mxu0 0
        %2497 = vmatpush1.bf16.msra.mxu0 0
        %2498 = vmatprep.subr.bf16.mxu0 0
        %2499 = vmatpush1.bf16.msra.mxu0 0
        %2500 = vmatprep.subr.bf16.mxu0 0
        %2501 = vmatpush1.bf16.msra.mxu0 0
        %2502 = vmatprep.subr.bf16.mxu0 0
        %2503 = vmatpush1.bf16.msra.mxu0 0
        %2504 = vmatprep.subr.bf16.mxu0 0
        %2505 = vmatpush1.bf16.msra.mxu0 0
        %2506 = vmatprep.subr.bf16.mxu0 0
        %2507 = vmatpush1.bf16.msra.mxu0 0
        %2508 = vmatprep.subr.bf16.mxu0 0
        %2509 = vmatpush1.bf16.msra.mxu0 0
        %2510 = vmatprep.subr.bf16.mxu0 0
        %2511 = vmatpush1.bf16.msra.mxu0 0
        %2512 = vmatprep.subr.bf16.mxu0 0
        %2513 = vmatpush1.bf16.msra.mxu0 0
        %2514 = vmatprep.subr.bf16.mxu0 0
        %2515 = vmatpush1.bf16.msra.mxu0 0
        %2516 = vmatprep.mubr.bf16.mxu0 0
        %2517 = vmatmul.mubr.bf16.gmra.mrb[0].mxu0 %v2228
        %v2518 = vpop.f32.mrb[0].mxu0
        %v2519 = vadd.f32 0.0, %v2518
        %v2520 = vpop.f32.mrb[0].mxu0
        %v2521 = vadd.f32 0.0, %v2520
        %v2522 = vpop.f32.mrb[0].mxu0
        %v2523 = vadd.f32 0.0, %v2522
        %v2524 = vpop.f32.mrb[0].mxu0
        %v2525 = vadd.f32 0.0, %v2524
        %2526 = vmatprep.mubr.bf16.mxu0 0
        %2527 = vmatmul.mubr.bf16.gmra.mrb[0].mxu0 %v2231
        %v2528 = vpop.f32.mrb[0].mxu0
        %v2529 = vadd.f32 0.0, %v2528
        %v2530 = vpop.f32.mrb[0].mxu0
        %v2531 = vadd.f32 0.0, %v2530
        %v2532 = vpop.f32.mrb[0].mxu0
        %v2533 = vadd.f32 0.0, %v2532
        %v2534 = vpop.f32.mrb[0].mxu0
        %v2535 = vadd.f32 0.0, %v2534
        %2536 = vdwg.mxu0
        %2537 = vmatprep.subr.bf16.mxu0 %v2191
        %2538 = vmatpush1.bf16.msra.mxu0 %v2190
        %2539 = vmatprep.subr.bf16.mxu0 %v2203
        %2540 = vmatpush1.bf16.msra.mxu0 %v2202
        %2541 = vmatprep.subr.bf16.mxu0 %v2270
        %2542 = vmatpush1.bf16.msra.mxu0 %v2267
        %2543 = vmatprep.subr.bf16.mxu0 0
        %2544 = vmatpush1.bf16.msra.mxu0 0
        %2545 = vmatprep.subr.bf16.mxu0 0
        %2546 = vmatpush1.bf16.msra.mxu0 0
        %2547 = vmatprep.subr.bf16.mxu0 0
        %2548 = vmatpush1.bf16.msra.mxu0 0
        %2549 = vmatprep.subr.bf16.mxu0 0
        %2550 = vmatpush1.bf16.msra.mxu0 0
        %2551 = vmatprep.subr.bf16.mxu0 0
        %2552 = vmatpush1.bf16.msra.mxu0 0
        %2553 = vmatprep.subr.bf16.mxu0 0
        %2554 = vmatpush1.bf16.msra.mxu0 0
        %2555 = vmatprep.subr.bf16.mxu0 0
        %2556 = vmatpush1.bf16.msra.mxu0 0
        %2557 = vmatprep.subr.bf16.mxu0 0
        %2558 = vmatpush1.bf16.msra.mxu0 0
        %2559 = vmatprep.subr.bf16.mxu0 0
        %2560 = vmatpush1.bf16.msra.mxu0 0
        %2561 = vmatprep.subr.bf16.mxu0 0
        %2562 = vmatpush1.bf16.msra.mxu0 0
        %2563 = vmatprep.subr.bf16.mxu0 0
        %2564 = vmatpush1.bf16.msra.mxu0 0
        %2565 = vmatprep.subr.bf16.mxu0 0
        %2566 = vmatpush1.bf16.msra.mxu0 0
        %2567 = vmatprep.subr.bf16.mxu0 0
        %2568 = vmatpush1.bf16.msra.mxu0 0
        %2569 = vmatprep.mubr.bf16.mxu0 0
        %2570 = vmatmul.mubr.bf16.gmra.mrb[0].mxu0 %v2228
        %v2571 = vpop.f32.mrb[0].mxu0
        %v2572 = vadd.f32 0.0, %v2571
        %v2573 = vpop.f32.mrb[0].mxu0
        %v2574 = vadd.f32 0.0, %v2573
        %v2575 = vpop.f32.mrb[0].mxu0
        %v2576 = vadd.f32 0.0, %v2575
        %v2577 = vpop.f32.mrb[0].mxu0
        %v2578 = vadd.f32 0.0, %v2577
        %2579 = vmatprep.mubr.bf16.mxu0 0
        %2580 = vmatmul.mubr.bf16.gmra.mrb[0].mxu0 %v2231
        %v2581 = vpop.f32.mrb[0].mxu0
        %v2582 = vadd.f32 0.0, %v2581
        %v2583 = vpop.f32.mrb[0].mxu0
        %v2584 = vadd.f32 0.0, %v2583
        %v2585 = vpop.f32.mrb[0].mxu0
        %v2586 = vadd.f32 0.0, %v2585
        %v2587 = vpop.f32.mrb[0].mxu0
        %v2588 = vadd.f32 0.0, %v2587
        %2589 = vdwg.mxu0
        %v2590 = vmax.f32 %v2307, 0.0
        %v2591 = vmax.f32 %v2309, 0.0
        %v2592 = vmax.f32 %v2360, 0.0
        %v2593 = vmax.f32 %v2362, 0.0
        %v2594 = vmax.f32 %v2413, 0.0
        %v2595 = vmax.f32 %v2415, 0.0
        %v2596 = vmax.f32 %v2466, 0.0
        %v2597 = vmax.f32 %v2468, 0.0
        %v2598 = vmax.f32 %v2519, 0.0
        %v2599 = vmax.f32 %v2521, 0.0
        %v2600 = vmax.f32 %v2572, 0.0
        %v2601 = vmax.f32 %v2574, 0.0
        %v2602 = vmax.f32 %v2311, 0.0
        %v2603 = vmax.f32 %v2313, 0.0
        %v2604 = vmax.f32 %v2364, 0.0
        %v2605 = vmax.f32 %v2366, 0.0
        %v2606 = vmax.f32 %v2417, 0.0
        %v2607 = vmax.f32 %v2419, 0.0
        %v2608 = vmax.f32 %v2470, 0.0
        %v2609 = vmax.f32 %v2472, 0.0
        %v2610 = vmax.f32 %v2523, 0.0
        %v2611 = vmax.f32 %v2525, 0.0
        %v2612 = vmax.f32 %v2576, 0.0
        %v2613 = vmax.f32 %v2578, 0.0
        %v2614 = vmax.f32 %v2317, 0.0
        %v2615 = vmax.f32 %v2319, 0.0
        %v2616 = vmax.f32 %v2370, 0.0
        %v2617 = vmax.f32 %v2372, 0.0
        %v2618 = vmax.f32 %v2423, 0.0
        %v2619 = vmax.f32 %v2425, 0.0
        %v2620 = vmax.f32 %v2476, 0.0
        %v2621 = vmax.f32 %v2478, 0.0
        %v2622 = vmax.f32 %v2529, 0.0
        %v2623 = vmax.f32 %v2531, 0.0
        %v2624 = vmax.f32 %v2582, 0.0
        %v2625 = vmax.f32 %v2584, 0.0
        %v2626 = vmax.f32 %v2321, 0.0
        %v2627 = vmax.f32 %v2323, 0.0
        %v2628 = vmax.f32 %v2374, 0.0
        %v2629 = vmax.f32 %v2376, 0.0
        %v2630 = vmax.f32 %v2427, 0.0
        %v2631 = vmax.f32 %v2429, 0.0
        %v2632 = vmax.f32 %v2480, 0.0
        %v2633 = vmax.f32 %v2482, 0.0
        %v2634 = vmax.f32 %v2533, 0.0
        %v2635 = vmax.f32 %v2535, 0.0
        %v2636 = vmax.f32 %v2586, 0.0
        %v2637 = vmax.f32 %v2588, 0.0
        %v2638 = vmin.f32 %v2307, 0.0
        %v2639 = vmin.f32 %v2309, 0.0
        %v2640 = vmin.f32 %v2360, 0.0
        %v2641 = vmin.f32 %v2362, 0.0
        %v2642 = vmin.f32 %v2413, 0.0
        %v2643 = vmin.f32 %v2415, 0.0
        %v2644 = vmin.f32 %v2466, 0.0
        %v2645 = vmin.f32 %v2468, 0.0
        %v2646 = vmin.f32 %v2519, 0.0
        %v2647 = vmin.f32 %v2521, 0.0
        %v2648 = vmin.f32 %v2572, 0.0
        %v2649 = vmin.f32 %v2574, 0.0
        %v2650 = vmin.f32 %v2311, 0.0
        %v2651 = vmin.f32 %v2313, 0.0
        %v2652 = vmin.f32 %v2364, 0.0
        %v2653 = vmin.f32 %v2366, 0.0
        %v2654 = vmin.f32 %v2417, 0.0
        %v2655 = vmin.f32 %v2419, 0.0
        %v2656 = vmin.f32 %v2470, 0.0
        %v2657 = vmin.f32 %v2472, 0.0
        %v2658 = vmin.f32 %v2523, 0.0
        %v2659 = vmin.f32 %v2525, 0.0
        %v2660 = vmin.f32 %v2576, 0.0
        %v2661 = vmin.f32 %v2578, 0.0
        %v2662 = vmin.f32 %v2317, 0.0
        %v2663 = vmin.f32 %v2319, 0.0
        %v2664 = vmin.f32 %v2370, 0.0
        %v2665 = vmin.f32 %v2372, 0.0
        %v2666 = vmin.f32 %v2423, 0.0
        %v2667 = vmin.f32 %v2425, 0.0
        %v2668 = vmin.f32 %v2476, 0.0
        %v2669 = vmin.f32 %v2478, 0.0
        %v2670 = vmin.f32 %v2529, 0.0
        %v2671 = vmin.f32 %v2531, 0.0
        %v2672 = vmin.f32 %v2582, 0.0
        %v2673 = vmin.f32 %v2584, 0.0
        %v2674 = vmin.f32 %v2321, 0.0
        %v2675 = vmin.f32 %v2323, 0.0
        %v2676 = vmin.f32 %v2374, 0.0
        %v2677 = vmin.f32 %v2376, 0.0
        %v2678 = vmin.f32 %v2427, 0.0
        %v2679 = vmin.f32 %v2429, 0.0
        %v2680 = vmin.f32 %v2480, 0.0
        %v2681 = vmin.f32 %v2482, 0.0
        %v2682 = vmin.f32 %v2533, 0.0
        %v2683 = vmin.f32 %v2535, 0.0
        %v2684 = vmin.f32 %v2586, 0.0
        %v2685 = vmin.f32 %v2588, 0.0
        %v2686 = vmax.f32 %v2307, -1.0
        %v2687 = vmax.f32 %v2309, -1.0
        %v2688 = vmax.f32 %v2360, -1.0
        %v2689 = vmax.f32 %v2362, -1.0
        %v2690 = vmax.f32 %v2413, -1.0
        %v2691 = vmax.f32 %v2415, -1.0
        %v2692 = vmax.f32 %v2466, -1.0
        %v2693 = vmax.f32 %v2468, -1.0
        %v2694 = vmax.f32 %v2519, -1.0
        %v2695 = vmax.f32 %v2521, -1.0
        %v2696 = vmax.f32 %v2572, -1.0
        %v2697 = vmax.f32 %v2574, -1.0
        %v2698 = vmax.f32 %v2311, -1.0
        %v2699 = vmax.f32 %v2313, -1.0
        %v2700 = vmax.f32 %v2364, -1.0
        %v2701 = vmax.f32 %v2366, -1.0
        %v2702 = vmax.f32 %v2417, -1.0
        %v2703 = vmax.f32 %v2419, -1.0
        %v2704 = vmax.f32 %v2470, -1.0
        %v2705 = vmax.f32 %v2472, -1.0
        %v2706 = vmax.f32 %v2523, -1.0
        %v2707 = vmax.f32 %v2525, -1.0
        %v2708 = vmax.f32 %v2576, -1.0
        %v2709 = vmax.f32 %v2578, -1.0
        %v2710 = vmax.f32 %v2317, -1.0
        %v2711 = vmax.f32 %v2319, -1.0
        %v2712 = vmax.f32 %v2370, -1.0
        %v2713 = vmax.f32 %v2372, -1.0
        %v2714 = vmax.f32 %v2423, -1.0
        %v2715 = vmax.f32 %v2425, -1.0
        %v2716 = vmax.f32 %v2476, -1.0
        %v2717 = vmax.f32 %v2478, -1.0
        %v2718 = vmax.f32 %v2529, -1.0
        %v2719 = vmax.f32 %v2531, -1.0
        %v2720 = vmax.f32 %v2582, -1.0
        %v2721 = vmax.f32 %v2584, -1.0
        %v2722 = vmax.f32 %v2321, -1.0
        %v2723 = vmax.f32 %v2323, -1.0
        %v2724 = vmax.f32 %v2374, -1.0
        %v2725 = vmax.f32 %v2376, -1.0
        %v2726 = vmax.f32 %v2427, -1.0
        %v2727 = vmax.f32 %v2429, -1.0
        %v2728 = vmax.f32 %v2480, -1.0
        %v2729 = vmax.f32 %v2482, -1.0
        %v2730 = vmax.f32 %v2533, -1.0
        %v2731 = vmax.f32 %v2535, -1.0
        %v2732 = vmax.f32 %v2586, -1.0
        %v2733 = vmax.f32 %v2588, -1.0
        %v2734 = vmin.f32 %v2686, 1.0
        %v2735 = vmin.f32 %v2687, 1.0
        %v2736 = vmin.f32 %v2688, 1.0
        %v2737 = vmin.f32 %v2689, 1.0
        %v2738 = vmin.f32 %v2690, 1.0
        %v2739 = vmin.f32 %v2691, 1.0
        %v2740 = vmin.f32 %v2692, 1.0
        %v2741 = vmin.f32 %v2693, 1.0
        %v2742 = vmin.f32 %v2694, 1.0
        %v2743 = vmin.f32 %v2695, 1.0
        %v2744 = vmin.f32 %v2696, 1.0
        %v2745 = vmin.f32 %v2697, 1.0
        %v2746 = vmin.f32 %v2698, 1.0
        %v2747 = vmin.f32 %v2699, 1.0
        %v2748 = vmin.f32 %v2700, 1.0
        %v2749 = vmin.f32 %v2701, 1.0
        %v2750 = vmin.f32 %v2702, 1.0
        %v2751 = vmin.f32 %v2703, 1.0
        %v2752 = vmin.f32 %v2704, 1.0
        %v2753 = vmin.f32 %v2705, 1.0
        %v2754 = vmin.f32 %v2706, 1.0
        %v2755 = vmin.f32 %v2707, 1.0
        %v2756 = vmin.f32 %v2708, 1.0
        %v2757 = vmin.f32 %v2709, 1.0
        %v2758 = vmin.f32 %v2710, 1.0
        %v2759 = vmin.f32 %v2711, 1.0
        %v2760 = vmin.f32 %v2712, 1.0
        %v2761 = vmin.f32 %v2713, 1.0
        %v2762 = vmin.f32 %v2714, 1.0
        %v2763 = vmin.f32 %v2715, 1.0
        %v2764 = vmin.f32 %v2716, 1.0
        %v2765 = vmin.f32 %v2717, 1.0
        %v2766 = vmin.f32 %v2718, 1.0
        %v2767 = vmin.f32 %v2719, 1.0
        %v2768 = vmin.f32 %v2720, 1.0
        %v2769 = vmin.f32 %v2721, 1.0
        %v2770 = vmin.f32 %v2722, 1.0
        %v2771 = vmin.f32 %v2723, 1.0
        %v2772 = vmin.f32 %v2724, 1.0
        %v2773 = vmin.f32 %v2725, 1.0
        %v2774 = vmin.f32 %v2726, 1.0
        %v2775 = vmin.f32 %v2727, 1.0
        %v2776 = vmin.f32 %v2728, 1.0
        %v2777 = vmin.f32 %v2729, 1.0
        %v2778 = vmin.f32 %v2730, 1.0
        %v2779 = vmin.f32 %v2731, 1.0
        %v2780 = vmin.f32 %v2732, 1.0
        %v2781 = vmin.f32 %v2733, 1.0
        %v2782 = vsel %vm1321, %v2638, %v2734
        %v2783 = vsel %vm1321, %v2639, %v2735
        %v2784 = vsel %vm1321, %v2640, %v2736
        %v2785 = vsel %vm1321, %v2641, %v2737
        %v2786 = vsel %vm1321, %v2642, %v2738
        %v2787 = vsel %vm1321, %v2643, %v2739
        %v2788 = vsel %vm1321, %v2644, %v2740
        %v2789 = vsel %vm1321, %v2645, %v2741
        %v2790 = vsel %vm1321, %v2646, %v2742
        %v2791 = vsel %vm1321, %v2647, %v2743
        %v2792 = vsel %vm1321, %v2648, %v2744
        %v2793 = vsel %vm1321, %v2649, %v2745
        %v2794 = vsel %vm1322, %v2650, %v2746
        %v2795 = vsel %vm1322, %v2651, %v2747
        %v2796 = vsel %vm1322, %v2652, %v2748
        %v2797 = vsel %vm1322, %v2653, %v2749
        %v2798 = vsel %vm1322, %v2654, %v2750
        %v2799 = vsel %vm1322, %v2655, %v2751
        %v2800 = vsel %vm1322, %v2656, %v2752
        %v2801 = vsel %vm1322, %v2657, %v2753
        %v2802 = vsel %vm1322, %v2658, %v2754
        %v2803 = vsel %vm1322, %v2659, %v2755
        %v2804 = vsel %vm1322, %v2660, %v2756
        %v2805 = vsel %vm1322, %v2661, %v2757
        %v2806 = vsel %vm1323, %v2662, %v2758
        %v2807 = vsel %vm1323, %v2663, %v2759
        %v2808 = vsel %vm1323, %v2664, %v2760
        %v2809 = vsel %vm1323, %v2665, %v2761
        %v2810 = vsel %vm1323, %v2666, %v2762
        %v2811 = vsel %vm1323, %v2667, %v2763
        %v2812 = vsel %vm1323, %v2668, %v2764
        %v2813 = vsel %vm1323, %v2669, %v2765
        %v2814 = vsel %vm1323, %v2670, %v2766
        %v2815 = vsel %vm1323, %v2671, %v2767
        %v2816 = vsel %vm1323, %v2672, %v2768
        %v2817 = vsel %vm1323, %v2673, %v2769
        %v2818 = vsel %vm1324, %v2674, %v2770
        %v2819 = vsel %vm1324, %v2675, %v2771
        %v2820 = vsel %vm1324, %v2676, %v2772
        %v2821 = vsel %vm1324, %v2677, %v2773
        %v2822 = vsel %vm1324, %v2678, %v2774
        %v2823 = vsel %vm1324, %v2679, %v2775
        %v2824 = vsel %vm1324, %v2680, %v2776
        %v2825 = vsel %vm1324, %v2681, %v2777
        %v2826 = vsel %vm1324, %v2682, %v2778
        %v2827 = vsel %vm1324, %v2683, %v2779
        %v2828 = vsel %vm1324, %v2684, %v2780
        %v2829 = vsel %vm1324, %v2685, %v2781
        %v2830 = vsel %vm1317, %v2590, %v2782
        %v2831 = vsel %vm1317, %v2591, %v2783
        %v2832 = vsel %vm1317, %v2592, %v2784
        %v2833 = vsel %vm1317, %v2593, %v2785
        %v2834 = vsel %vm1317, %v2594, %v2786
        %v2835 = vsel %vm1317, %v2595, %v2787
        %v2836 = vsel %vm1317, %v2596, %v2788
        %v2837 = vsel %vm1317, %v2597, %v2789
        %v2838 = vsel %vm1317, %v2598, %v2790
        %v2839 = vsel %vm1317, %v2599, %v2791
        %v2840 = vsel %vm1317, %v2600, %v2792
        %v2841 = vsel %vm1317, %v2601, %v2793
        %v2842 = vsel %vm1318, %v2602, %v2794
        %v2843 = vsel %vm1318, %v2603, %v2795
        %v2844 = vsel %vm1318, %v2604, %v2796
        %v2845 = vsel %vm1318, %v2605, %v2797
        %v2846 = vsel %vm1318, %v2606, %v2798
        %v2847 = vsel %vm1318, %v2607, %v2799
        %v2848 = vsel %vm1318, %v2608, %v2800
        %v2849 = vsel %vm1318, %v2609, %v2801
        %v2850 = vsel %vm1318, %v2610, %v2802
        %v2851 = vsel %vm1318, %v2611, %v2803
        %v2852 = vsel %vm1318, %v2612, %v2804
        %v2853 = vsel %vm1318, %v2613, %v2805
        %v2854 = vsel %vm1319, %v2614, %v2806
        %v2855 = vsel %vm1319, %v2615, %v2807
        %v2856 = vsel %vm1319, %v2616, %v2808
        %v2857 = vsel %vm1319, %v2617, %v2809
        %v2858 = vsel %vm1319, %v2618, %v2810
        %v2859 = vsel %vm1319, %v2619, %v2811
        %v2860 = vsel %vm1319, %v2620, %v2812
        %v2861 = vsel %vm1319, %v2621, %v2813
        %v2862 = vsel %vm1319, %v2622, %v2814
        %v2863 = vsel %vm1319, %v2623, %v2815
        %v2864 = vsel %vm1319, %v2624, %v2816
        %v2865 = vsel %vm1319, %v2625, %v2817
        %v2866 = vsel %vm1320, %v2626, %v2818
        %v2867 = vsel %vm1320, %v2627, %v2819
        %v2868 = vsel %vm1320, %v2628, %v2820
        %v2869 = vsel %vm1320, %v2629, %v2821
        %v2870 = vsel %vm1320, %v2630, %v2822
        %v2871 = vsel %vm1320, %v2631, %v2823
        %v2872 = vsel %vm1320, %v2632, %v2824
        %v2873 = vsel %vm1320, %v2633, %v2825
        %v2874 = vsel %vm1320, %v2634, %v2826
        %v2875 = vsel %vm1320, %v2635, %v2827
        %v2876 = vsel %vm1320, %v2636, %v2828
        %v2877 = vsel %vm1320, %v2637, %v2829
        %v2878 = vld [vmem:[%s3] sm:$0xff]
        %v2879 = vld [vmem:[%s3 + $0x8] sm:$0xff]
        %v2880 = vld [vmem:[%s3 + $0x10] sm:$0xff]
        %v2881 = vld [vmem:[%s3 + $0x18] sm:$0xff]
        %2883 = vset.pattern.permute.xlu0 0
        %2884 = vperm.xlu0 %2883, %v2878
        %v2885 = vpop.permute.xlu0 %2884
        %2888 = vset.pattern.permute.xlu0 0
        %2889 = vperm.xlu0 %2888, %v2879
        %v2890 = vpop.permute.xlu0 %2889
        %2893 = vset.pattern.permute.xlu0 0
        %2894 = vperm.xlu0 %2893, %v2880
        %v2895 = vpop.permute.xlu0 %2894
        %2898 = vset.pattern.permute.xlu0 0
        %2899 = vperm.xlu0 %2898, %v2881
        %v2900 = vpop.permute.xlu0 %2899
        %v2902 = vmul.f32 %v2885, %v2830
        %v2903 = vmul.f32 %v2885, %v2831
        %v2904 = vmul.f32 %v2885, %v2832
        %v2905 = vmul.f32 %v2885, %v2833
        %v2906 = vmul.f32 %v2885, %v2834
        %v2907 = vmul.f32 %v2885, %v2835
        %v2908 = vmul.f32 %v2885, %v2836
        %v2909 = vmul.f32 %v2885, %v2837
        %v2910 = vmul.f32 %v2885, %v2838
        %v2911 = vmul.f32 %v2885, %v2839
        %v2912 = vmul.f32 %v2885, %v2840
        %v2913 = vmul.f32 %v2885, %v2841
        %v2914 = vmul.f32 %v2890, %v2842
        %v2915 = vmul.f32 %v2890, %v2843
        %v2916 = vmul.f32 %v2890, %v2844
        %v2917 = vmul.f32 %v2890, %v2845
        %v2918 = vmul.f32 %v2890, %v2846
        %v2919 = vmul.f32 %v2890, %v2847
        %v2920 = vmul.f32 %v2890, %v2848
        %v2921 = vmul.f32 %v2890, %v2849
        %v2922 = vmul.f32 %v2890, %v2850
        %v2923 = vmul.f32 %v2890, %v2851
        %v2924 = vmul.f32 %v2890, %v2852
        %v2925 = vmul.f32 %v2890, %v2853
        %v2926 = vmul.f32 %v2895, %v2854
        %v2927 = vmul.f32 %v2895, %v2855
        %v2928 = vmul.f32 %v2895, %v2856
        %v2929 = vmul.f32 %v2895, %v2857
        %v2930 = vmul.f32 %v2895, %v2858
        %v2931 = vmul.f32 %v2895, %v2859
        %v2932 = vmul.f32 %v2895, %v2860
        %v2933 = vmul.f32 %v2895, %v2861
        %v2934 = vmul.f32 %v2895, %v2862
        %v2935 = vmul.f32 %v2895, %v2863
        %v2936 = vmul.f32 %v2895, %v2864
        %v2937 = vmul.f32 %v2895, %v2865
        %v2938 = vmul.f32 %v2900, %v2866
        %v2939 = vmul.f32 %v2900, %v2867
        %v2940 = vmul.f32 %v2900, %v2868
        %v2941 = vmul.f32 %v2900, %v2869
        %v2942 = vmul.f32 %v2900, %v2870
        %v2943 = vmul.f32 %v2900, %v2871
        %v2944 = vmul.f32 %v2900, %v2872
        %v2945 = vmul.f32 %v2900, %v2873
        %v2946 = vmul.f32 %v2900, %v2874
        %v2947 = vmul.f32 %v2900, %v2875
        %v2948 = vmul.f32 %v2900, %v2876
        %v2949 = vmul.f32 %v2900, %v2877
        %v2950 = vadd.f32 %v2902, %v2914
        %v2951 = vadd.f32 %v2950, %v2926
        %v2952 = vadd.f32 %v2951, %v2938
        %v2953 = vrot.slane %v2952, 4
        %v2954 = vadd.f32 %v2952, %v2953
        %v2955 = vrot.slane %v2954, 2
        %v2956 = vadd.f32 %v2954, %v2955
        %v2957 = vrot.slane %v2956, 1
        %v2958 = vadd.f32 %v2956, %v2957
        %v2959 = vadd.f32 %v2903, %v2915
        %v2960 = vadd.f32 %v2959, %v2927
        %v2961 = vadd.f32 %v2960, %v2939
        %v2962 = vrot.slane %v2961, 4
        %v2963 = vadd.f32 %v2961, %v2962
        %v2964 = vrot.slane %v2963, 2
        %v2965 = vadd.f32 %v2963, %v2964
        %v2966 = vrot.slane %v2965, 1
        %v2967 = vadd.f32 %v2965, %v2966
        %v2968 = vadd.f32 %v2904, %v2916
        %v2969 = vadd.f32 %v2968, %v2928
        %v2970 = vadd.f32 %v2969, %v2940
        %v2971 = vrot.slane %v2970, 4
        %v2972 = vadd.f32 %v2970, %v2971
        %v2973 = vrot.slane %v2972, 2
        %v2974 = vadd.f32 %v2972, %v2973
        %v2975 = vrot.slane %v2974, 1
        %v2976 = vadd.f32 %v2974, %v2975
        %v2977 = vadd.f32 %v2905, %v2917
        %v2978 = vadd.f32 %v2977, %v2929
        %v2979 = vadd.f32 %v2978, %v2941
        %v2980 = vrot.slane %v2979, 4
        %v2981 = vadd.f32 %v2979, %v2980
        %v2982 = vrot.slane %v2981, 2
        %v2983 = vadd.f32 %v2981, %v2982
        %v2984 = vrot.slane %v2983, 1
        %v2985 = vadd.f32 %v2983, %v2984
        %v2986 = vadd.f32 %v2906, %v2918
        %v2987 = vadd.f32 %v2986, %v2930
        %v2988 = vadd.f32 %v2987, %v2942
        %v2989 = vrot.slane %v2988, 4
        %v2990 = vadd.f32 %v2988, %v2989
        %v2991 = vrot.slane %v2990, 2
        %v2992 = vadd.f32 %v2990, %v2991
        %v2993 = vrot.slane %v2992, 1
        %v2994 = vadd.f32 %v2992, %v2993
        %v2995 = vadd.f32 %v2907, %v2919
        %v2996 = vadd.f32 %v2995, %v2931
        %v2997 = vadd.f32 %v2996, %v2943
        %v2998 = vrot.slane %v2997, 4
        %v2999 = vadd.f32 %v2997, %v2998
        %v3000 = vrot.slane %v2999, 2
        %v3001 = vadd.f32 %v2999, %v3000
        %v3002 = vrot.slane %v3001, 1
        %v3003 = vadd.f32 %v3001, %v3002
        %v3004 = vadd.f32 %v2908, %v2920
        %v3005 = vadd.f32 %v3004, %v2932
        %v3006 = vadd.f32 %v3005, %v2944
        %v3007 = vrot.slane %v3006, 4
        %v3008 = vadd.f32 %v3006, %v3007
        %v3009 = vrot.slane %v3008, 2
        %v3010 = vadd.f32 %v3008, %v3009
        %v3011 = vrot.slane %v3010, 1
        %v3012 = vadd.f32 %v3010, %v3011
        %v3013 = vadd.f32 %v2909, %v2921
        %v3014 = vadd.f32 %v3013, %v2933
        %v3015 = vadd.f32 %v3014, %v2945
        %v3016 = vrot.slane %v3015, 4
        %v3017 = vadd.f32 %v3015, %v3016
        %v3018 = vrot.slane %v3017, 2
        %v3019 = vadd.f32 %v3017, %v3018
        %v3020 = vrot.slane %v3019, 1
        %v3021 = vadd.f32 %v3019, %v3020
        %v3022 = vadd.f32 %v2910, %v2922
        %v3023 = vadd.f32 %v3022, %v2934
        %v3024 = vadd.f32 %v3023, %v2946
        %v3025 = vrot.slane %v3024, 4
        %v3026 = vadd.f32 %v3024, %v3025
        %v3027 = vrot.slane %v3026, 2
        %v3028 = vadd.f32 %v3026, %v3027
        %v3029 = vrot.slane %v3028, 1
        %v3030 = vadd.f32 %v3028, %v3029
        %v3031 = vadd.f32 %v2911, %v2923
        %v3032 = vadd.f32 %v3031, %v2935
        %v3033 = vadd.f32 %v3032, %v2947
        %v3034 = vrot.slane %v3033, 4
        %v3035 = vadd.f32 %v3033, %v3034
        %v3036 = vrot.slane %v3035, 2
        %v3037 = vadd.f32 %v3035, %v3036
        %v3038 = vrot.slane %v3037, 1
        %v3039 = vadd.f32 %v3037, %v3038
        %v3040 = vadd.f32 %v2912, %v2924
        %v3041 = vadd.f32 %v3040, %v2936
        %v3042 = vadd.f32 %v3041, %v2948
        %v3043 = vrot.slane %v3042, 4
        %v3044 = vadd.f32 %v3042, %v3043
        %v3045 = vrot.slane %v3044, 2
        %v3046 = vadd.f32 %v3044, %v3045
        %v3047 = vrot.slane %v3046, 1
        %v3048 = vadd.f32 %v3046, %v3047
        %v3049 = vadd.f32 %v2913, %v2925
        %v3050 = vadd.f32 %v3049, %v2937
        %v3051 = vadd.f32 %v3050, %v2949
        %v3052 = vrot.slane %v3051, 4
        %v3053 = vadd.f32 %v3051, %v3052
        %v3054 = vrot.slane %v3053, 2
        %v3055 = vadd.f32 %v3053, %v3054
        %v3056 = vrot.slane %v3055, 1
        %v3057 = vadd.f32 %v3055, %v3056
        %v3060 = vlaneseq
        %v3061 = vshrl.u32 %v3060, 7
        %v3062 = vsub.s32 0, %v3061
        %v3063 = vrot.slane %v229, %v3062
        %v3064 = vlaneseq
        %v3065 = vshrl.u32 %v3064, 7
        %v3066 = vsub.s32 1, %v3065
        %v3067 = vrot.slane %v229, %v3066
        %v3068 = vlaneseq
        %v3069 = vshrl.u32 %v3068, 7
        %v3070 = vsub.s32 2, %v3069
        %v3071 = vrot.slane %v229, %v3070
        %v3072 = vlaneseq
        %v3073 = vshrl.u32 %v3072, 7
        %v3074 = vsub.s32 3, %v3073
        %v3075 = vrot.slane %v229, %v3074
        %v3076 = vlaneseq
        %v3077 = vshrl.u32 %v3076, 7
        %v3078 = vsub.s32 4, %v3077
        %v3079 = vrot.slane %v229, %v3078
        %v3080 = vlaneseq
        %v3081 = vshrl.u32 %v3080, 7
        %v3082 = vsub.s32 5, %v3081
        %v3083 = vrot.slane %v229, %v3082
        %v3084 = vlaneseq
        %v3085 = vshrl.u32 %v3084, 7
        %v3086 = vsub.s32 6, %v3085
        %v3087 = vrot.slane %v229, %v3086
        %v3088 = vlaneseq
        %v3089 = vshrl.u32 %v3088, 7
        %v3090 = vsub.s32 7, %v3089
        %v3091 = vrot.slane %v229, %v3090
        %v3092 = vlaneseq
        %v3093 = vshrl.u32 %v3092, 7
        %v3094 = vsub.s32 0, %v3093
        %v3095 = vrot.slane %v231, %v3094
        %v3096 = vlaneseq
        %v3097 = vshrl.u32 %v3096, 7
        %v3098 = vsub.s32 1, %v3097
        %v3099 = vrot.slane %v231, %v3098
        %v3100 = vlaneseq
        %v3101 = vshrl.u32 %v3100, 7
        %v3102 = vsub.s32 2, %v3101
        %v3103 = vrot.slane %v231, %v3102
        %v3104 = vlaneseq
        %v3105 = vshrl.u32 %v3104, 7
        %v3106 = vsub.s32 3, %v3105
        %v3107 = vrot.slane %v231, %v3106
        %v3120 = vadd.f32 %v2958, %v3063
        %v3121 = vadd.f32 %v2967, %v3067
        %v3122 = vadd.f32 %v2976, %v3071
        %v3123 = vadd.f32 %v2985, %v3075
        %v3124 = vadd.f32 %v2994, %v3079
        %v3125 = vadd.f32 %v3003, %v3083
        %v3126 = vadd.f32 %v3012, %v3087
        %v3127 = vadd.f32 %v3021, %v3091
        %v3128 = vadd.f32 %v3030, %v3095
        %v3129 = vadd.f32 %v3039, %v3099
        %v3130 = vadd.f32 %v3048, %v3103
        %v3131 = vadd.f32 %v3057, %v3107
        %v3144 = vcombine.low %v3120, %v3121
        %v3145 = vcombine.low %v3122, %v3123
        %v3146 = vcombine.low %v3124, %v3125
        %v3147 = vcombine.low %v3126, %v3127
        %v3149 = vunpack.c.l.s4 1966171168
        %v3150 = vunpack.c.0.s8 %v3149
        %v3151 = vlaneseq
        %v3152 = vshrl.u32 %v3151, 7
        %v3153 = vsub.s32 %v3150, %v3152
        %v3154 = vrot.slane %v3144, %v3153
        %v3156 = vunpack.c.l.s4 1966171168
        %v3157 = vunpack.c.0.s8 %v3156
        %v3158 = vlaneseq
        %v3159 = vshrl.u32 %v3158, 7
        %v3160 = vsub.s32 %v3157, %v3159
        %v3161 = vrot.slane %v3145, %v3160
        %v3163 = vunpack.c.l.s4 1966171168
        %v3164 = vunpack.c.0.s8 %v3163
        %v3165 = vlaneseq
        %v3166 = vshrl.u32 %v3165, 7
        %v3167 = vsub.s32 %v3164, %v3166
        %v3168 = vrot.slane %v3146, %v3167
        %v3170 = vunpack.c.l.s4 1966171168
        %v3171 = vunpack.c.0.s8 %v3170
        %v3172 = vlaneseq
        %v3173 = vshrl.u32 %v3172, 7
        %v3174 = vsub.s32 %v3171, %v3173
        %v3175 = vrot.slane %v3147, %v3174
        %v3176 = vcombine.low %v3154, %v3161
        %v3177 = vcombine.low %v3168, %v3175
        %v3179 = vunpack.c.l.s4 1966171168
        %v3180 = vunpack.c.0.s8 %v3179
        %v3181 = vlaneseq
        %v3182 = vshrl.u32 %v3181, 7
        %v3183 = vsub.s32 %v3180, %v3182
        %v3184 = vrot.slane %v3176, %v3183
        %v3186 = vunpack.c.l.s4 1966171168
        %v3187 = vunpack.c.0.s8 %v3186
        %v3188 = vlaneseq
        %v3189 = vshrl.u32 %v3188, 7
        %v3190 = vsub.s32 %v3187, %v3189
        %v3191 = vrot.slane %v3177, %v3190
        %v3192 = vcombine.low %v3184, %v3191
        %v3193 = vcombine.low %v3128, %v3129
        %v3194 = vcombine.low %v3130, %v3131
        %v3196 = vunpack.c.l.s4 1966171168
        %v3197 = vunpack.c.0.s8 %v3196
        %v3198 = vlaneseq
        %v3199 = vshrl.u32 %v3198, 7
        %v3200 = vsub.s32 %v3197, %v3199
        %v3201 = vrot.slane %v3193, %v3200
        %v3203 = vunpack.c.l.s4 1966171168
        %v3204 = vunpack.c.0.s8 %v3203
        %v3205 = vlaneseq
        %v3206 = vshrl.u32 %v3205, 7
        %v3207 = vsub.s32 %v3204, %v3206
        %v3208 = vrot.slane %v3194, %v3207
        %v3209 = vcombine.low %v3201, %v3208
        %v3211 = vunpack.c.l.s4 1966171168
        %v3212 = vunpack.c.0.s8 %v3211
        %v3213 = vlaneseq
        %v3214 = vshrl.u32 %v3213, 7
        %v3215 = vsub.s32 %v3212, %v3214
        %v3216 = vrot.slane %v3209, %v3215
        %3219 = vst [vmem:[%s213] sm:$0xff] %v3192
        %3220 = vst.msk [vmem:[%s213 + $0x8] sm:$0xf] %vm1089, %v3216
        %s3221 = sand.u32 %s118, 1
        %s3222 = scalar_lea.sflag [#allocation6], %s3221
        %s3223 = sand.u32 %s118, 1
        %s3224 = smul.addr %s3223, 12
        %s3225 = scalar_lea.vmem [#allocation7], %s3224
        // Predicated region
        $region41: #{tpu_custom_call.1} parent=35 // pred_check
          %p3226 = pneg %p128
        $region42: #{tpu_custom_call.1} parent=35 // pred_check_branch
          %3228 = sbr.rel (%p3226) target = $region44
        $region43: #{tpu_custom_call.1} parent=35 // pred_region
          %s3229 = smul.u32 12, %s21
          %s3231 = ssub.s32 192, 192
          %3232 = vsyncadd %s3222, %s3231
          %s3233 = smul.addr %s3229, 16
          %s3234 = scalar_lea.hbm %s4, %s3233
          %s3236 = sshll.u32 %s3225, 4
          %s3237 = int_to_ptr.vmem [resolvable:$true] %s3236
          %3239 = dma.vmem_to_hbm [thread:$0]  %s3237, 192, %s3234, %s3222
        $region44: #{tpu_custom_call.1} parent=35 // pred_fallthru
          _
      $region36: #{tpu_custom_call.1} parent=5 // pred_fallthru
        _
      %p3240 = scmp.le.s32.totalorder 2, %s16
      // Predicated region
      $region45: #{tpu_custom_call.1} parent=5 // pred_check
        %p3241 = pneg %p3240
      $region46: #{tpu_custom_call.1} parent=5 // pred_check_branch
        %3243 = sbr.rel (%p3241) target = $region48
      $region47: #{tpu_custom_call.1} parent=5 // pred_region
        %s3244 = ssub.s32 %s16, 2
        // Predicated region
        $region49: #{tpu_custom_call.1} parent=47 // pred_check
          %p3245 = pneg %p134
        $region50: #{tpu_custom_call.1} parent=47 // pred_check_branch
          %3247 = sbr.rel (%p3245) target = $region52
        $region51: #{tpu_custom_call.1} parent=47 // pred_region
          %s3248 = sand.u32 %s119, 1
          %s3249 = scalar_lea.sflag [#allocation6], %s3248
          %s3250 = sand.u32 %s119, 1
          %s3251 = smul.addr %s3250, 12
          %s3252 = scalar_lea.vmem [#allocation7], %s3251
          %3253 = dma.done %s3249, 192
        $region52: #{tpu_custom_call.1} parent=47 // pred_fallthru
          _
      $region48: #{tpu_custom_call.1} parent=5 // pred_fallthru
        _
    $region6: #{tpu_custom_call.1} parent=1 // loop_footer
      %s20 = sadd.s32 1, %s16
    $region7: #{tpu_custom_call.1} parent=1 // loop_footer_branch
      %15 = sbr.rel target = $region3
    $region8: #{tpu_custom_call.1} parent=1 // loop_exit
      _
    %3254 = vsyncpa [#allocation5], 1
    %s3255 = scalar_lea.sflag [#allocation5], 1
    %3256 = vsyncpa %s3255, 1
    %3257 = vsyncpa [#allocation6], 1
    %s3258 = scalar_lea.sflag [#allocation6], 1
    %3259 = vsyncpa %s3258, 1

</llo_original>
